<compile_context>
chip_gen: v7x
topology: tpu7x:2x2x1
jax: 0.10.0
libtpu: 0.0.40
codegen_flags: <defaults>
</compile_context>

<pallas_src>
import math
import functools

import numpy as np
import jax
import jax.numpy as jnp
from jax.experimental import pallas as pl
from jax.experimental.pallas import tpu as pltpu


# --------------------------- generation-aware VMEM --------------------------- #

def _vmem_limit_bytes():
    """~100 MiB scoped VMEM on 128-MiB parts (v5e/v6e), <=48 MiB on v7x (64 MiB)."""
    try:
        cap = int(pltpu.get_tpu_info().vmem_capacity_bytes)
    except Exception:
        cap = 64 * 1024 * 1024
    if cap >= 128 * 1024 * 1024:
        return 100 * 1024 * 1024
    return 48 * 1024 * 1024


_VMEM_LIMIT = _vmem_limit_bytes()
_ROW_PARAMS = pltpu.CompilerParams(
    dimension_semantics=("parallel",), vmem_limit_bytes=_VMEM_LIMIT)
_ROWCOL_PARAMS = pltpu.CompilerParams(
    dimension_semantics=("parallel", "parallel"), vmem_limit_bytes=_VMEM_LIMIT)


# ------------------ single-buffering for grid-invariant operands ------------- #

@functools.lru_cache(maxsize=None)
def _buffered_one_supported():
    """Probe whether pipeline_mode=pl.Buffered(1) lowers on this jax/libtpu."""
    try:
        spec = pl.BlockSpec((8, 128), lambda i: (0, 0), pipeline_mode=pl.Buffered(1))

        def k(x_ref, o_ref):
            o_ref[...] = x_ref[...] + 1.0

        y = pl.pallas_call(
            k,
            out_shape=jax.ShapeDtypeStruct((8, 128), jnp.float32),
            grid=(2,),
            in_specs=[spec],
            out_specs=pl.BlockSpec((8, 128), lambda i: (0, 0)),
        )(jnp.zeros((8, 128), jnp.float32))
        jax.block_until_ready(y)
        return True
    except Exception:
        return False


def _inv_spec(block_shape, index_map):
    """BlockSpec for operands whose block index never changes: skip double-buffering."""
    if _buffered_one_supported():
        return pl.BlockSpec(block_shape, index_map, pipeline_mode=pl.Buffered(1))
    return pl.BlockSpec(block_shape, index_map)


# ------------------------------ in-kernel math ------------------------------ #

def _layer_norm(x, alpha, bias, eps):
    # torch reference Norm: alpha*(x-mean)/(std+eps)+bias with torch.std (ddof=1).
    d = x.shape[-1]
    mean = jnp.mean(x, axis=-1, keepdims=True)
    diff = x - mean
    var = jnp.sum(diff * diff, axis=-1, keepdims=True) * (1.0 / (d - 1))
    std = jnp.sqrt(var)
    # exact division for fidelity (approx reciprocal only used for softmax denom)
    return alpha * diff / (std + eps) + bias


def _gelu(x):
    c = math.sqrt(2.0 / math.pi)
    return 0.5 * x * (1.0 + jnp.tanh(c * (x + 0.044715 * x * x * x)))


# -------------------------------- kernels ----------------------------------- #

def _ln_matmul_kernel(x_ref, a_ref, c_ref, w_ref, b_ref, o_ref, *, eps, add_residual):
    # o = [x +] Norm(x) @ W + b      (W stored bf16, f32 MXU accumulation)
    x = x_ref[...].astype(jnp.float32)
    xn = _layer_norm(x, a_ref[...], c_ref[...], eps)
    y = jnp.dot(xn.astype(jnp.bfloat16), w_ref[...],
                preferred_element_type=jnp.float32) + b_ref[...]
    if add_residual:
        y = x + y
    o_ref[...] = y.astype(o_ref.dtype)


def _ln_ffn_residual_kernel(x_ref, a_ref, c_ref, w1_ref, b1_ref, w2_ref, b2_ref,
                            o_ref, *, eps):
    # o = x + W2 @ GELU(W1 @ Norm(x) + b1) + b2   (one HBM pass over x)
    x = x_ref[...].astype(jnp.float32)
    xn = _layer_norm(x, a_ref[...], c_ref[...], eps)
    h = jnp.dot(xn.astype(jnp.bfloat16), w1_ref[...],
                preferred_element_type=jnp.float32) + b1_ref[...]
    g = _gelu(h)                                           # elementwise stays f32
    y = jnp.dot(g.astype(jnp.bfloat16), w2_ref[...],
                preferred_element_type=jnp.float32) + b2_ref[...]
    o_ref[...] = (x + y).astype(o_ref.dtype)


def _attn_out_kernel(qkv_ref, res_ref, wo_ref, bo_ref, o_ref, ctx_ref, *,
                     num_heads, d_k, causal):
    # qkv_ref: (1, 3H, S, d_k) bf16 head-major; res_ref / o_ref: (1, S, D) bf16
    # ctx_ref: (S, D) bf16 VMEM scratch for the concatenated per-head contexts.
    S = qkv_ref.shape[2]
    H = num_heads
    scale = 1.0 / math.sqrt(d_k)

    if causal:
        row = jax.lax.broadcasted_iota(jnp.int32, (S, S), 0)
        col = jax.lax.broadcasted_iota(jnp.int32, (S, S), 1)
        keep = row >= col

    for h in range(H):                        # static unroll over heads
        q_h = qkv_ref[0, h]                   # (S, d_k) bf16 — no f32 up-cast
        k_h = qkv_ref[0, H + h]
        v_h = qkv_ref[0, 2 * H + h]

        s = jnp.einsum("qd,kd->qk", q_h, k_h,
                       preferred_element_type=jnp.float32) * scale
        if causal:
            s = jnp.where(keep, s, -1000000000.0)
        m = jnp.max(s, axis=-1, keepdims=True)              # softmax in f32
        e = jnp.exp(s - m)
        p = e * pl.reciprocal(jnp.sum(e, axis=-1, keepdims=True), approx=True)

        ctx = jnp.dot(p.astype(jnp.bfloat16), v_h,
                      preferred_element_type=jnp.float32)   # (S, d_k)
        ctx_ref[:, h * d_k:(h + 1) * d_k] = ctx.astype(jnp.bfloat16)

    # single K=D output projection over the concatenated heads + bias + residual
    out = jnp.dot(ctx_ref[...], wo_ref[...],
                  preferred_element_type=jnp.float32) + bo_ref[...]
    o_ref[0] = (res_ref[0].astype(jnp.float32) + out).astype(o_ref.dtype)


# --------------------------- kernel wrappers -------------------------------- #

def _row_tile(n, target=512):
    """Largest row tile <= target that is a multiple of 8 and divides n."""
    if n <= target:
        return n
    t = target - (target % 8)
    while t >= 8:
        if n % t == 0:
            return t
        t -= 8
    return n


def pallas_ln_matmul(x2d, ln, w, b, *, add_residual=False,
                     out_dtype=jnp.bfloat16, eps=1e-6):
    N, D = x2d.shape
    Dout = w.shape[1]
    TM = _row_tile(N)
    kernel = functools.partial(_ln_matmul_kernel, eps=eps, add_residual=add_residual)
    return pl.pallas_call(
        kernel,
        out_shape=jax.ShapeDtypeStruct((N, Dout), out_dtype),
        grid=(N // TM,),
        in_specs=[
            pl.BlockSpec((TM, D), lambda i: (i, 0)),
            _inv_spec((1, D), lambda i: (0, 0)),
            _inv_spec((1, D), lambda i: (0, 0)),
            _inv_spec((D, Dout), lambda i: (0, 0)),
            _inv_spec((1, Dout), lambda i: (0, 0)),
        ],
        out_specs=pl.BlockSpec((TM, Dout), lambda i: (i, 0)),
        compiler_params=_ROW_PARAMS,
    )(x2d, ln["alpha"].reshape(1, D), ln["bias"].reshape(1, D),
      w, b.reshape(1, Dout))


def pallas_ln_ffn_residual(x2d, ln, ffn, *, eps=1e-6):
    N, D = x2d.shape
    F = ffn["w1"].shape[1]
    TM = _row_tile(N)
    kernel = functools.partial(_ln_ffn_residual_kernel, eps=eps)
    return pl.pallas_call(
        kernel,
        out_shape=jax.ShapeDtypeStruct((N, D), jnp.bfloat16),
        grid=(N // TM,),
        in_specs=[
            pl.BlockSpec((TM, D), lambda i: (i, 0)),
            _inv_spec((1, D), lambda i: (0, 0)),
            _inv_spec((1, D), lambda i: (0, 0)),
            _inv_spec((D, F), lambda i: (0, 0)),
            _inv_spec((1, F), lambda i: (0, 0)),
            _inv_spec((F, D), lambda i: (0, 0)),
            _inv_spec((1, D), lambda i: (0, 0)),
        ],
        out_specs=pl.BlockSpec((TM, D), lambda i: (i, 0)),
        compiler_params=_ROW_PARAMS,
    )(x2d, ln["alpha"].reshape(1, D), ln["bias"].reshape(1, D),
      ffn["w1"], ffn["b1"].reshape(1, F), ffn["w2"], ffn["b2"].reshape(1, D))


def pallas_attention_block(qkv_hm, x_res, wo, bo, *, num_heads, causal):
    # qkv_hm: (B, 3H, S, d_k) bf16 head-major; x_res: (B, S, D) bf16
    B, threeH, S, d_k = qkv_hm.shape
    D = num_heads * d_k
    kernel = functools.partial(_attn_out_kernel, num_heads=num_heads,
                               d_k=d_k, causal=causal)
    return pl.pallas_call(
        kernel,
        out_shape=jax.ShapeDtypeStruct((B, S, D), jnp.bfloat16),
        grid=(B,),
        in_specs=[
            pl.BlockSpec((1, threeH, S, d_k), lambda b: (b, 0, 0, 0)),
            pl.BlockSpec((1, S, D), lambda b: (b, 0, 0)),
            _inv_spec((D, D), lambda b: (0, 0)),
            _inv_spec((1, D), lambda b: (0, 0)),
        ],
        out_specs=pl.BlockSpec((1, S, D), lambda b: (b, 0, 0)),
        scratch_shapes=[pltpu.VMEM((S, D), jnp.bfloat16)],
        compiler_params=_ROW_PARAMS,
    )(qkv_hm, x_res, wo, bo.reshape(1, D))


def pallas_lm_head(x2d, ln, w, b, *, eps=1e-6):
    # final Norm + LM head; vocab axis padded to a multiple of 128 and grid-tiled
    # (lane-dense stores; the weight tile fits VMEM at real GPT-2 vocab on v7x).
    N, D = x2d.shape
    V = w.shape[1]
    Vp = ((V + 127) // 128) * 128
    if Vp != V:
        w = jnp.pad(w, ((0, 0), (0, Vp - V)))
        b = jnp.pad(b, ((0, Vp - V),))
    TN = min(Vp, 512)
    while Vp % TN:
        TN -= 128
    TM = _row_tile(N)
    kernel = functools.partial(_ln_matmul_kernel, eps=eps, add_residual=False)
    out = pl.pallas_call(
        kernel,
        out_shape=jax.ShapeDtypeStruct((N, Vp), jnp.float32),
        grid=(N // TM, Vp // TN),
        in_specs=[
            pl.BlockSpec((TM, D), lambda i, j: (i, 0)),
            _inv_spec((1, D), lambda i, j: (0, 0)),
            _inv_spec((1, D), lambda i, j: (0, 0)),
            pl.BlockSpec((D, TN), lambda i, j: (0, j)),
            pl.BlockSpec((1, TN), lambda i, j: (0, j)),
        ],
        out_specs=pl.BlockSpec((TM, TN), lambda i, j: (i, j)),
        compiler_params=_ROWCOL_PARAMS,
    )(x2d, ln["alpha"].reshape(1, D), ln["bias"].reshape(1, D), w, b.reshape(1, Vp))
    return out[:, :V] if Vp != V else out


# ------------------------------ forward pass -------------------------------- #

def gpt2_forward(params, ids, *, num_heads, causal=True):
    B, S = ids.shape
    D = params["embed"].shape[1]
    d_k = D // num_heads

    # Embedding gather + sqrt(d_model) scale + positional encoding in plain JAX
    # (XLA fuses them into the gather). Residual stream carried in bf16 between
    # kernels; all LN/softmax/GELU math is f32 inside the kernels.
    x = jnp.take(params["embed"], ids, axis=0) * math.sqrt(D)
    x = x + params["pe"][:S][None, :, :]
    x2d = x.reshape(B * S, D).astype(jnp.bfloat16)

    for lp in params["dec_layers"]:                        # DecoderLayer
        # (1) Norm1 + fused QKV projection -> bf16 activations
        qkv = pallas_ln_matmul(x2d, lp["ln1"], lp["mha"]["wqkv"], lp["mha"]["bqkv"])
        # cheap wrapper relayout to head-major (B, 3H, S, d_k) so per-head slices
        # in the kernel index a leading axis instead of carving the lane axis
        qkv_hm = jnp.transpose(qkv.reshape(B, S, 3 * num_heads, d_k), (0, 2, 1, 3))
        # (2) multi-head attention + single K=D output projection + residual add
        x3d = pallas_attention_block(qkv_hm, x2d.reshape(B, S, D),
                                     lp["mha"]["wo"], lp["mha"]["bo"],
                                     num_heads=num_heads, causal=causal)
        x2d = x3d.reshape(B * S, D)
        # (3) Norm2 + FFN + residual add
        x2d = pallas_ln_ffn_residual(x2d, lp["ln2"], lp["ffn"])

    for lp in params["llayers"]:                           # LLayer
        x2d = pallas_ln_matmul(x2d, lp["ln1"], lp["lin_w"], lp["lin_b"],
                               add_residual=True)
        x2d = pallas_ln_ffn_residual(x2d, lp["ln2"], lp["ffn"])

    # final Norm + LM head fused (f32 logits)
    logits = pallas_lm_head(x2d, params["final_ln"], params["final_w"],
                            params["final_b"])
    return logits.reshape(B, S, -1)


# ------------------------------- init --------------------------------------- #

def make_pe(max_seq_len, d_model):
    # NOTE: reproduces the reference PositionalEncoder formula exactly.
    pe = np.zeros((max_seq_len, d_model), np.float32)
    for pos in range(max_seq_len):
        for i in range(0, d_model, 2):
            pe[pos, i] = math.sin(pos / 10000 ** (2 * i / d_model))
            pe[pos, i + 1] = math.cos(pos / 10000 ** (2 * (i + 1) / d_model))
    return jnp.asarray(pe)


def init_params(key, num_layers, d_model, num_heads, vocab_size,
                d_ff=1024, max_seq_len=255):
    keys = iter(jax.random.split(key, 256))

    def w(shape, scale=0.02, dtype=jnp.bfloat16):          # matmul weights in bf16
        return (jax.random.normal(next(keys), shape, jnp.float32) * scale).astype(dtype)

    def bias(shape):                                        # biases stay f32
        return jax.random.normal(next(keys), shape, jnp.float32) * 0.02

    def norm_p():
        return {"alpha": jnp.ones((d_model,), jnp.float32),
                "bias": jnp.zeros((d_model,), jnp.float32)}

    def ffn_p():
        return {"w1": w((d_model, d_ff)), "b1": bias((d_ff,)),
                "w2": w((d_ff, d_model)), "b2": bias((d_model,))}

    def mha_p():
        wq, wk, wv = (w((d_model, d_model)) for _ in range(3))
        bq, bk, bv = (bias((d_model,)) for _ in range(3))
        return {"wqkv": jnp.concatenate([wq, wk, wv], axis=1),   # fused QKV weight
                "bqkv": jnp.concatenate([bq, bk, bv], axis=0),
                "wo": w((d_model, d_model)), "bo": bias((d_model,))}

    return {
        "embed": w((vocab_size, d_model), dtype=jnp.float32),
        "pe": make_pe(max_seq_len, d_model),
        "dec_layers": [{"ln1": norm_p(), "ln2": norm_p(),
                        "mha": mha_p(), "ffn": ffn_p()}
                       for _ in range(num_layers)],
        "llayers": [{"ln1": norm_p(), "ln2": norm_p(),
                     "lin_w": w((d_model, d_model)), "lin_b": bias((d_model,)),
                     "ffn": ffn_p()}],
        "final_ln": norm_p(),
        "final_w": w((d_model, vocab_size)),
        "final_b": bias((vocab_size,)),
    }


# ------------------------------- main ---------------------------------------- #

if __name__ == "__main__":
    num_layers, d_model, num_heads, vocab_size = 2, 32, 4, 50
    B, S = 2, 8

    # resolve the Buffered(1) probe once, outside the jitted trace
    _ = _buffered_one_supported()

    key = jax.random.PRNGKey(0)
    pkey, ikey = jax.random.split(key)

    params = init_params(pkey, num_layers, d_model, num_heads, vocab_size)
    ids = jax.random.randint(ikey, (B, S), 0, vocab_size, dtype=jnp.int32)

    fwd = jax.jit(functools.partial(gpt2_forward, num_heads=num_heads, causal=True))
    out = fwd(params, ids)
    jax.block_until_ready(out)

    assert out.shape == (B, S, vocab_size)
    assert bool(jnp.all(jnp.isfinite(out)))
    print("KERNEL_OK")
</pallas_src>

<mosaic_0001>
module attributes {stable_mosaic.version = 11 : i64} {
  func.func @k(%arg0: i32, %arg1: memref<8x128xf32, #tpu.memory_space<vmem>>, %arg2: memref<8x128xf32, #tpu.memory_space<vmem>>) attributes {dimension_semantics = [#tpu.dimension_semantics<arbitrary>], iteration_bounds = array<i64: 2>, scalar_prefetch = 0 : i64, scratch_operands = 0 : i64, tpu.core_type = #tpu.core_type<tc>, window_params = [{pipeline_mode = #tpu.pipeline_mode<synchronous>, transform_indices = @transform_0, window_bounds = array<i64: 8, 128>}, {pipeline_mode = #tpu.pipeline_mode<synchronous>, transform_indices = @transform_1, window_bounds = array<i64: 8, 128>}]} {
    %c0 = arith.constant 0 : index
    %c0_0 = arith.constant 0 : index
    %0 = vector.load %arg1[%c0, %c0_0] : memref<8x128xf32, #tpu.memory_space<vmem>>, vector<8x128xf32>
    %cst = arith.constant 1.000000e+00 : f32
    %1 = vector.broadcast %cst : f32 to vector<8x128xf32>
    %2 = arith.addf %0, %1 : vector<8x128xf32>
    %c0_1 = arith.constant 0 : index
    %c0_2 = arith.constant 0 : index
    %3 = vector.load %arg2[%c0_1, %c0_2] : memref<8x128xf32, #tpu.memory_space<vmem>>, vector<8x128xf32>
    tpu.vector_store %arg2[%c0_1, %c0_2], %2 {strides = array<i32>} : memref<8x128xf32, #tpu.memory_space<vmem>>, vector<8x128xf32>,
    return
  }
  func.func @transform_0(%arg0: i32) -> (i32, i32) {
    %c0_i32 = arith.constant 0 : i32
    %c0_i32_0 = arith.constant 0 : i32
    %c0_i32_1 = arith.constant 0 : i32
    return %c0_i32, %c0_i32_0 : i32, i32
  }
  func.func @transform_1(%arg0: i32) -> (i32, i32) {
    %c0_i32 = arith.constant 0 : i32
    %c0_i32_0 = arith.constant 0 : i32
    %c0_i32_1 = arith.constant 0 : i32
    return %c0_i32, %c0_i32_0 : i32, i32
  }
}

module attributes {stable_mosaic.version = 11 : i64} {
  func.func @_attn_out_kernel(%arg0: i32, %arg1: memref<1x12x8x8xbf16, #tpu.memory_space<vmem>>, %arg2: memref<1x8x32xbf16, #tpu.memory_space<vmem>>, %arg3: memref<32x32xbf16, #tpu.memory_space<vmem>>, %arg4: memref<1x32xf32, #tpu.memory_space<vmem>>, %arg5: memref<1x8x32xbf16, #tpu.memory_space<vmem>>, %arg6: memref<8x32xbf16, #tpu.memory_space<vmem>>) attributes {dimension_semantics = [#tpu.dimension_semantics<parallel>], iteration_bounds = array<i64: 2>, scalar_prefetch = 0 : i64, scratch_operands = 1 : i64, tpu.core_type = #tpu.core_type<tc>, window_params = [{transform_indices = @transform_0, window_bounds = array<i64: 1, 12, 8, 8>}, {transform_indices = @transform_1, window_bounds = array<i64: 1, 8, 32>}, {pipeline_mode = #tpu.pipeline_mode<synchronous>, transform_indices = @transform_2, window_bounds = array<i64: 32, 32>}, {pipeline_mode = #tpu.pipeline_mode<synchronous>, transform_indices = @transform_3, window_bounds = array<i64: 1, 32>}, {transform_indices = @transform_4, window_bounds = array<i64: 1, 8, 32>}]} {
    %0 = tpu.iota {dimensions = array<i32: 0>} : vector<8x8xi32>
    %1 = tpu.iota {dimensions = array<i32: 1>} : vector<8x8xi32>
    %2 = arith.cmpi sge, %0, %1 : vector<8x8xi32>
    %c0 = arith.constant 0 : index
    %c0_0 = arith.constant 0 : index
    %c0_1 = arith.constant 0 : index
    %c0_2 = arith.constant 0 : index
    %3 = vector.load %arg1[%c0, %c0_0, %c0_1, %c0_2] : memref<1x12x8x8xbf16, #tpu.memory_space<vmem>>, vector<1x1x8x8xbf16>
    %4 = vector.shape_cast %3 : vector<1x1x8x8xbf16> to vector<8x8xbf16>
    %c0_3 = arith.constant 0 : index
    %c4 = arith.constant 4 : index
    %c0_4 = arith.constant 0 : index
    %c0_5 = arith.constant 0 : index
    %5 = vector.load %arg1[%c0_3, %c4, %c0_4, %c0_5] : memref<1x12x8x8xbf16, #tpu.memory_space<vmem>>, vector<1x1x8x8xbf16>
    %6 = vector.shape_cast %5 : vector<1x1x8x8xbf16> to vector<8x8xbf16>
    %c0_6 = arith.constant 0 : index
    %c8 = arith.constant 8 : index
    %c0_7 = arith.constant 0 : index
    %c0_8 = arith.constant 0 : index
    %7 = vector.load %arg1[%c0_6, %c8, %c0_7, %c0_8] : memref<1x12x8x8xbf16, #tpu.memory_space<vmem>>, vector<1x1x8x8xbf16>
    %8 = vector.shape_cast %7 : vector<1x1x8x8xbf16> to vector<8x8xbf16>
    "tpu.trace_start"() <{level = 10 : i32, message = "qd,kd->qk"}> : () -> ()
    %cst = arith.constant dense<0.000000e+00> : vector<8x8xf32>
    %9 = tpu.matmul %4, %6, %cst {dimension_numbers = #tpu.dot_dimension_numbers<[1], [1], [0], [0], [0, 0, 1, 0], [], []>} : vector<8x8xbf16>, vector<8x8xbf16>, vector<8x8xf32> -> vector<8x8xf32>
    "tpu.trace_stop"() : () -> ()
    %cst_9 = arith.constant 0.353553385 : f32
    %10 = vector.broadcast %cst_9 : f32 to vector<8x8xf32>
    %11 = arith.mulf %9, %10 : vector<8x8xf32>
    %cst_10 = arith.constant -1.000000e+09 : f32
    %12 = vector.broadcast %cst_10 : f32 to vector<8x8xf32>
    %13 = arith.select %2, %11, %12 : vector<8x8xi1>, vector<8x8xf32>
    %cst_11 = arith.constant dense<0xFF800000> : vector<8xf32>
    %14 = vector.multi_reduction <maximumf>, %13, %cst_11 [1] : vector<8x8xf32> to vector<8xf32>
    %15 = vector.shape_cast %14 : vector<8xf32> to vector<8x1xf32>
    %16 = vector.broadcast %15 : vector<8x1xf32> to vector<8x8xf32>
    %17 = arith.subf %13, %16 : vector<8x8xf32>
    %18 = math.exp %17 : vector<8x8xf32>
    %cst_12 = arith.constant dense<0.000000e+00> : vector<8xf32>
    %19 = vector.multi_reduction <add>, %18, %cst_12 [1] : vector<8x8xf32> to vector<8xf32>
    %20 = vector.shape_cast %19 : vector<8xf32> to vector<8x1xf32>
    %21 = tpu.reciprocal %20 {approx = true} : vector<8x1xf32> -> vector<8x1xf32>
    %22 = vector.broadcast %21 : vector<8x1xf32> to vector<8x8xf32>
    %23 = arith.mulf %18, %22 : vector<8x8xf32>
    %24 = arith.truncf %23 : vector<8x8xf32> to vector<8x8xbf16>
    %cst_13 = arith.constant dense<0.000000e+00> : vector<8x8xf32>
    %25 = tpu.matmul %24, %8, %cst_13 {dimension_numbers = #tpu.dot_dimension_numbers<[1], [0], [0], [1], [0, 0, 1, 1], [], []>} : vector<8x8xbf16>, vector<8x8xbf16>, vector<8x8xf32> -> vector<8x8xf32>
    %26 = arith.truncf %25 : vector<8x8xf32> to vector<8x8xbf16>
    %c0_14 = arith.constant 0 : index
    %c0_15 = arith.constant 0 : index
    %27 = vector.load %arg6[%c0_14, %c0_15] : memref<8x32xbf16, #tpu.memory_space<vmem>>, vector<8x8xbf16>
    tpu.vector_store %arg6[%c0_14, %c0_15], %26 {strides = array<i32>} : memref<8x32xbf16, #tpu.memory_space<vmem>>, vector<8x8xbf16>,
    %c0_16 = arith.constant 0 : index
    %c1 = arith.constant 1 : index
    %c0_17 = arith.constant 0 : index
    %c0_18 = arith.constant 0 : index
    %28 = vector.load %arg1[%c0_16, %c1, %c0_17, %c0_18] : memref<1x12x8x8xbf16, #tpu.memory_space<vmem>>, vector<1x1x8x8xbf16>
    %29 = vector.shape_cast %28 : vector<1x1x8x8xbf16> to vector<8x8xbf16>
    %c0_19 = arith.constant 0 : index
    %c5 = arith.constant 5 : index
    %c0_20 = arith.constant 0 : index
    %c0_21 = arith.constant 0 : index
    %30 = vector.load %arg1[%c0_19, %c5, %c0_20, %c0_21] : memref<1x12x8x8xbf16, #tpu.memory_space<vmem>>, vector<1x1x8x8xbf16>
    %31 = vector.shape_cast %30 : vector<1x1x8x8xbf16> to vector<8x8xbf16>
    %c0_22 = arith.constant 0 : index
    %c9 = arith.constant 9 : index
    %c0_23 = arith.constant 0 : index
    %c0_24 = arith.constant 0 : index
    %32 = vector.load %arg1[%c0_22, %c9, %c0_23, %c0_24] : memref<1x12x8x8xbf16, #tpu.memory_space<vmem>>, vector<1x1x8x8xbf16>
    %33 = vector.shape_cast %32 : vector<1x1x8x8xbf16> to vector<8x8xbf16>
    "tpu.trace_start"() <{level = 10 : i32, message = "qd,kd->qk"}> : () -> ()
    %cst_25 = arith.constant dense<0.000000e+00> : vector<8x8xf32>
    %34 = tpu.matmul %29, %31, %cst_25 {dimension_numbers = #tpu.dot_dimension_numbers<[1], [1], [0], [0], [0, 0, 1, 0], [], []>} : vector<8x8xbf16>, vector<8x8xbf16>, vector<8x8xf32> -> vector<8x8xf32>
    "tpu.trace_stop"() : () -> ()
    %cst_26 = arith.constant 0.353553385 : f32
    %35 = vector.broadcast %cst_26 : f32 to vector<8x8xf32>
    %36 = arith.mulf %34, %35 : vector<8x8xf32>
    %cst_27 = arith.constant -1.000000e+09 : f32
    %37 = vector.broadcast %cst_27 : f32 to vector<8x8xf32>
    %38 = arith.select %2, %36, %37 : vector<8x8xi1>, vector<8x8xf32>
    %cst_28 = arith.constant dense<0xFF800000> : vector<8xf32>
    %39 = vector.multi_reduction <maximumf>, %38, %cst_28 [1] : vector<8x8xf32> to vector<8xf32>
    %40 = vector.shape_cast %39 : vector<8xf32> to vector<8x1xf32>
    %41 = vector.broadcast %40 : vector<8x1xf32> to vector<8x8xf32>
    %42 = arith.subf %38, %41 : vector<8x8xf32>
    %43 = math.exp %42 : vector<8x8xf32>
    %cst_29 = arith.constant dense<0.000000e+00> : vector<8xf32>
    %44 = vector.multi_reduction <add>, %43, %cst_29 [1] : vector<8x8xf32> to vector<8xf32>
    %45 = vector.shape_cast %44 : vector<8xf32> to vector<8x1xf32>
    %46 = tpu.reciprocal %45 {approx = true} : vector<8x1xf32> -> vector<8x1xf32>
    %47 = vector.broadcast %46 : vector<8x1xf32> to vector<8x8xf32>
    %48 = arith.mulf %43, %47 : vector<8x8xf32>
    %49 = arith.truncf %48 : vector<8x8xf32> to vector<8x8xbf16>
    %cst_30 = arith.constant dense<0.000000e+00> : vector<8x8xf32>
    %50 = tpu.matmul %49, %33, %cst_30 {dimension_numbers = #tpu.dot_dimension_numbers<[1], [0], [0], [1], [0, 0, 1, 1], [], []>} : vector<8x8xbf16>, vector<8x8xbf16>, vector<8x8xf32> -> vector<8x8xf32>
    %51 = arith.truncf %50 : vector<8x8xf32> to vector<8x8xbf16>
    %c0_31 = arith.constant 0 : index
    %c8_32 = arith.constant 8 : index
    %52 = vector.load %arg6[%c0_31, %c8_32] : memref<8x32xbf16, #tpu.memory_space<vmem>>, vector<8x8xbf16>
    tpu.vector_store %arg6[%c0_31, %c8_32], %51 {strides = array<i32>} : memref<8x32xbf16, #tpu.memory_space<vmem>>, vector<8x8xbf16>,
    %c0_33 = arith.constant 0 : index
    %c2 = arith.constant 2 : index
    %c0_34 = arith.constant 0 : index
    %c0_35 = arith.constant 0 : index
    %53 = vector.load %arg1[%c0_33, %c2, %c0_34, %c0_35] : memref<1x12x8x8xbf16, #tpu.memory_space<vmem>>, vector<1x1x8x8xbf16>
    %54 = vector.shape_cast %53 : vector<1x1x8x8xbf16> to vector<8x8xbf16>
    %c0_36 = arith.constant 0 : index
    %c6 = arith.constant 6 : index
    %c0_37 = arith.constant 0 : index
    %c0_38 = arith.constant 0 : index
    %55 = vector.load %arg1[%c0_36, %c6, %c0_37, %c0_38] : memref<1x12x8x8xbf16, #tpu.memory_space<vmem>>, vector<1x1x8x8xbf16>
    %56 = vector.shape_cast %55 : vector<1x1x8x8xbf16> to vector<8x8xbf16>
    %c0_39 = arith.constant 0 : index
    %c10 = arith.constant 10 : index
    %c0_40 = arith.constant 0 : index
    %c0_41 = arith.constant 0 : index
    %57 = vector.load %arg1[%c0_39, %c10, %c0_40, %c0_41] : memref<1x12x8x8xbf16, #tpu.memory_space<vmem>>, vector<1x1x8x8xbf16>
    %58 = vector.shape_cast %57 : vector<1x1x8x8xbf16> to vector<8x8xbf16>
    "tpu.trace_start"() <{level = 10 : i32, message = "qd,kd->qk"}> : () -> ()
    %cst_42 = arith.constant dense<0.000000e+00> : vector<8x8xf32>
    %59 = tpu.matmul %54, %56, %cst_42 {dimension_numbers = #tpu.dot_dimension_numbers<[1], [1], [0], [0], [0, 0, 1, 0], [], []>} : vector<8x8xbf16>, vector<8x8xbf16>, vector<8x8xf32> -> vector<8x8xf32>
    "tpu.trace_stop"() : () -> ()
    %cst_43 = arith.constant 0.353553385 : f32
    %60 = vector.broadcast %cst_43 : f32 to vector<8x8xf32>
    %61 = arith.mulf %59, %60 : vector<8x8xf32>
    %cst_44 = arith.constant -1.000000e+09 : f32
    %62 = vector.broadcast %cst_44 : f32 to vector<8x8xf32>
    %63 = arith.select %2, %61, %62 : vector<8x8xi1>, vector<8x8xf32>
    %cst_45 = arith.constant dense<0xFF800000> : vector<8xf32>
    %64 = vector.multi_reduction <maximumf>, %63, %cst_45 [1] : vector<8x8xf32> to vector<8xf32>
    %65 = vector.shape_cast %64 : vector<8xf32> to vector<8x1xf32>
    %66 = vector.broadcast %65 : vector<8x1xf32> to vector<8x8xf32>
    %67 = arith.subf %63, %66 : vector<8x8xf32>
    %68 = math.exp %67 : vector<8x8xf32>
    %cst_46 = arith.constant dense<0.000000e+00> : vector<8xf32>
    %69 = vector.multi_reduction <add>, %68, %cst_46 [1] : vector<8x8xf32> to vector<8xf32>
    %70 = vector.shape_cast %69 : vector<8xf32> to vector<8x1xf32>
    %71 = tpu.reciprocal %70 {approx = true} : vector<8x1xf32> -> vector<8x1xf32>
    %72 = vector.broadcast %71 : vector<8x1xf32> to vector<8x8xf32>
    %73 = arith.mulf %68, %72 : vector<8x8xf32>
    %74 = arith.truncf %73 : vector<8x8xf32> to vector<8x8xbf16>
    %cst_47 = arith.constant dense<0.000000e+00> : vector<8x8xf32>
    %75 = tpu.matmul %74, %58, %cst_47 {dimension_numbers = #tpu.dot_dimension_numbers<[1], [0], [0], [1], [0, 0, 1, 1], [], []>} : vector<8x8xbf16>, vector<8x8xbf16>, vector<8x8xf32> -> vector<8x8xf32>
    %76 = arith.truncf %75 : vector<8x8xf32> to vector<8x8xbf16>
    %c0_48 = arith.constant 0 : index
    %c16 = arith.constant 16 : index
    %77 = vector.load %arg6[%c0_48, %c16] : memref<8x32xbf16, #tpu.memory_space<vmem>>, vector<8x8xbf16>
    tpu.vector_store %arg6[%c0_48, %c16], %76 {strides = array<i32>} : memref<8x32xbf16, #tpu.memory_space<vmem>>, vector<8x8xbf16>,
    %c0_49 = arith.constant 0 : index
    %c3 = arith.constant 3 : index
    %c0_50 = arith.constant 0 : index
    %c0_51 = arith.constant 0 : index
    %78 = vector.load %arg1[%c0_49, %c3, %c0_50, %c0_51] : memref<1x12x8x8xbf16, #tpu.memory_space<vmem>>, vector<1x1x8x8xbf16>
    %79 = vector.shape_cast %78 : vector<1x1x8x8xbf16> to vector<8x8xbf16>
    %c0_52 = arith.constant 0 : index
    %c7 = arith.constant 7 : index
    %c0_53 = arith.constant 0 : index
    %c0_54 = arith.constant 0 : index
    %80 = vector.load %arg1[%c0_52, %c7, %c0_53, %c0_54] : memref<1x12x8x8xbf16, #tpu.memory_space<vmem>>, vector<1x1x8x8xbf16>
    %81 = vector.shape_cast %80 : vector<1x1x8x8xbf16> to vector<8x8xbf16>
    %c0_55 = arith.constant 0 : index
    %c11 = arith.constant 11 : index
    %c0_56 = arith.constant 0 : index
    %c0_57 = arith.constant 0 : index
    %82 = vector.load %arg1[%c0_55, %c11, %c0_56, %c0_57] : memref<1x12x8x8xbf16, #tpu.memory_space<vmem>>, vector<1x1x8x8xbf16>
    %83 = vector.shape_cast %82 : vector<1x1x8x8xbf16> to vector<8x8xbf16>
    "tpu.trace_start"() <{level = 10 : i32, message = "qd,kd->qk"}> : () -> ()
    %cst_58 = arith.constant dense<0.000000e+00> : vector<8x8xf32>
    %84 = tpu.matmul %79, %81, %cst_58 {dimension_numbers = #tpu.dot_dimension_numbers<[1], [1], [0], [0], [0, 0, 1, 0], [], []>} : vector<8x8xbf16>, vector<8x8xbf16>, vector<8x8xf32> -> vector<8x8xf32>
    "tpu.trace_stop"() : () -> ()
    %cst_59 = arith.constant 0.353553385 : f32
    %85 = vector.broadcast %cst_59 : f32 to vector<8x8xf32>
    %86 = arith.mulf %84, %85 : vector<8x8xf32>
    %cst_60 = arith.constant -1.000000e+09 : f32
    %87 = vector.broadcast %cst_60 : f32 to vector<8x8xf32>
    %88 = arith.select %2, %86, %87 : vector<8x8xi1>, vector<8x8xf32>
    %cst_61 = arith.constant dense<0xFF800000> : vector<8xf32>
    %89 = vector.multi_reduction <maximumf>, %88, %cst_61 [1] : vector<8x8xf32> to vector<8xf32>
    %90 = vector.shape_cast %89 : vector<8xf32> to vector<8x1xf32>
    %91 = vector.broadcast %90 : vector<8x1xf32> to vector<8x8xf32>
    %92 = arith.subf %88, %91 : vector<8x8xf32>
    %93 = math.exp %92 : vector<8x8xf32>
    %cst_62 = arith.constant dense<0.000000e+00> : vector<8xf32>
    %94 = vector.multi_reduction <add>, %93, %cst_62 [1] : vector<8x8xf32> to vector<8xf32>
    %95 = vector.shape_cast %94 : vector<8xf32> to vector<8x1xf32>
    %96 = tpu.reciprocal %95 {approx = true} : vector<8x1xf32> -> vector<8x1xf32>
    %97 = vector.broadcast %96 : vector<8x1xf32> to vector<8x8xf32>
    %98 = arith.mulf %93, %97 : vector<8x8xf32>
    %99 = arith.truncf %98 : vector<8x8xf32> to vector<8x8xbf16>
    %cst_63 = arith.constant dense<0.000000e+00> : vector<8x8xf32>
    %100 = tpu.matmul %99, %83, %cst_63 {dimension_numbers = #tpu.dot_dimension_numbers<[1], [0], [0], [1], [0, 0, 1, 1], [], []>} : vector<8x8xbf16>, vector<8x8xbf16>, vector<8x8xf32> -> vector<8x8xf32>
    %101 = arith.truncf %100 : vector<8x8xf32> to vector<8x8xbf16>
    %c0_64 = arith.constant 0 : index
    %c24 = arith.constant 24 : index
    %102 = vector.load %arg6[%c0_64, %c24] : memref<8x32xbf16, #tpu.memory_space<vmem>>, vector<8x8xbf16>
    tpu.vector_store %arg6[%c0_64, %c24], %101 {strides = array<i32>} : memref<8x32xbf16, #tpu.memory_space<vmem>>, vector<8x8xbf16>,
    %c0_65 = arith.constant 0 : index
    %c0_66 = arith.constant 0 : index
    %103 = vector.load %arg6[%c0_65, %c0_66] : memref<8x32xbf16, #tpu.memory_space<vmem>>, vector<8x32xbf16>
    %c0_67 = arith.constant 0 : index
    %c0_68 = arith.constant 0 : index
    %104 = vector.load %arg3[%c0_67, %c0_68] : memref<32x32xbf16, #tpu.memory_space<vmem>>, vector<32x32xbf16>
    %cst_69 = arith.constant dense<0.000000e+00> : vector<8x32xf32>
    %105 = tpu.matmul %103, %104, %cst_69 {dimension_numbers = #tpu.dot_dimension_numbers<[1], [0], [0], [1], [0, 0, 1, 1], [], []>} : vector<8x32xbf16>, vector<32x32xbf16>, vector<8x32xf32> -> vector<8x32xf32>
    %c0_70 = arith.constant 0 : index
    %c0_71 = arith.constant 0 : index
    %106 = vector.load %arg4[%c0_70, %c0_71] : memref<1x32xf32, #tpu.memory_space<vmem>>, vector<1x32xf32>
    %107 = vector.broadcast %106 : vector<1x32xf32> to vector<8x32xf32>
    %108 = arith.addf %105, %107 : vector<8x32xf32>
    %c0_72 = arith.constant 0 : index
    %c0_73 = arith.constant 0 : index
    %c0_74 = arith.constant 0 : index
    %109 = vector.load %arg2[%c0_72, %c0_73, %c0_74] : memref<1x8x32xbf16, #tpu.memory_space<vmem>>, vector<1x8x32xbf16>
    %110 = vector.shape_cast %109 : vector<1x8x32xbf16> to vector<8x32xbf16>
    %111 = arith.extf %110 : vector<8x32xbf16> to vector<8x32xf32>
    %112 = arith.addf %111, %108 : vector<8x32xf32>
    %113 = arith.truncf %112 : vector<8x32xf32> to vector<8x32xbf16>
    %c0_75 = arith.constant 0 : index
    %c0_76 = arith.constant 0 : index
    %c0_77 = arith.constant 0 : index
    %114 = vector.load %arg5[%c0_75, %c0_76, %c0_77] : memref<1x8x32xbf16, #tpu.memory_space<vmem>>, vector<1x8x32xbf16>
    %115 = vector.shape_cast %114 : vector<1x8x32xbf16> to vector<8x32xbf16>
    %116 = vector.shape_cast %113 : vector<8x32xbf16> to vector<1x8x32xbf16>
    tpu.vector_store %arg5[%c0_75, %c0_76, %c0_77], %116 {strides = array<i32>} : memref<1x8x32xbf16, #tpu.memory_space<vmem>>, vector<1x8x32xbf16>,
    return
  }
  func.func @transform_0(%arg0: i32) -> (i32, i32, i32, i32) {
    %c0_i32 = arith.constant 0 : i32
    %c0_i32_0 = arith.constant 0 : i32
    %c0_i32_1 = arith.constant 0 : i32
    %c0_i32_2 = arith.constant 0 : i32
    return %arg0, %c0_i32, %c0_i32_0, %c0_i32_1 : i32, i32, i32, i32
  }
  func.func @transform_1(%arg0: i32) -> (i32, i32, i32) {
    %c0_i32 = arith.constant 0 : i32
    %c0_i32_0 = arith.constant 0 : i32
    %c0_i32_1 = arith.constant 0 : i32
    return %arg0, %c0_i32, %c0_i32_0 : i32, i32, i32
  }
  func.func @transform_2(%arg0: i32) -> (i32, i32) {
    %c0_i32 = arith.constant 0 : i32
    %c0_i32_0 = arith.constant 0 : i32
    %c0_i32_1 = arith.constant 0 : i32
    return %c0_i32, %c0_i32_0 : i32, i32
  }
  func.func @transform_3(%arg0: i32) -> (i32, i32) {
    %c0_i32 = arith.constant 0 : i32
    %c0_i32_0 = arith.constant 0 : i32
    %c0_i32_1 = arith.constant 0 : i32
    return %c0_i32, %c0_i32_0 : i32, i32
  }
  func.func @transform_4(%arg0: i32) -> (i32, i32, i32) {
    %c0_i32 = arith.constant 0 : i32
    %c0_i32_0 = arith.constant 0 : i32
    %c0_i32_1 = arith.constant 0 : i32
    return %arg0, %c0_i32, %c0_i32_0 : i32, i32, i32
  }
}

module attributes {stable_mosaic.version = 11 : i64} {
  func.func @_ln_matmul_kernel(%arg0: i32, %arg1: memref<16x32xbf16, #tpu.memory_space<vmem>>, %arg2: memref<1x32xf32, #tpu.memory_space<vmem>>, %arg3: memref<1x32xf32, #tpu.memory_space<vmem>>, %arg4: memref<32x96xbf16, #tpu.memory_space<vmem>>, %arg5: memref<1x96xf32, #tpu.memory_space<vmem>>, %arg6: memref<16x96xbf16, #tpu.memory_space<vmem>>) attributes {dimension_semantics = [#tpu.dimension_semantics<parallel>], iteration_bounds = array<i64: 1>, scalar_prefetch = 0 : i64, scratch_operands = 0 : i64, tpu.core_type = #tpu.core_type<tc>, window_params = [{transform_indices = @transform_0, window_bounds = array<i64: 16, 32>}, {pipeline_mode = #tpu.pipeline_mode<synchronous>, transform_indices = @transform_1, window_bounds = array<i64: 1, 32>}, {pipeline_mode = #tpu.pipeline_mode<synchronous>, transform_indices = @transform_2, window_bounds = array<i64: 1, 32>}, {pipeline_mode = #tpu.pipeline_mode<synchronous>, transform_indices = @transform_3, window_bounds = array<i64: 32, 96>}, {pipeline_mode = #tpu.pipeline_mode<synchronous>, transform_indices = @transform_4, window_bounds = array<i64: 1, 96>}, {transform_indices = @transform_5, window_bounds = array<i64: 16, 96>}]} {
    %c0 = arith.constant 0 : index
    %c0_0 = arith.constant 0 : index
    %0 = vector.load %arg1[%c0, %c0_0] : memref<16x32xbf16, #tpu.memory_space<vmem>>, vector<16x32xbf16>
    %1 = arith.extf %0 : vector<16x32xbf16> to vector<16x32xf32>
    %c0_1 = arith.constant 0 : index
    %c0_2 = arith.constant 0 : index
    %2 = vector.load %arg2[%c0_1, %c0_2] : memref<1x32xf32, #tpu.memory_space<vmem>>, vector<1x32xf32>
    %c0_3 = arith.constant 0 : index
    %c0_4 = arith.constant 0 : index
    %3 = vector.load %arg3[%c0_3, %c0_4] : memref<1x32xf32, #tpu.memory_space<vmem>>, vector<1x32xf32>
    %cst = arith.constant dense<0.000000e+00> : vector<16xf32>
    %4 = vector.multi_reduction <add>, %1, %cst [1] : vector<16x32xf32> to vector<16xf32>
    %5 = vector.shape_cast %4 : vector<16xf32> to vector<16x1xf32>
    %cst_5 = arith.constant 3.200000e+01 : f32
    %6 = vector.broadcast %cst_5 : f32 to vector<16x1xf32>
    %7 = arith.divf %5, %6 : vector<16x1xf32>
    %8 = vector.broadcast %7 : vector<16x1xf32> to vector<16x32xf32>
    %9 = arith.subf %1, %8 : vector<16x32xf32>
    %10 = arith.mulf %9, %9 : vector<16x32xf32>
    %cst_6 = arith.constant dense<0.000000e+00> : vector<16xf32>
    %11 = vector.multi_reduction <add>, %10, %cst_6 [1] : vector<16x32xf32> to vector<16xf32>
    %12 = vector.shape_cast %11 : vector<16xf32> to vector<16x1xf32>
    %cst_7 = arith.constant 0.0322580636 : f32
    %13 = vector.broadcast %cst_7 : f32 to vector<16x1xf32>
    %14 = arith.mulf %12, %13 : vector<16x1xf32>
    %15 = math.sqrt %14 : vector<16x1xf32>
    %16 = vector.broadcast %2 : vector<1x32xf32> to vector<16x32xf32>
    %17 = arith.mulf %16, %9 : vector<16x32xf32>
    %cst_8 = arith.constant 9.99999997E-7 : f32
    %18 = vector.broadcast %cst_8 : f32 to vector<16x1xf32>
    %19 = arith.addf %15, %18 : vector<16x1xf32>
    %20 = vector.broadcast %19 : vector<16x1xf32> to vector<16x32xf32>
    %21 = arith.divf %17, %20 : vector<16x32xf32>
    %22 = vector.broadcast %3 : vector<1x32xf32> to vector<16x32xf32>
    %23 = arith.addf %21, %22 : vector<16x32xf32>
    %24 = arith.truncf %23 : vector<16x32xf32> to vector<16x32xbf16>
    %c0_9 = arith.constant 0 : index
    %c0_10 = arith.constant 0 : index
    %25 = vector.load %arg4[%c0_9, %c0_10] : memref<32x96xbf16, #tpu.memory_space<vmem>>, vector<32x96xbf16>
    %cst_11 = arith.constant dense<0.000000e+00> : vector<16x96xf32>
    %26 = tpu.matmul %24, %25, %cst_11 {dimension_numbers = #tpu.dot_dimension_numbers<[1], [0], [0], [1], [0, 0, 1, 1], [], []>} : vector<16x32xbf16>, vector<32x96xbf16>, vector<16x96xf32> -> vector<16x96xf32>
    %c0_12 = arith.constant 0 : index
    %c0_13 = arith.constant 0 : index
    %27 = vector.load %arg5[%c0_12, %c0_13] : memref<1x96xf32, #tpu.memory_space<vmem>>, vector<1x96xf32>
    %28 = vector.broadcast %27 : vector<1x96xf32> to vector<16x96xf32>
    %29 = arith.addf %26, %28 : vector<16x96xf32>
    %30 = arith.truncf %29 : vector<16x96xf32> to vector<16x96xbf16>
    %c0_14 = arith.constant 0 : index
    %c0_15 = arith.constant 0 : index
    %31 = vector.load %arg6[%c0_14, %c0_15] : memref<16x96xbf16, #tpu.memory_space<vmem>>, vector<16x96xbf16>
    tpu.vector_store %arg6[%c0_14, %c0_15], %30 {strides = array<i32>} : memref<16x96xbf16, #tpu.memory_space<vmem>>, vector<16x96xbf16>,
    return
  }
  func.func @transform_0(%arg0: i32) -> (i32, i32) {
    %c0_i32 = arith.constant 0 : i32
    %c0_i32_0 = arith.constant 0 : i32
    return %arg0, %c0_i32 : i32, i32
  }
  func.func @transform_1(%arg0: i32) -> (i32, i32) {
    %c0_i32 = arith.constant 0 : i32
    %c0_i32_0 = arith.constant 0 : i32
    %c0_i32_1 = arith.constant 0 : i32
    return %c0_i32, %c0_i32_0 : i32, i32
  }
  func.func @transform_2(%arg0: i32) -> (i32, i32) {
    %c0_i32 = arith.constant 0 : i32
    %c0_i32_0 = arith.constant 0 : i32
    %c0_i32_1 = arith.constant 0 : i32
    return %c0_i32, %c0_i32_0 : i32, i32
  }
  func.func @transform_3(%arg0: i32) -> (i32, i32) {
    %c0_i32 = arith.constant 0 : i32
    %c0_i32_0 = arith.constant 0 : i32
    %c0_i32_1 = arith.constant 0 : i32
    return %c0_i32, %c0_i32_0 : i32, i32
  }
  func.func @transform_4(%arg0: i32) -> (i32, i32) {
    %c0_i32 = arith.constant 0 : i32
    %c0_i32_0 = arith.constant 0 : i32
    %c0_i32_1 = arith.constant 0 : i32
    return %c0_i32, %c0_i32_0 : i32, i32
  }
  func.func @transform_5(%arg0: i32) -> (i32, i32) {
    %c0_i32 = arith.constant 0 : i32
    %c0_i32_0 = arith.constant 0 : i32
    return %arg0, %c0_i32 : i32, i32
  }
}

module attributes {stable_mosaic.version = 11 : i64} {
  func.func @_ln_ffn_residual_kernel(%arg0: i32, %arg1: memref<16x32xbf16, #tpu.memory_space<vmem>>, %arg2: memref<1x32xf32, #tpu.memory_space<vmem>>, %arg3: memref<1x32xf32, #tpu.memory_space<vmem>>, %arg4: memref<32x1024xbf16, #tpu.memory_space<vmem>>, %arg5: memref<1x1024xf32, #tpu.memory_space<vmem>>, %arg6: memref<1024x32xbf16, #tpu.memory_space<vmem>>, %arg7: memref<1x32xf32, #tpu.memory_space<vmem>>, %arg8: memref<16x32xbf16, #tpu.memory_space<vmem>>) attributes {dimension_semantics = [#tpu.dimension_semantics<parallel>], iteration_bounds = array<i64: 1>, scalar_prefetch = 0 : i64, scratch_operands = 0 : i64, tpu.core_type = #tpu.core_type<tc>, window_params = [{transform_indices = @transform_0, window_bounds = array<i64: 16, 32>}, {pipeline_mode = #tpu.pipeline_mode<synchronous>, transform_indices = @transform_1, window_bounds = array<i64: 1, 32>}, {pipeline_mode = #tpu.pipeline_mode<synchronous>, transform_indices = @transform_2, window_bounds = array<i64: 1, 32>}, {pipeline_mode = #tpu.pipeline_mode<synchronous>, transform_indices = @transform_3, window_bounds = array<i64: 32, 1024>}, {pipeline_mode = #tpu.pipeline_mode<synchronous>, transform_indices = @transform_4, window_bounds = array<i64: 1, 1024>}, {pipeline_mode = #tpu.pipeline_mode<synchronous>, transform_indices = @transform_5, window_bounds = array<i64: 1024, 32>}, {pipeline_mode = #tpu.pipeline_mode<synchronous>, transform_indices = @transform_6, window_bounds = array<i64: 1, 32>}, {transform_indices = @transform_7, window_bounds = array<i64: 16, 32>}]} {
    %c0 = arith.constant 0 : index
    %c0_0 = arith.constant 0 : index
    %0 = vector.load %arg1[%c0, %c0_0] : memref<16x32xbf16, #tpu.memory_space<vmem>>, vector<16x32xbf16>
    %1 = arith.extf %0 : vector<16x32xbf16> to vector<16x32xf32>
    %c0_1 = arith.constant 0 : index
    %c0_2 = arith.constant 0 : index
    %2 = vector.load %arg2[%c0_1, %c0_2] : memref<1x32xf32, #tpu.memory_space<vmem>>, vector<1x32xf32>
    %c0_3 = arith.constant 0 : index
    %c0_4 = arith.constant 0 : index
    %3 = vector.load %arg3[%c0_3, %c0_4] : memref<1x32xf32, #tpu.memory_space<vmem>>, vector<1x32xf32>
    %cst = arith.constant dense<0.000000e+00> : vector<16xf32>
    %4 = vector.multi_reduction <add>, %1, %cst [1] : vector<16x32xf32> to vector<16xf32>
    %5 = vector.shape_cast %4 : vector<16xf32> to vector<16x1xf32>
    %cst_5 = arith.constant 3.200000e+01 : f32
    %6 = vector.broadcast %cst_5 : f32 to vector<16x1xf32>
    %7 = arith.divf %5, %6 : vector<16x1xf32>
    %8 = vector.broadcast %7 : vector<16x1xf32> to vector<16x32xf32>
    %9 = arith.subf %1, %8 : vector<16x32xf32>
    %10 = arith.mulf %9, %9 : vector<16x32xf32>
    %cst_6 = arith.constant dense<0.000000e+00> : vector<16xf32>
    %11 = vector.multi_reduction <add>, %10, %cst_6 [1] : vector<16x32xf32> to vector<16xf32>
    %12 = vector.shape_cast %11 : vector<16xf32> to vector<16x1xf32>
    %cst_7 = arith.constant 0.0322580636 : f32
    %13 = vector.broadcast %cst_7 : f32 to vector<16x1xf32>
    %14 = arith.mulf %12, %13 : vector<16x1xf32>
    %15 = math.sqrt %14 : vector<16x1xf32>
    %16 = vector.broadcast %2 : vector<1x32xf32> to vector<16x32xf32>
    %17 = arith.mulf %16, %9 : vector<16x32xf32>
    %cst_8 = arith.constant 9.99999997E-7 : f32
    %18 = vector.broadcast %cst_8 : f32 to vector<16x1xf32>
    %19 = arith.addf %15, %18 : vector<16x1xf32>
    %20 = vector.broadcast %19 : vector<16x1xf32> to vector<16x32xf32>
    %21 = arith.divf %17, %20 : vector<16x32xf32>
    %22 = vector.broadcast %3 : vector<1x32xf32> to vector<16x32xf32>
    %23 = arith.addf %21, %22 : vector<16x32xf32>
    %24 = arith.truncf %23 : vector<16x32xf32> to vector<16x32xbf16>
    %c0_9 = arith.constant 0 : index
    %c0_10 = arith.constant 0 : index
    %25 = vector.load %arg4[%c0_9, %c0_10] : memref<32x1024xbf16, #tpu.memory_space<vmem>>, vector<32x1024xbf16>
    %cst_11 = arith.constant dense<0.000000e+00> : vector<16x1024xf32>
    %26 = tpu.matmul %24, %25, %cst_11 {dimension_numbers = #tpu.dot_dimension_numbers<[1], [0], [0], [1], [0, 0, 1, 1], [], []>} : vector<16x32xbf16>, vector<32x1024xbf16>, vector<16x1024xf32> -> vector<16x1024xf32>
    %c0_12 = arith.constant 0 : index
    %c0_13 = arith.constant 0 : index
    %27 = vector.load %arg5[%c0_12, %c0_13] : memref<1x1024xf32, #tpu.memory_space<vmem>>, vector<1x1024xf32>
    %28 = vector.broadcast %27 : vector<1x1024xf32> to vector<16x1024xf32>
    %29 = arith.addf %26, %28 : vector<16x1024xf32>
    %cst_14 = arith.constant 5.000000e-01 : f32
    %30 = vector.broadcast %cst_14 : f32 to vector<16x1024xf32>
    %31 = arith.mulf %30, %29 : vector<16x1024xf32>
    %cst_15 = arith.constant 4.471500e-02 : f32
    %32 = vector.broadcast %cst_15 : f32 to vector<16x1024xf32>
    %33 = arith.mulf %32, %29 : vector<16x1024xf32>
    %34 = arith.mulf %33, %29 : vector<16x1024xf32>
    %35 = arith.mulf %34, %29 : vector<16x1024xf32>
    %36 = arith.addf %29, %35 : vector<16x1024xf32>
    %cst_16 = arith.constant 0.797884583 : f32
    %37 = vector.broadcast %cst_16 : f32 to vector<16x1024xf32>
    %38 = arith.mulf %37, %36 : vector<16x1024xf32>
    %39 = math.tanh %38 : vector<16x1024xf32>
    %cst_17 = arith.constant 1.000000e+00 : f32
    %40 = vector.broadcast %cst_17 : f32 to vector<16x1024xf32>
    %41 = arith.addf %40, %39 : vector<16x1024xf32>
    %42 = arith.mulf %31, %41 : vector<16x1024xf32>
    %43 = arith.truncf %42 : vector<16x1024xf32> to vector<16x1024xbf16>
    %c0_18 = arith.constant 0 : index
    %c0_19 = arith.constant 0 : index
    %44 = vector.load %arg6[%c0_18, %c0_19] : memref<1024x32xbf16, #tpu.memory_space<vmem>>, vector<1024x32xbf16>
    %cst_20 = arith.constant dense<0.000000e+00> : vector<16x32xf32>
    %45 = tpu.matmul %43, %44, %cst_20 {dimension_numbers = #tpu.dot_dimension_numbers<[1], [0], [0], [1], [0, 0, 1, 1], [], []>} : vector<16x1024xbf16>, vector<1024x32xbf16>, vector<16x32xf32> -> vector<16x32xf32>
    %c0_21 = arith.constant 0 : index
    %c0_22 = arith.constant 0 : index
    %46 = vector.load %arg7[%c0_21, %c0_22] : memref<1x32xf32, #tpu.memory_space<vmem>>, vector<1x32xf32>
    %47 = vector.broadcast %46 : vector<1x32xf32> to vector<16x32xf32>
    %48 = arith.addf %45, %47 : vector<16x32xf32>
    %49 = arith.addf %1, %48 : vector<16x32xf32>
    %50 = arith.truncf %49 : vector<16x32xf32> to vector<16x32xbf16>
    %c0_23 = arith.constant 0 : index
    %c0_24 = arith.constant 0 : index
    %51 = vector.load %arg8[%c0_23, %c0_24] : memref<16x32xbf16, #tpu.memory_space<vmem>>, vector<16x32xbf16>
    tpu.vector_store %arg8[%c0_23, %c0_24], %50 {strides = array<i32>} : memref<16x32xbf16, #tpu.memory_space<vmem>>, vector<16x32xbf16>,
    return
  }
  func.func @transform_0(%arg0: i32) -> (i32, i32) {
    %c0_i32 = arith.constant 0 : i32
    %c0_i32_0 = arith.constant 0 : i32
    return %arg0, %c0_i32 : i32, i32
  }
  func.func @transform_1(%arg0: i32) -> (i32, i32) {
    %c0_i32 = arith.constant 0 : i32
    %c0_i32_0 = arith.constant 0 : i32
    %c0_i32_1 = arith.constant 0 : i32
    return %c0_i32, %c0_i32_0 : i32, i32
  }
  func.func @transform_2(%arg0: i32) -> (i32, i32) {
    %c0_i32 = arith.constant 0 : i32
    %c0_i32_0 = arith.constant 0 : i32
    %c0_i32_1 = arith.constant 0 : i32
    return %c0_i32, %c0_i32_0 : i32, i32
  }
  func.func @transform_3(%arg0: i32) -> (i32, i32) {
    %c0_i32 = arith.constant 0 : i32
    %c0_i32_0 = arith.constant 0 : i32
    %c0_i32_1 = arith.constant 0 : i32
    return %c0_i32, %c0_i32_0 : i32, i32
  }
  func.func @transform_4(%arg0: i32) -> (i32, i32) {
    %c0_i32 = arith.constant 0 : i32
    %c0_i32_0 = arith.constant 0 : i32
    %c0_i32_1 = arith.constant 0 : i32
    return %c0_i32, %c0_i32_0 : i32, i32
  }
  func.func @transform_5(%arg0: i32) -> (i32, i32) {
    %c0_i32 = arith.constant 0 : i32
    %c0_i32_0 = arith.constant 0 : i32
    %c0_i32_1 = arith.constant 0 : i32
    return %c0_i32, %c0_i32_0 : i32, i32
  }
  func.func @transform_6(%arg0: i32) -> (i32, i32) {
    %c0_i32 = arith.constant 0 : i32
    %c0_i32_0 = arith.constant 0 : i32
    %c0_i32_1 = arith.constant 0 : i32
    return %c0_i32, %c0_i32_0 : i32, i32
  }
  func.func @transform_7(%arg0: i32) -> (i32, i32) {
    %c0_i32 = arith.constant 0 : i32
    %c0_i32_0 = arith.constant 0 : i32
    return %arg0, %c0_i32 : i32, i32
  }
}

module attributes {stable_mosaic.version = 11 : i64} {
  func.func @_ln_matmul_kernel(%arg0: i32, %arg1: memref<16x32xbf16, #tpu.memory_space<vmem>>, %arg2: memref<1x32xf32, #tpu.memory_space<vmem>>, %arg3: memref<1x32xf32, #tpu.memory_space<vmem>>, %arg4: memref<32x32xbf16, #tpu.memory_space<vmem>>, %arg5: memref<1x32xf32, #tpu.memory_space<vmem>>, %arg6: memref<16x32xbf16, #tpu.memory_space<vmem>>) attributes {dimension_semantics = [#tpu.dimension_semantics<parallel>], iteration_bounds = array<i64: 1>, scalar_prefetch = 0 : i64, scratch_operands = 0 : i64, tpu.core_type = #tpu.core_type<tc>, window_params = [{transform_indices = @transform_0, window_bounds = array<i64: 16, 32>}, {pipeline_mode = #tpu.pipeline_mode<synchronous>, transform_indices = @transform_1, window_bounds = array<i64: 1, 32>}, {pipeline_mode = #tpu.pipeline_mode<synchronous>, transform_indices = @transform_2, window_bounds = array<i64: 1, 32>}, {pipeline_mode = #tpu.pipeline_mode<synchronous>, transform_indices = @transform_3, window_bounds = array<i64: 32, 32>}, {pipeline_mode = #tpu.pipeline_mode<synchronous>, transform_indices = @transform_4, window_bounds = array<i64: 1, 32>}, {transform_indices = @transform_5, window_bounds = array<i64: 16, 32>}]} {
    %c0 = arith.constant 0 : index
    %c0_0 = arith.constant 0 : index
    %0 = vector.load %arg1[%c0, %c0_0] : memref<16x32xbf16, #tpu.memory_space<vmem>>, vector<16x32xbf16>
    %1 = arith.extf %0 : vector<16x32xbf16> to vector<16x32xf32>
    %c0_1 = arith.constant 0 : index
    %c0_2 = arith.constant 0 : index
    %2 = vector.load %arg2[%c0_1, %c0_2] : memref<1x32xf32, #tpu.memory_space<vmem>>, vector<1x32xf32>
    %c0_3 = arith.constant 0 : index
    %c0_4 = arith.constant 0 : index
    %3 = vector.load %arg3[%c0_3, %c0_4] : memref<1x32xf32, #tpu.memory_space<vmem>>, vector<1x32xf32>
    %cst = arith.constant dense<0.000000e+00> : vector<16xf32>
    %4 = vector.multi_reduction <add>, %1, %cst [1] : vector<16x32xf32> to vector<16xf32>
    %5 = vector.shape_cast %4 : vector<16xf32> to vector<16x1xf32>
    %cst_5 = arith.constant 3.200000e+01 : f32
    %6 = vector.broadcast %cst_5 : f32 to vector<16x1xf32>
    %7 = arith.divf %5, %6 : vector<16x1xf32>
    %8 = vector.broadcast %7 : vector<16x1xf32> to vector<16x32xf32>
    %9 = arith.subf %1, %8 : vector<16x32xf32>
    %10 = arith.mulf %9, %9 : vector<16x32xf32>
    %cst_6 = arith.constant dense<0.000000e+00> : vector<16xf32>
    %11 = vector.multi_reduction <add>, %10, %cst_6 [1] : vector<16x32xf32> to vector<16xf32>
    %12 = vector.shape_cast %11 : vector<16xf32> to vector<16x1xf32>
    %cst_7 = arith.constant 0.0322580636 : f32
    %13 = vector.broadcast %cst_7 : f32 to vector<16x1xf32>
    %14 = arith.mulf %12, %13 : vector<16x1xf32>
    %15 = math.sqrt %14 : vector<16x1xf32>
    %16 = vector.broadcast %2 : vector<1x32xf32> to vector<16x32xf32>
    %17 = arith.mulf %16, %9 : vector<16x32xf32>
    %cst_8 = arith.constant 9.99999997E-7 : f32
    %18 = vector.broadcast %cst_8 : f32 to vector<16x1xf32>
    %19 = arith.addf %15, %18 : vector<16x1xf32>
    %20 = vector.broadcast %19 : vector<16x1xf32> to vector<16x32xf32>
    %21 = arith.divf %17, %20 : vector<16x32xf32>
    %22 = vector.broadcast %3 : vector<1x32xf32> to vector<16x32xf32>
    %23 = arith.addf %21, %22 : vector<16x32xf32>
    %24 = arith.truncf %23 : vector<16x32xf32> to vector<16x32xbf16>
    %c0_9 = arith.constant 0 : index
    %c0_10 = arith.constant 0 : index
    %25 = vector.load %arg4[%c0_9, %c0_10] : memref<32x32xbf16, #tpu.memory_space<vmem>>, vector<32x32xbf16>
    %cst_11 = arith.constant dense<0.000000e+00> : vector<16x32xf32>
    %26 = tpu.matmul %24, %25, %cst_11 {dimension_numbers = #tpu.dot_dimension_numbers<[1], [0], [0], [1], [0, 0, 1, 1], [], []>} : vector<16x32xbf16>, vector<32x32xbf16>, vector<16x32xf32> -> vector<16x32xf32>
    %c0_12 = arith.constant 0 : index
    %c0_13 = arith.constant 0 : index
    %27 = vector.load %arg5[%c0_12, %c0_13] : memref<1x32xf32, #tpu.memory_space<vmem>>, vector<1x32xf32>
    %28 = vector.broadcast %27 : vector<1x32xf32> to vector<16x32xf32>
    %29 = arith.addf %26, %28 : vector<16x32xf32>
    %30 = arith.addf %1, %29 : vector<16x32xf32>
    %31 = arith.truncf %30 : vector<16x32xf32> to vector<16x32xbf16>
    %c0_14 = arith.constant 0 : index
    %c0_15 = arith.constant 0 : index
    %32 = vector.load %arg6[%c0_14, %c0_15] : memref<16x32xbf16, #tpu.memory_space<vmem>>, vector<16x32xbf16>
    tpu.vector_store %arg6[%c0_14, %c0_15], %31 {strides = array<i32>} : memref<16x32xbf16, #tpu.memory_space<vmem>>, vector<16x32xbf16>,
    return
  }
  func.func @transform_0(%arg0: i32) -> (i32, i32) {
    %c0_i32 = arith.constant 0 : i32
    %c0_i32_0 = arith.constant 0 : i32
    return %arg0, %c0_i32 : i32, i32
  }
  func.func @transform_1(%arg0: i32) -> (i32, i32) {
    %c0_i32 = arith.constant 0 : i32
    %c0_i32_0 = arith.constant 0 : i32
    %c0_i32_1 = arith.constant 0 : i32
    return %c0_i32, %c0_i32_0 : i32, i32
  }
  func.func @transform_2(%arg0: i32) -> (i32, i32) {
    %c0_i32 = arith.constant 0 : i32
    %c0_i32_0 = arith.constant 0 : i32
    %c0_i32_1 = arith.constant 0 : i32
    return %c0_i32, %c0_i32_0 : i32, i32
  }
  func.func @transform_3(%arg0: i32) -> (i32, i32) {
    %c0_i32 = arith.constant 0 : i32
    %c0_i32_0 = arith.constant 0 : i32
    %c0_i32_1 = arith.constant 0 : i32
    return %c0_i32, %c0_i32_0 : i32, i32
  }
  func.func @transform_4(%arg0: i32) -> (i32, i32) {
    %c0_i32 = arith.constant 0 : i32
    %c0_i32_0 = arith.constant 0 : i32
    %c0_i32_1 = arith.constant 0 : i32
    return %c0_i32, %c0_i32_0 : i32, i32
  }
  func.func @transform_5(%arg0: i32) -> (i32, i32) {
    %c0_i32 = arith.constant 0 : i32
    %c0_i32_0 = arith.constant 0 : i32
    return %arg0, %c0_i32 : i32, i32
  }
}

module attributes {stable_mosaic.version = 11 : i64} {
  func.func @_ln_matmul_kernel(%arg0: i32, %arg1: i32, %arg2: memref<16x32xbf16, #tpu.memory_space<vmem>>, %arg3: memref<1x32xf32, #tpu.memory_space<vmem>>, %arg4: memref<1x32xf32, #tpu.memory_space<vmem>>, %arg5: memref<32x128xbf16, #tpu.memory_space<vmem>>, %arg6: memref<1x128xf32, #tpu.memory_space<vmem>>, %arg7: memref<16x128xf32, #tpu.memory_space<vmem>>) attributes {dimension_semantics = [#tpu.dimension_semantics<parallel>, #tpu.dimension_semantics<parallel>], iteration_bounds = array<i64: 1, 1>, scalar_prefetch = 0 : i64, scratch_operands = 0 : i64, tpu.core_type = #tpu.core_type<tc>, window_params = [{transform_indices = @transform_0, window_bounds = array<i64: 16, 32>}, {pipeline_mode = #tpu.pipeline_mode<synchronous>, transform_indices = @transform_1, window_bounds = array<i64: 1, 32>}, {pipeline_mode = #tpu.pipeline_mode<synchronous>, transform_indices = @transform_2, window_bounds = array<i64: 1, 32>}, {transform_indices = @transform_3, window_bounds = array<i64: 32, 128>}, {transform_indices = @transform_4, window_bounds = array<i64: 1, 128>}, {transform_indices = @transform_5, window_bounds = array<i64: 16, 128>}]} {
    %c0 = arith.constant 0 : index
    %c0_0 = arith.constant 0 : index
    %0 = vector.load %arg2[%c0, %c0_0] : memref<16x32xbf16, #tpu.memory_space<vmem>>, vector<16x32xbf16>
    %1 = arith.extf %0 : vector<16x32xbf16> to vector<16x32xf32>
    %c0_1 = arith.constant 0 : index
    %c0_2 = arith.constant 0 : index
    %2 = vector.load %arg3[%c0_1, %c0_2] : memref<1x32xf32, #tpu.memory_space<vmem>>, vector<1x32xf32>
    %c0_3 = arith.constant 0 : index
    %c0_4 = arith.constant 0 : index
    %3 = vector.load %arg4[%c0_3, %c0_4] : memref<1x32xf32, #tpu.memory_space<vmem>>, vector<1x32xf32>
    %cst = arith.constant dense<0.000000e+00> : vector<16xf32>
    %4 = vector.multi_reduction <add>, %1, %cst [1] : vector<16x32xf32> to vector<16xf32>
    %5 = vector.shape_cast %4 : vector<16xf32> to vector<16x1xf32>
    %cst_5 = arith.constant 3.200000e+01 : f32
    %6 = vector.broadcast %cst_5 : f32 to vector<16x1xf32>
    %7 = arith.divf %5, %6 : vector<16x1xf32>
    %8 = vector.broadcast %7 : vector<16x1xf32> to vector<16x32xf32>
    %9 = arith.subf %1, %8 : vector<16x32xf32>
    %10 = arith.mulf %9, %9 : vector<16x32xf32>
    %cst_6 = arith.constant dense<0.000000e+00> : vector<16xf32>
    %11 = vector.multi_reduction <add>, %10, %cst_6 [1] : vector<16x32xf32> to vector<16xf32>
    %12 = vector.shape_cast %11 : vector<16xf32> to vector<16x1xf32>
    %cst_7 = arith.constant 0.0322580636 : f32
    %13 = vector.broadcast %cst_7 : f32 to vector<16x1xf32>
    %14 = arith.mulf %12, %13 : vector<16x1xf32>
    %15 = math.sqrt %14 : vector<16x1xf32>
    %16 = vector.broadcast %2 : vector<1x32xf32> to vector<16x32xf32>
    %17 = arith.mulf %16, %9 : vector<16x32xf32>
    %cst_8 = arith.constant 9.99999997E-7 : f32
    %18 = vector.broadcast %cst_8 : f32 to vector<16x1xf32>
    %19 = arith.addf %15, %18 : vector<16x1xf32>
    %20 = vector.broadcast %19 : vector<16x1xf32> to vector<16x32xf32>
    %21 = arith.divf %17, %20 : vector<16x32xf32>
    %22 = vector.broadcast %3 : vector<1x32xf32> to vector<16x32xf32>
    %23 = arith.addf %21, %22 : vector<16x32xf32>
    %24 = arith.truncf %23 : vector<16x32xf32> to vector<16x32xbf16>
    %c0_9 = arith.constant 0 : index
    %c0_10 = arith.constant 0 : index
    %25 = vector.load %arg5[%c0_9, %c0_10] : memref<32x128xbf16, #tpu.memory_space<vmem>>, vector<32x128xbf16>
    %cst_11 = arith.constant dense<0.000000e+00> : vector<16x128xf32>
    %26 = tpu.matmul %24, %25, %cst_11 {dimension_numbers = #tpu.dot_dimension_numbers<[1], [0], [0], [1], [0, 0, 1, 1], [], []>} : vector<16x32xbf16>, vector<32x128xbf16>, vector<16x128xf32> -> vector<16x128xf32>
    %c0_12 = arith.constant 0 : index
    %c0_13 = arith.constant 0 : index
    %27 = vector.load %arg6[%c0_12, %c0_13] : memref<1x128xf32, #tpu.memory_space<vmem>>, vector<1x128xf32>
    %28 = vector.broadcast %27 : vector<1x128xf32> to vector<16x128xf32>
    %29 = arith.addf %26, %28 : vector<16x128xf32>
    %c0_14 = arith.constant 0 : index
    %c0_15 = arith.constant 0 : index
    %30 = vector.load %arg7[%c0_14, %c0_15] : memref<16x128xf32, #tpu.memory_space<vmem>>, vector<16x128xf32>
    tpu.vector_store %arg7[%c0_14, %c0_15], %29 {strides = array<i32>} : memref<16x128xf32, #tpu.memory_space<vmem>>, vector<16x128xf32>,
    return
  }
  func.func @transform_0(%arg0: i32, %arg1: i32) -> (i32, i32) {
    %c0_i32 = arith.constant 0 : i32
    %c0_i32_0 = arith.constant 0 : i32
    return %arg0, %c0_i32 : i32, i32
  }
  func.func @transform_1(%arg0: i32, %arg1: i32) -> (i32, i32) {
    %c0_i32 = arith.constant 0 : i32
    %c0_i32_0 = arith.constant 0 : i32
    %c0_i32_1 = arith.constant 0 : i32
    return %c0_i32, %c0_i32_0 : i32, i32
  }
  func.func @transform_2(%arg0: i32, %arg1: i32) -> (i32, i32) {
    %c0_i32 = arith.constant 0 : i32
    %c0_i32_0 = arith.constant 0 : i32
    %c0_i32_1 = arith.constant 0 : i32
    return %c0_i32, %c0_i32_0 : i32, i32
  }
  func.func @transform_3(%arg0: i32, %arg1: i32) -> (i32, i32) {
    %c0_i32 = arith.constant 0 : i32
    %c0_i32_0 = arith.constant 0 : i32
    return %c0_i32, %arg1 : i32, i32
  }
  func.func @transform_4(%arg0: i32, %arg1: i32) -> (i32, i32) {
    %c0_i32 = arith.constant 0 : i32
    %c0_i32_0 = arith.constant 0 : i32
    return %c0_i32, %arg1 : i32, i32
  }
  func.func @transform_5(%arg0: i32, %arg1: i32) -> (i32, i32) {
    %c0_i32 = arith.constant 0 : i32
    return %arg0, %arg1 : i32, i32
  }
}

</mosaic_0001>

<llo_original>
// kernel: tpu_custom_call.1
$region0: #{tpu_custom_call.1}
  #allocation0 [shape = 'u32[]', space=smem, size = 0x4, offset = 0x4, fixed_abs, tag = 'smem constant byte address 0x4 - core index']
  #allocation1 [shape = 'u32[144,128]{1,0:T(1,128)}', space=vmem, size = 0x12000, scoped, tag = 'internal scratch']
  %s0 = inlined_call_operand.hbm [shape: f32[8,128], index: 0, kind: input, shape index: {}]
  %s1 = inlined_call_operand.hbm [shape: f32[8,128], index: 1, kind: output, shape index: {}]
  %s2 = sld [smem:[#allocation0]]
  $region41: #{tpu_custom_call.1} parent=0
    _
  %s4 = ssub.s32 1, %s2
  %s5 = scalar_select 0, %s4, %s2
  $region1: #{tpu_custom_call.1} parent=0
    #allocation2 [shape = 'u8[4096]{0}', space=vmem, size = 0x1000, scoped, tag = 'input window, operand 0, single buffered']
    #allocation3 [shape = 's32[2]{0}', space=sflag, size = 0x8, scoped, tag = 'scoped memory for tpu_custom_call.1']
    #allocation4 [shape = 's32[2]{0}', space=sflag, size = 0x8, scoped, tag = 'scoped memory for tpu_custom_call.1']
    #allocation5 [shape = 'u8[4096]{0}', space=vmem, size = 0x1000, scoped, tag = 'output window, operand 0, single buffered']
    %6 = vsyncpa [#allocation3], 0
    %7 = vsyncpa [#allocation4], 0
    loop: start=0, step=1, limit=4
    $region2: #{tpu_custom_call.1} parent=1 // loop_pre_header
      _
    $region3: #{tpu_custom_call.1} parent=1 // loop_header
      %s9 = sphi 0, %s13
      %p10 = scmp.ge.s32.totalorder %s9, 4
      %s17 = sphi 0, %s17
      %s19 = sphi 0, %s17
      %s20 = sphi 0, %s19
      %s34 = sphi 0, %s20
      %s38 = sphi 0, %s38
      %s40 = sphi 0, %s38
      %s41 = sphi 0, %s40
      %s55 = sphi 0, %s41
    $region4: #{tpu_custom_call.1} parent=1 // loop_header_branch
      %12 = sbr.rel (%p10) target = $region8
    $region5: #{tpu_custom_call.1} parent=1 // loop_body
      %s14 = ssub.s32 %s9, 1
      %s15 = ssub.s32 %s9, 2
      %s16 = sadd.s32 %s9, 1
      %s18 = sadd.s32 %s17, 1
      %p21 = scmp.eq.s32.totalorder %s9, 1
      %p22 = scmp.ne.s32.totalorder %s17, %s19
      %p23 = scmp.eq.s32.totalorder %s9, 0
      %p24 = por %p22, %p23
      %p25 = scmp.ne.s32.totalorder %s17, %s19
      %p26 = scmp.eq.s32.totalorder %s14, 1
      %p27 = por %p25, %p26
      %p28 = scmp.ne.s32.totalorder %s19, %s20
      %p29 = scmp.eq.s32.totalorder %s14, 0
      %p30 = por %p28, %p29
      %p31 = scmp.ne.s32.totalorder %s19, %s20
      %p32 = scmp.eq.s32.totalorder %s15, 1
      %p33 = por %p31, %p32
      %p35 = scmp.ne.s32.totalorder %s20, %s34
      %p36 = scmp.eq.s32.totalorder %s15, 0
      %p37 = por %p35, %p36
      %s39 = sadd.s32 %s38, 1
      %p42 = scmp.eq.s32.totalorder %s9, 1
      %p43 = scmp.ne.s32.totalorder %s38, %s40
      %p44 = scmp.eq.s32.totalorder %s9, 0
      %p45 = por %p43, %p44
      %p46 = scmp.ne.s32.totalorder %s38, %s40
      %p47 = scmp.eq.s32.totalorder %s14, 1
      %p48 = por %p46, %p47
      %p49 = scmp.ne.s32.totalorder %s40, %s41
      %p50 = scmp.eq.s32.totalorder %s14, 0
      %p51 = por %p49, %p50
      %p52 = scmp.ne.s32.totalorder %s40, %s41
      %p53 = scmp.eq.s32.totalorder %s15, 1
      %p54 = por %p52, %p53
      %p56 = scmp.ne.s32.totalorder %s41, %s55
      %p57 = scmp.eq.s32.totalorder %s15, 0
      %p58 = por %p56, %p57
      %p59 = scmp.le.s32.totalorder 1, %s9
      %p60 = scmp.lt.s32.totalorder %s9, 3
      %p61 = pnand %p59, %p60
      %p62 = pneg %p61
      // Predicated region
      $region9: #{tpu_custom_call.1} parent=5 // pred_check
        _
      $region10: #{tpu_custom_call.1} parent=5 // pred_check_branch
        %64 = sbr.rel (%p61) target = $region12
      $region11: #{tpu_custom_call.1} parent=5 // pred_region
        %s65 = ssub.s32 %s9, 1
        // Predicated region
        $region13: #{tpu_custom_call.1} parent=11 // pred_check
          %p66 = pneg %p30
        $region14: #{tpu_custom_call.1} parent=11 // pred_check_branch
          %68 = sbr.rel (%p66) target = $region16
        $region15: #{tpu_custom_call.1} parent=11 // pred_region
          %s70 = ssub.s32 128, 128
          %71 = vsyncadd [#allocation3], %s70
          %s73 = sshll.u32 [#allocation2], 4
          %s74 = int_to_ptr.vmem [resolvable:$true] %s73
          %76 = dma.hbm_to_vmem [thread:$0]  %s0, 128, %s74, [#allocation3]
        $region16: #{tpu_custom_call.1} parent=11 // pred_fallthru
          _
      $region12: #{tpu_custom_call.1} parent=5 // pred_fallthru
        _
      %p77 = scmp.lt.s32.totalorder %s9, 2
      // Predicated region
      $region17: #{tpu_custom_call.1} parent=5 // pred_check
        %p78 = pneg %p77
      $region18: #{tpu_custom_call.1} parent=5 // pred_check_branch
        %80 = sbr.rel (%p78) target = $region20
      $region19: #{tpu_custom_call.1} parent=5 // pred_region
        _
      $region20: #{tpu_custom_call.1} parent=5 // pred_fallthru
        _
      %p81 = scmp.le.s32.totalorder 1, %s9
      %p82 = scmp.lt.s32.totalorder %s9, 3
      %p83 = pnand %p81, %p82
      %p84 = pneg %p83
      // Predicated region
      $region21: #{tpu_custom_call.1} parent=5 // pred_check
        _
      $region22: #{tpu_custom_call.1} parent=5 // pred_check_branch
        %86 = sbr.rel (%p83) target = $region24
      $region23: #{tpu_custom_call.1} parent=5 // pred_region
        %s87 = ssub.s32 %s9, 1
        // Predicated region
        $region25: #{tpu_custom_call.1} parent=23 // pred_check
          %p88 = pneg %p30
        $region26: #{tpu_custom_call.1} parent=23 // pred_check_branch
          %90 = sbr.rel (%p88) target = $region28
        $region27: #{tpu_custom_call.1} parent=23 // pred_region
          %91 = dma.done [#allocation3], 128
        $region28: #{tpu_custom_call.1} parent=23 // pred_fallthru
          _
        %p92 = pneg %p30
        %p93 = pneg %p27
        %p94 = pneg %p51
        %p95 = pneg %p48
        %v96 = vld [vmem:[#allocation2] sm:$0xff]
        %v97 = vadd.f32 %v96, 1.0
        %98 = vst [vmem:[#allocation5] sm:$0xff] %v97
        // Predicated region
        $region29: #{tpu_custom_call.1} parent=23 // pred_check
          %p99 = pneg %p48
        $region30: #{tpu_custom_call.1} parent=23 // pred_check_branch
          %101 = sbr.rel (%p99) target = $region32
        $region31: #{tpu_custom_call.1} parent=23 // pred_region
          %s103 = ssub.s32 128, 128
          %104 = vsyncadd [#allocation4], %s103
          %s106 = sshll.u32 [#allocation5], 4
          %s107 = int_to_ptr.vmem [resolvable:$true] %s106
          %109 = dma.vmem_to_hbm [thread:$0]  %s107, 128, %s1, [#allocation4]
        $region32: #{tpu_custom_call.1} parent=23 // pred_fallthru
          _
        // Predicated region
        $region33: #{tpu_custom_call.1} parent=23 // pred_check
          %p110 = pneg %p48
        $region34: #{tpu_custom_call.1} parent=23 // pred_check_branch
          %112 = sbr.rel (%p110) target = $region36
        $region35: #{tpu_custom_call.1} parent=23 // pred_region
          %113 = dma.done [#allocation4], 128
        $region36: #{tpu_custom_call.1} parent=23 // pred_fallthru
          _
      $region24: #{tpu_custom_call.1} parent=5 // pred_fallthru
        _
      %p114 = scmp.le.s32.totalorder 2, %s9
      // Predicated region
      $region37: #{tpu_custom_call.1} parent=5 // pred_check
        %p115 = pneg %p114
      $region38: #{tpu_custom_call.1} parent=5 // pred_check_branch
        %117 = sbr.rel (%p115) target = $region40
      $region39: #{tpu_custom_call.1} parent=5 // pred_region
        %s118 = ssub.s32 %s9, 2
      $region40: #{tpu_custom_call.1} parent=5 // pred_fallthru
        _
    $region6: #{tpu_custom_call.1} parent=1 // loop_footer
      %s13 = sadd.s32 1, %s9
    $region7: #{tpu_custom_call.1} parent=1 // loop_footer_branch
      %8 = sbr.rel target = $region3
    $region8: #{tpu_custom_call.1} parent=1 // loop_exit
      _
    %119 = vsyncpa [#allocation3], 1
    %s120 = scalar_lea.sflag [#allocation3], 1
    %121 = vsyncpa %s120, 1
    %122 = vsyncpa [#allocation4], 1
    %s123 = scalar_lea.sflag [#allocation4], 1
    %124 = vsyncpa %s123, 1

// kernel: gpt2_forward.10
$region0: #{gpt2_forward.10}
  #allocation0 [shape = 'u32[]', space=smem, size = 0x4, offset = 0x4, fixed_abs, tag = 'smem constant byte address 0x4 - core index']
  #allocation1 [shape = 'u32[144,128]{1,0:T(1,128)}', space=vmem, size = 0x12000, scoped, tag = 'internal scratch']
  #allocation2 [shape = 'bf16[8,32]{1,0:T(8,128)(2,1)}', space=vmem, size = 0x800, scoped, tag = 'scratch operand']
  %s0 = inlined_call_operand.vmem [shape: bf16[2,12,8,8], index: 0, kind: input, shape index: {}]
  %s1 = inlined_call_operand.vmem [shape: bf16[2,8,32], index: 1, kind: input, shape index: {}]
  %s2 = inlined_call_operand.vmem [shape: bf16[32,32], index: 2, kind: input, shape index: {}]
  %s3 = inlined_call_operand.vmem [shape: f32[1,32], index: 3, kind: input, shape index: {}]
  %s4 = inlined_call_operand.vmem [shape: bf16[2,8,32], index: 4, kind: output, shape index: {}]
  %s5 = sld [smem:[#allocation0]]
  $region49: #{gpt2_forward.10} parent=0
    _
  %s7 = ssub.s32 1, %s5
  %s8 = scalar_select 0, %s7, %s5
  loop: start=0, step=1, limit=4
  $region2: #{gpt2_forward.10} parent=0 // loop_pre_header
    _
  $region3: #{gpt2_forward.10} parent=0 // loop_header
    %s10 = sphi 0, %s14
    %p11 = scmp.ge.s32.totalorder %s10, 4
    %s20 = sphi 0, %s22
    %s23 = sphi 0, %s20
    %s24 = sphi 0, %s23
    %s40 = sphi 0, %s24
    %s46 = sphi 0, %s48
    %s49 = sphi 0, %s46
    %s50 = sphi 0, %s49
    %s66 = sphi 0, %s50
    %s70 = sphi 0, %s70
    %s72 = sphi 0, %s70
    %s73 = sphi 0, %s72
    %s87 = sphi 0, %s73
    %s91 = sphi 0, %s91
    %s93 = sphi 0, %s91
    %s94 = sphi 0, %s93
    %s108 = sphi 0, %s94
    %s114 = sphi 0, %s116
    %s117 = sphi 0, %s114
    %s118 = sphi 0, %s117
    %s134 = sphi 0, %s118
  $region4: #{gpt2_forward.10} parent=0 // loop_header_branch
    %13 = sbr.rel (%p11) target = $region8
  $region5: #{gpt2_forward.10} parent=0 // loop_body
    %s15 = ssub.s32 %s10, 1
    %s16 = ssub.s32 %s10, 2
    %s17 = sadd.s32 %s10, 1
    %s18 = ssub.s32 %s10, %s17
    %p19 = scmp.eq.s32.totalorder %s18, 0
    %s21 = sadd.s32 %s20, 1
    %s22 = scalar_select %p19, %s20, %s21
    %p25 = pneg %p19
    %p26 = scmp.eq.s32.totalorder %s10, 1
    %p27 = por %p25, %p26
    %p28 = scmp.ne.s32.totalorder %s20, %s23
    %p29 = scmp.eq.s32.totalorder %s10, 0
    %p30 = por %p28, %p29
    %p31 = scmp.ne.s32.totalorder %s20, %s23
    %p32 = scmp.eq.s32.totalorder %s15, 1
    %p33 = por %p31, %p32
    %p34 = scmp.ne.s32.totalorder %s23, %s24
    %p35 = scmp.eq.s32.totalorder %s15, 0
    %p36 = por %p34, %p35
    %p37 = scmp.ne.s32.totalorder %s23, %s24
    %p38 = scmp.eq.s32.totalorder %s16, 1
    %p39 = por %p37, %p38
    %p41 = scmp.ne.s32.totalorder %s24, %s40
    %p42 = scmp.eq.s32.totalorder %s16, 0
    %p43 = por %p41, %p42
    %s44 = ssub.s32 %s10, %s17
    %p45 = scmp.eq.s32.totalorder %s44, 0
    %s47 = sadd.s32 %s46, 1
    %s48 = scalar_select %p45, %s46, %s47
    %p51 = pneg %p45
    %p52 = scmp.eq.s32.totalorder %s10, 1
    %p53 = por %p51, %p52
    %p54 = scmp.ne.s32.totalorder %s46, %s49
    %p55 = scmp.eq.s32.totalorder %s10, 0
    %p56 = por %p54, %p55
    %p57 = scmp.ne.s32.totalorder %s46, %s49
    %p58 = scmp.eq.s32.totalorder %s15, 1
    %p59 = por %p57, %p58
    %p60 = scmp.ne.s32.totalorder %s49, %s50
    %p61 = scmp.eq.s32.totalorder %s15, 0
    %p62 = por %p60, %p61
    %p63 = scmp.ne.s32.totalorder %s49, %s50
    %p64 = scmp.eq.s32.totalorder %s16, 1
    %p65 = por %p63, %p64
    %p67 = scmp.ne.s32.totalorder %s50, %s66
    %p68 = scmp.eq.s32.totalorder %s16, 0
    %p69 = por %p67, %p68
    %s71 = sadd.s32 %s70, 1
    %p74 = scmp.eq.s32.totalorder %s10, 1
    %p75 = scmp.ne.s32.totalorder %s70, %s72
    %p76 = scmp.eq.s32.totalorder %s10, 0
    %p77 = por %p75, %p76
    %p78 = scmp.ne.s32.totalorder %s70, %s72
    %p79 = scmp.eq.s32.totalorder %s15, 1
    %p80 = por %p78, %p79
    %p81 = scmp.ne.s32.totalorder %s72, %s73
    %p82 = scmp.eq.s32.totalorder %s15, 0
    %p83 = por %p81, %p82
    %p84 = scmp.ne.s32.totalorder %s72, %s73
    %p85 = scmp.eq.s32.totalorder %s16, 1
    %p86 = por %p84, %p85
    %p88 = scmp.ne.s32.totalorder %s73, %s87
    %p89 = scmp.eq.s32.totalorder %s16, 0
    %p90 = por %p88, %p89
    %s92 = sadd.s32 %s91, 1
    %p95 = scmp.eq.s32.totalorder %s10, 1
    %p96 = scmp.ne.s32.totalorder %s91, %s93
    %p97 = scmp.eq.s32.totalorder %s10, 0
    %p98 = por %p96, %p97
    %p99 = scmp.ne.s32.totalorder %s91, %s93
    %p100 = scmp.eq.s32.totalorder %s15, 1
    %p101 = por %p99, %p100
    %p102 = scmp.ne.s32.totalorder %s93, %s94
    %p103 = scmp.eq.s32.totalorder %s15, 0
    %p104 = por %p102, %p103
    %p105 = scmp.ne.s32.totalorder %s93, %s94
    %p106 = scmp.eq.s32.totalorder %s16, 1
    %p107 = por %p105, %p106
    %p109 = scmp.ne.s32.totalorder %s94, %s108
    %p110 = scmp.eq.s32.totalorder %s16, 0
    %p111 = por %p109, %p110
    %s112 = ssub.s32 %s10, %s17
    %p113 = scmp.eq.s32.totalorder %s112, 0
    %s115 = sadd.s32 %s114, 1
    %s116 = scalar_select %p113, %s114, %s115
    %p119 = pneg %p113
    %p120 = scmp.eq.s32.totalorder %s10, 1
    %p121 = por %p119, %p120
    %p122 = scmp.ne.s32.totalorder %s114, %s117
    %p123 = scmp.eq.s32.totalorder %s10, 0
    %p124 = por %p122, %p123
    %p125 = scmp.ne.s32.totalorder %s114, %s117
    %p126 = scmp.eq.s32.totalorder %s15, 1
    %p127 = por %p125, %p126
    %p128 = scmp.ne.s32.totalorder %s117, %s118
    %p129 = scmp.eq.s32.totalorder %s15, 0
    %p130 = por %p128, %p129
    %p131 = scmp.ne.s32.totalorder %s117, %s118
    %p132 = scmp.eq.s32.totalorder %s16, 1
    %p133 = por %p131, %p132
    %p135 = scmp.ne.s32.totalorder %s118, %s134
    %p136 = scmp.eq.s32.totalorder %s16, 0
    %p137 = por %p135, %p136
    %p138 = scmp.le.s32.totalorder 1, %s10
    %p139 = scmp.lt.s32.totalorder %s10, 3
    %p140 = pnand %p138, %p139
    %p141 = pneg %p140
    // Predicated region
    $region9: #{gpt2_forward.10} parent=5 // pred_check
      _
    $region10: #{gpt2_forward.10} parent=5 // pred_check_branch
      %143 = sbr.rel (%p140) target = $region12
    $region11: #{gpt2_forward.10} parent=5 // pred_region
      %s144 = ssub.s32 %s10, 1
      // Predicated region
      $region13: #{gpt2_forward.10} parent=11 // pred_check
        %p145 = pneg %p83
      $region14: #{gpt2_forward.10} parent=11 // pred_check_branch
        %147 = sbr.rel (%p145) target = $region16
      $region15: #{gpt2_forward.10} parent=11 // pred_region
        _
      $region16: #{gpt2_forward.10} parent=11 // pred_fallthru
        _
      // Predicated region
      $region17: #{gpt2_forward.10} parent=11 // pred_check
        %p148 = pneg %p104
      $region18: #{gpt2_forward.10} parent=11 // pred_check_branch
        %150 = sbr.rel (%p148) target = $region20
      $region19: #{gpt2_forward.10} parent=11 // pred_region
        _
      $region20: #{gpt2_forward.10} parent=11 // pred_fallthru
        _
    $region12: #{gpt2_forward.10} parent=5 // pred_fallthru
      _
    %p151 = scmp.lt.s32.totalorder %s10, 2
    // Predicated region
    $region21: #{gpt2_forward.10} parent=5 // pred_check
      %p152 = pneg %p151
    $region22: #{gpt2_forward.10} parent=5 // pred_check_branch
      %154 = sbr.rel (%p152) target = $region24
    $region23: #{gpt2_forward.10} parent=5 // pred_region
      // Predicated region
      $region25: #{gpt2_forward.10} parent=23 // pred_check
        %p155 = pneg %p30
      $region26: #{gpt2_forward.10} parent=23 // pred_check_branch
        %157 = sbr.rel (%p155) target = $region28
      $region27: #{gpt2_forward.10} parent=23 // pred_region
        %p158 = scmp.lt.s32.totalorder %s10, 1
        %s159 = scalar_select %p158, %s10, 1
        %s160 = smul.addr %s159, 12
        %s161 = smul.addr %s160, 4
        %s162 = scalar_lea.vmem %s0, %s161
      $region28: #{gpt2_forward.10} parent=23 // pred_fallthru
        _
      // Predicated region
      $region29: #{gpt2_forward.10} parent=23 // pred_check
        %p163 = pneg %p56
      $region30: #{gpt2_forward.10} parent=23 // pred_check_branch
        %165 = sbr.rel (%p163) target = $region32
      $region31: #{gpt2_forward.10} parent=23 // pred_region
        %p166 = scmp.lt.s32.totalorder %s10, 1
        %s167 = scalar_select %p166, %s10, 1
        %s168 = smul.addr %s167, 4
        %s169 = scalar_lea.vmem %s1, %s168
      $region32: #{gpt2_forward.10} parent=23 // pred_fallthru
        _
    $region24: #{gpt2_forward.10} parent=5 // pred_fallthru
      _
    %p170 = scmp.le.s32.totalorder 1, %s10
    %p171 = scmp.lt.s32.totalorder %s10, 3
    %p172 = pnand %p170, %p171
    %p173 = pneg %p172
    // Predicated region
    $region33: #{gpt2_forward.10} parent=5 // pred_check
      _
    $region34: #{gpt2_forward.10} parent=5 // pred_check_branch
      %175 = sbr.rel (%p172) target = $region36
    $region35: #{gpt2_forward.10} parent=5 // pred_region
      %s176 = ssub.s32 %s10, 1
      %p177 = scmp.lt.s32.totalorder %s15, 1
      %s178 = scalar_select %p177, %s15, 1
      %s179 = smul.addr %s178, 12
      %s180 = smul.addr %s179, 4
      %s181 = scalar_lea.vmem %s0, %s180
      %p182 = pneg %p36
      %p183 = pneg %p33
      %p184 = scmp.lt.s32.totalorder %s15, 1
      %s185 = scalar_select %p184, %s15, 1
      %s186 = smul.addr %s185, 4
      %s187 = scalar_lea.vmem %s1, %s186
      %p188 = pneg %p62
      %p189 = pneg %p59
      %p190 = pneg %p83
      %p191 = pneg %p80
      %p192 = pneg %p104
      %p193 = pneg %p101
      %p194 = pneg %p130
      %p195 = pneg %p127
      %p196 = scmp.lt.s32.totalorder %s15, 1
      %s197 = scalar_select %p196, %s15, 1
      %s198 = smul.addr %s197, 4
      %s199 = scalar_lea.vmem %s4, %s198
      %p200 = scmp.lt.s32.totalorder %s15, 1
      %s201 = scalar_select %p200, %s15, 1
      %s202 = smul.addr %s201, 12
      %s203 = smul.addr %s202, 4
      %s204 = scalar_lea.vmem %s0, %s203
      %p205 = scmp.lt.s32.totalorder %s15, 1
      %s206 = scalar_select %p205, %s15, 1
      %s207 = smul.addr %s206, 4
      %s208 = scalar_lea.vmem %s1, %s207
      %p209 = scmp.lt.s32.totalorder %s15, 1
      %s210 = scalar_select %p209, %s15, 1
      %s211 = smul.addr %s210, 4
      %s212 = scalar_lea.vmem %s4, %s211
      %v214 = vlaneseq
      %v215 = vshrl.u32 %v214, 7
      %v216 = vlaneseq
      %v217 = vand.u32 %v216, 127
      %vm218 = vcmp.ge.s32.totalorder %v215, %v217
      %v219 = vld [vmem:[%s204] sm:$0xf]
      %s220 = scalar_lea.vmem %s204, 16
      %v221 = vld [vmem:[%s220] sm:$0xf]
      %s222 = scalar_lea.vmem %s204, 32
      %v223 = vld [vmem:[%s222] sm:$0xf]
      %vm224 = vcmask 64512
      %v226 = vsel %vm224, %v219, 0
      %v229 = vsel %vm224, %v221, 0
      %231 = vmatprep.subr.bf16.mxu0 0
      %232 = vmatpush1.bf16.xpose.msra.mxu0 %v229
      %233 = vmatprep.subr.bf16.mxu0 0
      %234 = vmatpush1.bf16.xpose.msra.mxu0 0
      %235 = vmatprep.subr.bf16.mxu0 0
      %236 = vmatpush1.bf16.xpose.msra.mxu0 0
      %237 = vmatprep.subr.bf16.mxu0 0
      %238 = vmatpush1.bf16.xpose.msra.mxu0 0
      %239 = vmatprep.subr.bf16.mxu0 0
      %240 = vmatpush1.bf16.xpose.msra.mxu0 0
      %241 = vmatprep.subr.bf16.mxu0 0
      %242 = vmatpush1.bf16.xpose.msra.mxu0 0
      %243 = vmatprep.subr.bf16.mxu0 0
      %244 = vmatpush1.bf16.xpose.msra.mxu0 0
      %245 = vmatprep.subr.bf16.mxu0 0
      %246 = vmatpush1.bf16.xpose.msra.mxu0 0
      %247 = vmatprep.subr.bf16.mxu0 0
      %248 = vmatpush1.bf16.xpose.msra.mxu0 0
      %249 = vmatprep.subr.bf16.mxu0 0
      %250 = vmatpush1.bf16.xpose.msra.mxu0 0
      %251 = vmatprep.subr.bf16.mxu0 0
      %252 = vmatpush1.bf16.xpose.msra.mxu0 0
      %253 = vmatprep.subr.bf16.mxu0 0
      %254 = vmatpush1.bf16.xpose.msra.mxu0 0
      %255 = vmatprep.subr.bf16.mxu0 0
      %256 = vmatpush1.bf16.xpose.msra.mxu0 0
      %257 = vmatprep.subr.bf16.mxu0 0
      %258 = vmatpush1.bf16.xpose.msra.mxu0 0
      %259 = vmatprep.subr.bf16.mxu0 0
      %260 = vmatpush1.bf16.xpose.msra.mxu0 0
      %261 = vmatprep.subr.bf16.mxu0 0
      %262 = vmatpush1.bf16.xpose.msra.mxu0 0
      %263 = vmatprep.mubr.bf16.mxu0 0
      %264 = vmatmul.mubr.bf16.gmra.mrb[0].mxu0 %v226
      %v265 = vpop.f32.mrb[0].mxu0
      %v266 = vadd.f32 0.0, %v265
      %v267 = vpop.f32.mrb[0].mxu0
      %v268 = vpop.f32.mrb[0].mxu0
      %v269 = vpop.f32.mrb[0].mxu0
      %270 = vdwg.mxu0
      %v271 = vmul.f32 %v266, 0.35355338
      %v272 = vsel %vm218, %v271, -1e+09
      %v273 = vsel %vm224, %v272, -inf
      %274 = vmax.xlane.f32.xlu0 %v273
      %v275 = vpop.xlane.xlu0 %274
      %v276 = vsub.f32 %v272, %v275
      %v277 = vmul.f32 %v276, 1.442695
      %v278 = vpow.pop %v277
      %v279 = vsel %vm224, %v278, 0.0
      %280 = vadd.xlane.f32.xlu0 %v279
      %v281 = vpop.xlane.xlu0 %280
      %v282 = vrcp.pop %v281
      %v283 = vmul.f32 %v278, %v282
      %v284 = vpack.c.bf16 %v283, %v283
      %v286 = vsel %vm224, %v284, 0
      %vm288 = vcmask 1043456
      %v290 = vsel %vm288, %v223, 0
      %292 = vmatprep.subr.bf16.mxu0 0
      %293 = vmatpush1.bf16.msra.mxu0 %v290
      %294 = vmatprep.subr.bf16.mxu0 0
      %295 = vmatpush1.bf16.msra.mxu0 0
      %296 = vmatprep.subr.bf16.mxu0 0
      %297 = vmatpush1.bf16.msra.mxu0 0
      %298 = vmatprep.subr.bf16.mxu0 0
      %299 = vmatpush1.bf16.msra.mxu0 0
      %300 = vmatprep.subr.bf16.mxu0 0
      %301 = vmatpush1.bf16.msra.mxu0 0
      %302 = vmatprep.subr.bf16.mxu0 0
      %303 = vmatpush1.bf16.msra.mxu0 0
      %304 = vmatprep.subr.bf16.mxu0 0
      %305 = vmatpush1.bf16.msra.mxu0 0
      %306 = vmatprep.subr.bf16.mxu0 0
      %307 = vmatpush1.bf16.msra.mxu0 0
      %308 = vmatprep.subr.bf16.mxu0 0
      %309 = vmatpush1.bf16.msra.mxu0 0
      %310 = vmatprep.subr.bf16.mxu0 0
      %311 = vmatpush1.bf16.msra.mxu0 0
      %312 = vmatprep.subr.bf16.mxu0 0
      %313 = vmatpush1.bf16.msra.mxu0 0
      %314 = vmatprep.subr.bf16.mxu0 0
      %315 = vmatpush1.bf16.msra.mxu0 0
      %316 = vmatprep.subr.bf16.mxu0 0
      %317 = vmatpush1.bf16.msra.mxu0 0
      %318 = vmatprep.subr.bf16.mxu0 0
      %319 = vmatpush1.bf16.msra.mxu0 0
      %320 = vmatprep.subr.bf16.mxu0 0
      %321 = vmatpush1.bf16.msra.mxu0 0
      %322 = vmatprep.subr.bf16.mxu0 0
      %323 = vmatpush1.bf16.msra.mxu0 0
      %324 = vmatprep.mubr.bf16.mxu0 0
      %325 = vmatmul.mubr.bf16.gmra.mrb[0].mxu0 %v286
      %v326 = vpop.f32.mrb[0].mxu0
      %v327 = vadd.f32 0.0, %v326
      %v328 = vpop.f32.mrb[0].mxu0
      %v329 = vpop.f32.mrb[0].mxu0
      %v330 = vpop.f32.mrb[0].mxu0
      %331 = vdwg.mxu0
      %v332 = vpack.c.bf16 %v327, %v327
      %vm333 = vcmask 60416
      %334 = vst.msk [vmem:[#allocation2] sm:$0xf] %vm333, %v332
      %s335 = scalar_lea.vmem %s204, 4
      %v336 = vld [vmem:[%s335] sm:$0xf]
      %s337 = scalar_lea.vmem %s204, 20
      %v338 = vld [vmem:[%s337] sm:$0xf]
      %s339 = scalar_lea.vmem %s204, 36
      %v340 = vld [vmem:[%s339] sm:$0xf]
      %v342 = vsel %vm224, %v336, 0
      %v345 = vsel %vm224, %v338, 0
      %347 = vmatprep.subr.bf16.mxu0 0
      %348 = vmatpush1.bf16.xpose.msra.mxu0 %v345
      %349 = vmatprep.subr.bf16.mxu0 0
      %350 = vmatpush1.bf16.xpose.msra.mxu0 0
      %351 = vmatprep.subr.bf16.mxu0 0
      %352 = vmatpush1.bf16.xpose.msra.mxu0 0
      %353 = vmatprep.subr.bf16.mxu0 0
      %354 = vmatpush1.bf16.xpose.msra.mxu0 0
      %355 = vmatprep.subr.bf16.mxu0 0
      %356 = vmatpush1.bf16.xpose.msra.mxu0 0
      %357 = vmatprep.subr.bf16.mxu0 0
      %358 = vmatpush1.bf16.xpose.msra.mxu0 0
      %359 = vmatprep.subr.bf16.mxu0 0
      %360 = vmatpush1.bf16.xpose.msra.mxu0 0
      %361 = vmatprep.subr.bf16.mxu0 0
      %362 = vmatpush1.bf16.xpose.msra.mxu0 0
      %363 = vmatprep.subr.bf16.mxu0 0
      %364 = vmatpush1.bf16.xpose.msra.mxu0 0
      %365 = vmatprep.subr.bf16.mxu0 0
      %366 = vmatpush1.bf16.xpose.msra.mxu0 0
      %367 = vmatprep.subr.bf16.mxu0 0
      %368 = vmatpush1.bf16.xpose.msra.mxu0 0
      %369 = vmatprep.subr.bf16.mxu0 0
      %370 = vmatpush1.bf16.xpose.msra.mxu0 0
      %371 = vmatprep.subr.bf16.mxu0 0
      %372 = vmatpush1.bf16.xpose.msra.mxu0 0
      %373 = vmatprep.subr.bf16.mxu0 0
      %374 = vmatpush1.bf16.xpose.msra.mxu0 0
      %375 = vmatprep.subr.bf16.mxu0 0
      %376 = vmatpush1.bf16.xpose.msra.mxu0 0
      %377 = vmatprep.subr.bf16.mxu0 0
      %378 = vmatpush1.bf16.xpose.msra.mxu0 0
      %379 = vmatprep.mubr.bf16.mxu0 0
      %380 = vmatmul.mubr.bf16.gmra.mrb[0].mxu0 %v342
      %v381 = vpop.f32.mrb[0].mxu0
      %v382 = vadd.f32 0.0, %v381
      %v383 = vpop.f32.mrb[0].mxu0
      %v384 = vpop.f32.mrb[0].mxu0
      %v385 = vpop.f32.mrb[0].mxu0
      %386 = vdwg.mxu0
      %v387 = vmul.f32 %v382, 0.35355338
      %v388 = vsel %vm218, %v387, -1e+09
      %v389 = vsel %vm224, %v388, -inf
      %390 = vmax.xlane.f32.xlu0 %v389
      %v391 = vpop.xlane.xlu0 %390
      %v392 = vsub.f32 %v388, %v391
      %v393 = vmul.f32 %v392, 1.442695
      %v394 = vpow.pop %v393
      %v395 = vsel %vm224, %v394, 0.0
      %396 = vadd.xlane.f32.xlu0 %v395
      %v397 = vpop.xlane.xlu0 %396
      %v398 = vrcp.pop %v397
      %v399 = vmul.f32 %v394, %v398
      %v400 = vpack.c.bf16 %v399, %v399
      %v402 = vsel %vm224, %v400, 0
      %v405 = vsel %vm288, %v340, 0
      %407 = vmatprep.subr.bf16.mxu0 0
      %408 = vmatpush1.bf16.msra.mxu0 %v405
      %409 = vmatprep.subr.bf16.mxu0 0
      %410 = vmatpush1.bf16.msra.mxu0 0
      %411 = vmatprep.subr.bf16.mxu0 0
      %412 = vmatpush1.bf16.msra.mxu0 0
      %413 = vmatprep.subr.bf16.mxu0 0
      %414 = vmatpush1.bf16.msra.mxu0 0
      %415 = vmatprep.subr.bf16.mxu0 0
      %416 = vmatpush1.bf16.msra.mxu0 0
      %417 = vmatprep.subr.bf16.mxu0 0
      %418 = vmatpush1.bf16.msra.mxu0 0
      %419 = vmatprep.subr.bf16.mxu0 0
      %420 = vmatpush1.bf16.msra.mxu0 0
      %421 = vmatprep.subr.bf16.mxu0 0
      %422 = vmatpush1.bf16.msra.mxu0 0
      %423 = vmatprep.subr.bf16.mxu0 0
      %424 = vmatpush1.bf16.msra.mxu0 0
      %425 = vmatprep.subr.bf16.mxu0 0
      %426 = vmatpush1.bf16.msra.mxu0 0
      %427 = vmatprep.subr.bf16.mxu0 0
      %428 = vmatpush1.bf16.msra.mxu0 0
      %429 = vmatprep.subr.bf16.mxu0 0
      %430 = vmatpush1.bf16.msra.mxu0 0
      %431 = vmatprep.subr.bf16.mxu0 0
      %432 = vmatpush1.bf16.msra.mxu0 0
      %433 = vmatprep.subr.bf16.mxu0 0
      %434 = vmatpush1.bf16.msra.mxu0 0
      %435 = vmatprep.subr.bf16.mxu0 0
      %436 = vmatpush1.bf16.msra.mxu0 0
      %437 = vmatprep.subr.bf16.mxu0 0
      %438 = vmatpush1.bf16.msra.mxu0 0
      %439 = vmatprep.mubr.bf16.mxu0 0
      %440 = vmatmul.mubr.bf16.gmra.mrb[0].mxu0 %v402
      %v441 = vpop.f32.mrb[0].mxu0
      %v442 = vadd.f32 0.0, %v441
      %v443 = vpop.f32.mrb[0].mxu0
      %v444 = vpop.f32.mrb[0].mxu0
      %v445 = vpop.f32.mrb[0].mxu0
      %446 = vdwg.mxu0
      %v447 = vpack.c.bf16 %v442, %v442
      %v449 = vunpack.c.l.b16 %v447
      %v450 = vpack.c.b16 %v449, %v449
      %451 = vrot.lane.b32.xlu0 %v450, 8
      %v452 = vpop.permute.xlu0 %451
      %vm454 = vcmask 126016
      %455 = vst.msk [vmem:[#allocation2] sm:$0xf] %vm454, %v452
      %s456 = scalar_lea.vmem %s204, 8
      %v457 = vld [vmem:[%s456] sm:$0xf]
      %s458 = scalar_lea.vmem %s204, 24
      %v459 = vld [vmem:[%s458] sm:$0xf]
      %s460 = scalar_lea.vmem %s204, 40
      %v461 = vld [vmem:[%s460] sm:$0xf]
      %v463 = vsel %vm224, %v457, 0
      %v466 = vsel %vm224, %v459, 0
      %468 = vmatprep.subr.bf16.mxu0 0
      %469 = vmatpush1.bf16.xpose.msra.mxu0 %v466
      %470 = vmatprep.subr.bf16.mxu0 0
      %471 = vmatpush1.bf16.xpose.msra.mxu0 0
      %472 = vmatprep.subr.bf16.mxu0 0
      %473 = vmatpush1.bf16.xpose.msra.mxu0 0
      %474 = vmatprep.subr.bf16.mxu0 0
      %475 = vmatpush1.bf16.xpose.msra.mxu0 0
      %476 = vmatprep.subr.bf16.mxu0 0
      %477 = vmatpush1.bf16.xpose.msra.mxu0 0
      %478 = vmatprep.subr.bf16.mxu0 0
      %479 = vmatpush1.bf16.xpose.msra.mxu0 0
      %480 = vmatprep.subr.bf16.mxu0 0
      %481 = vmatpush1.bf16.xpose.msra.mxu0 0
      %482 = vmatprep.subr.bf16.mxu0 0
      %483 = vmatpush1.bf16.xpose.msra.mxu0 0
      %484 = vmatprep.subr.bf16.mxu0 0
      %485 = vmatpush1.bf16.xpose.msra.mxu0 0
      %486 = vmatprep.subr.bf16.mxu0 0
      %487 = vmatpush1.bf16.xpose.msra.mxu0 0
      %488 = vmatprep.subr.bf16.mxu0 0
      %489 = vmatpush1.bf16.xpose.msra.mxu0 0
      %490 = vmatprep.subr.bf16.mxu0 0
      %491 = vmatpush1.bf16.xpose.msra.mxu0 0
      %492 = vmatprep.subr.bf16.mxu0 0
      %493 = vmatpush1.bf16.xpose.msra.mxu0 0
      %494 = vmatprep.subr.bf16.mxu0 0
      %495 = vmatpush1.bf16.xpose.msra.mxu0 0
      %496 = vmatprep.subr.bf16.mxu0 0
      %497 = vmatpush1.bf16.xpose.msra.mxu0 0
      %498 = vmatprep.subr.bf16.mxu0 0
      %499 = vmatpush1.bf16.xpose.msra.mxu0 0
      %500 = vmatprep.mubr.bf16.mxu0 0
      %501 = vmatmul.mubr.bf16.gmra.mrb[0].mxu0 %v463
      %v502 = vpop.f32.mrb[0].mxu0
      %v503 = vadd.f32 0.0, %v502
      %v504 = vpop.f32.mrb[0].mxu0
      %v505 = vpop.f32.mrb[0].mxu0
      %v506 = vpop.f32.mrb[0].mxu0
      %507 = vdwg.mxu0
      %v508 = vmul.f32 %v503, 0.35355338
      %v509 = vsel %vm218, %v508, -1e+09
      %v510 = vsel %vm224, %v509, -inf
      %511 = vmax.xlane.f32.xlu0 %v510
      %v512 = vpop.xlane.xlu0 %511
      %v513 = vsub.f32 %v509, %v512
      %v514 = vmul.f32 %v513, 1.442695
      %v515 = vpow.pop %v514
      %v516 = vsel %vm224, %v515, 0.0
      %517 = vadd.xlane.f32.xlu0 %v516
      %v518 = vpop.xlane.xlu0 %517
      %v519 = vrcp.pop %v518
      %v520 = vmul.f32 %v515, %v519
      %v521 = vpack.c.bf16 %v520, %v520
      %v523 = vsel %vm224, %v521, 0
      %v526 = vsel %vm288, %v461, 0
      %528 = vmatprep.subr.bf16.mxu0 0
      %529 = vmatpush1.bf16.msra.mxu0 %v526
      %530 = vmatprep.subr.bf16.mxu0 0
      %531 = vmatpush1.bf16.msra.mxu0 0
      %532 = vmatprep.subr.bf16.mxu0 0
      %533 = vmatpush1.bf16.msra.mxu0 0
      %534 = vmatprep.subr.bf16.mxu0 0
      %535 = vmatpush1.bf16.msra.mxu0 0
      %536 = vmatprep.subr.bf16.mxu0 0
      %537 = vmatpush1.bf16.msra.mxu0 0
      %538 = vmatprep.subr.bf16.mxu0 0
      %539 = vmatpush1.bf16.msra.mxu0 0
      %540 = vmatprep.subr.bf16.mxu0 0
      %541 = vmatpush1.bf16.msra.mxu0 0
      %542 = vmatprep.subr.bf16.mxu0 0
      %543 = vmatpush1.bf16.msra.mxu0 0
      %544 = vmatprep.subr.bf16.mxu0 0
      %545 = vmatpush1.bf16.msra.mxu0 0
      %546 = vmatprep.subr.bf16.mxu0 0
      %547 = vmatpush1.bf16.msra.mxu0 0
      %548 = vmatprep.subr.bf16.mxu0 0
      %549 = vmatpush1.bf16.msra.mxu0 0
      %550 = vmatprep.subr.bf16.mxu0 0
      %551 = vmatpush1.bf16.msra.mxu0 0
      %552 = vmatprep.subr.bf16.mxu0 0
      %553 = vmatpush1.bf16.msra.mxu0 0
      %554 = vmatprep.subr.bf16.mxu0 0
      %555 = vmatpush1.bf16.msra.mxu0 0
      %556 = vmatprep.subr.bf16.mxu0 0
      %557 = vmatpush1.bf16.msra.mxu0 0
      %558 = vmatprep.subr.bf16.mxu0 0
      %559 = vmatpush1.bf16.msra.mxu0 0
      %560 = vmatprep.mubr.bf16.mxu0 0
      %561 = vmatmul.mubr.bf16.gmra.mrb[0].mxu0 %v523
      %v562 = vpop.f32.mrb[0].mxu0
      %v563 = vadd.f32 0.0, %v562
      %v564 = vpop.f32.mrb[0].mxu0
      %v565 = vpop.f32.mrb[0].mxu0
      %v566 = vpop.f32.mrb[0].mxu0
      %567 = vdwg.mxu0
      %v568 = vpack.c.bf16 %v563, %v563
      %v570 = vunpack.c.l.b16 %v568
      %v571 = vpack.c.b16 %v570, %v570
      %572 = vrot.lane.b32.xlu0 %v571, 16
      %v573 = vpop.permute.xlu0 %572
      %vm575 = vcmask 191616
      %576 = vst.msk [vmem:[#allocation2] sm:$0xf] %vm575, %v573
      %s577 = scalar_lea.vmem %s204, 12
      %v578 = vld [vmem:[%s577] sm:$0xf]
      %s579 = scalar_lea.vmem %s204, 28
      %v580 = vld [vmem:[%s579] sm:$0xf]
      %s581 = scalar_lea.vmem %s204, 44
      %v582 = vld [vmem:[%s581] sm:$0xf]
      %v584 = vsel %vm224, %v578, 0
      %v587 = vsel %vm224, %v580, 0
      %589 = vmatprep.subr.bf16.mxu0 0
      %590 = vmatpush1.bf16.xpose.msra.mxu0 %v587
      %591 = vmatprep.subr.bf16.mxu0 0
      %592 = vmatpush1.bf16.xpose.msra.mxu0 0
      %593 = vmatprep.subr.bf16.mxu0 0
      %594 = vmatpush1.bf16.xpose.msra.mxu0 0
      %595 = vmatprep.subr.bf16.mxu0 0
      %596 = vmatpush1.bf16.xpose.msra.mxu0 0
      %597 = vmatprep.subr.bf16.mxu0 0
      %598 = vmatpush1.bf16.xpose.msra.mxu0 0
      %599 = vmatprep.subr.bf16.mxu0 0
      %600 = vmatpush1.bf16.xpose.msra.mxu0 0
      %601 = vmatprep.subr.bf16.mxu0 0
      %602 = vmatpush1.bf16.xpose.msra.mxu0 0
      %603 = vmatprep.subr.bf16.mxu0 0
      %604 = vmatpush1.bf16.xpose.msra.mxu0 0
      %605 = vmatprep.subr.bf16.mxu0 0
      %606 = vmatpush1.bf16.xpose.msra.mxu0 0
      %607 = vmatprep.subr.bf16.mxu0 0
      %608 = vmatpush1.bf16.xpose.msra.mxu0 0
      %609 = vmatprep.subr.bf16.mxu0 0
      %610 = vmatpush1.bf16.xpose.msra.mxu0 0
      %611 = vmatprep.subr.bf16.mxu0 0
      %612 = vmatpush1.bf16.xpose.msra.mxu0 0
      %613 = vmatprep.subr.bf16.mxu0 0
      %614 = vmatpush1.bf16.xpose.msra.mxu0 0
      %615 = vmatprep.subr.bf16.mxu0 0
      %616 = vmatpush1.bf16.xpose.msra.mxu0 0
      %617 = vmatprep.subr.bf16.mxu0 0
      %618 = vmatpush1.bf16.xpose.msra.mxu0 0
      %619 = vmatprep.subr.bf16.mxu0 0
      %620 = vmatpush1.bf16.xpose.msra.mxu0 0
      %621 = vmatprep.mubr.bf16.mxu0 0
      %622 = vmatmul.mubr.bf16.gmra.mrb[0].mxu0 %v584
      %v623 = vpop.f32.mrb[0].mxu0
      %v624 = vadd.f32 0.0, %v623
      %v625 = vpop.f32.mrb[0].mxu0
      %v626 = vpop.f32.mrb[0].mxu0
      %v627 = vpop.f32.mrb[0].mxu0
      %628 = vdwg.mxu0
      %v629 = vmul.f32 %v624, 0.35355338
      %v630 = vsel %vm218, %v629, -1e+09
      %v631 = vsel %vm224, %v630, -inf
      %632 = vmax.xlane.f32.xlu0 %v631
      %v633 = vpop.xlane.xlu0 %632
      %v634 = vsub.f32 %v630, %v633
      %v635 = vmul.f32 %v634, 1.442695
      %v636 = vpow.pop %v635
      %v637 = vsel %vm224, %v636, 0.0
      %638 = vadd.xlane.f32.xlu0 %v637
      %v639 = vpop.xlane.xlu0 %638
      %v640 = vrcp.pop %v639
      %v641 = vmul.f32 %v636, %v640
      %v642 = vpack.c.bf16 %v641, %v641
      %v644 = vsel %vm224, %v642, 0
      %v647 = vsel %vm288, %v582, 0
      %649 = vmatprep.subr.bf16.mxu0 0
      %650 = vmatpush1.bf16.msra.mxu0 %v647
      %651 = vmatprep.subr.bf16.mxu0 0
      %652 = vmatpush1.bf16.msra.mxu0 0
      %653 = vmatprep.subr.bf16.mxu0 0
      %654 = vmatpush1.bf16.msra.mxu0 0
      %655 = vmatprep.subr.bf16.mxu0 0
      %656 = vmatpush1.bf16.msra.mxu0 0
      %657 = vmatprep.subr.bf16.mxu0 0
      %658 = vmatpush1.bf16.msra.mxu0 0
      %659 = vmatprep.subr.bf16.mxu0 0
      %660 = vmatpush1.bf16.msra.mxu0 0
      %661 = vmatprep.subr.bf16.mxu0 0
      %662 = vmatpush1.bf16.msra.mxu0 0
      %663 = vmatprep.subr.bf16.mxu0 0
      %664 = vmatpush1.bf16.msra.mxu0 0
      %665 = vmatprep.subr.bf16.mxu0 0
      %666 = vmatpush1.bf16.msra.mxu0 0
      %667 = vmatprep.subr.bf16.mxu0 0
      %668 = vmatpush1.bf16.msra.mxu0 0
      %669 = vmatprep.subr.bf16.mxu0 0
      %670 = vmatpush1.bf16.msra.mxu0 0
      %671 = vmatprep.subr.bf16.mxu0 0
      %672 = vmatpush1.bf16.msra.mxu0 0
      %673 = vmatprep.subr.bf16.mxu0 0
      %674 = vmatpush1.bf16.msra.mxu0 0
      %675 = vmatprep.subr.bf16.mxu0 0
      %676 = vmatpush1.bf16.msra.mxu0 0
      %677 = vmatprep.subr.bf16.mxu0 0
      %678 = vmatpush1.bf16.msra.mxu0 0
      %679 = vmatprep.subr.bf16.mxu0 0
      %680 = vmatpush1.bf16.msra.mxu0 0
      %681 = vmatprep.mubr.bf16.mxu0 0
      %682 = vmatmul.mubr.bf16.gmra.mrb[0].mxu0 %v644
      %v683 = vpop.f32.mrb[0].mxu0
      %v684 = vadd.f32 0.0, %v683
      %v685 = vpop.f32.mrb[0].mxu0
      %v686 = vpop.f32.mrb[0].mxu0
      %v687 = vpop.f32.mrb[0].mxu0
      %688 = vdwg.mxu0
      %v689 = vpack.c.bf16 %v684, %v684
      %v691 = vunpack.c.l.b16 %v689
      %v692 = vpack.c.b16 %v691, %v691
      %693 = vrot.lane.b32.xlu0 %v692, 24
      %v694 = vpop.permute.xlu0 %693
      %vm696 = vcmask 257216
      %697 = vst.msk [vmem:[#allocation2] sm:$0xf] %vm696, %v694
      %v698 = vld [vmem:[#allocation2] sm:$0xf]
      %v699 = vld [vmem:[%s2] sm:$0xf]
      %v700 = vld [vmem:[%s2 + $0x4] sm:$0xf]
      %v701 = vld [vmem:[%s2 + $0x8] sm:$0xf]
      %v702 = vld [vmem:[%s2 + $0xc] sm:$0xf]
      %v703 = vld [vmem:[%s3] sm:$0x1]
      %v705 = vlaneseq
      %v706 = vshrl.u32 %v705, 7
      %v707 = vsub.s32 0, %v706
      %v708 = vrot.slane %v703, %v707
      %v714 = vunpack.c.l.b16 %v699
      %v715 = vunpack.c.l.b16 %v700
      %v716 = vunpack.c.l.b16 %v701
      %v717 = vunpack.c.l.b16 %v702
      %v718 = vpack.c.b16 %v715, %v714
      %v719 = vpack.c.b16 %v717, %v716
      %vm722 = vcmask 261120
      %v724 = vsel %vm722, %v698, 0
      %726 = vmatprep.subr.bf16.mxu0 0
      %727 = vmatpush1.bf16.msra.mxu0 %v718
      %728 = vmatprep.subr.bf16.mxu0 0
      %729 = vmatpush1.bf16.msra.mxu0 %v719
      %730 = vmatprep.subr.bf16.mxu0 0
      %731 = vmatpush1.bf16.msra.mxu0 0
      %732 = vmatprep.subr.bf16.mxu0 0
      %733 = vmatpush1.bf16.msra.mxu0 0
      %734 = vmatprep.subr.bf16.mxu0 0
      %735 = vmatpush1.bf16.msra.mxu0 0
      %736 = vmatprep.subr.bf16.mxu0 0
      %737 = vmatpush1.bf16.msra.mxu0 0
      %738 = vmatprep.subr.bf16.mxu0 0
      %739 = vmatpush1.bf16.msra.mxu0 0
      %740 = vmatprep.subr.bf16.mxu0 0
      %741 = vmatpush1.bf16.msra.mxu0 0
      %742 = vmatprep.subr.bf16.mxu0 0
      %743 = vmatpush1.bf16.msra.mxu0 0
      %744 = vmatprep.subr.bf16.mxu0 0
      %745 = vmatpush1.bf16.msra.mxu0 0
      %746 = vmatprep.subr.bf16.mxu0 0
      %747 = vmatpush1.bf16.msra.mxu0 0
      %748 = vmatprep.subr.bf16.mxu0 0
      %749 = vmatpush1.bf16.msra.mxu0 0
      %750 = vmatprep.subr.bf16.mxu0 0
      %751 = vmatpush1.bf16.msra.mxu0 0
      %752 = vmatprep.subr.bf16.mxu0 0
      %753 = vmatpush1.bf16.msra.mxu0 0
      %754 = vmatprep.subr.bf16.mxu0 0
      %755 = vmatpush1.bf16.msra.mxu0 0
      %756 = vmatprep.subr.bf16.mxu0 0
      %757 = vmatpush1.bf16.msra.mxu0 0
      %758 = vmatprep.mubr.bf16.mxu0 0
      %759 = vmatmul.mubr.bf16.gmra.mrb[0].mxu0 %v724
      %v760 = vpop.f32.mrb[0].mxu0
      %v761 = vadd.f32 %v708, %v760
      %v762 = vpop.f32.mrb[0].mxu0
      %v763 = vpop.f32.mrb[0].mxu0
      %v764 = vpop.f32.mrb[0].mxu0
      %765 = vdwg.mxu0
      %v766 = vld [vmem:[%s208] sm:$0xf]
      %v767 = vunpack.c.l.bf16 %v766
      %v768 = vadd.f32 %v767, %v761
      %v769 = vpack.c.bf16 %v768, %v768
      %vm770 = vcmask 257024
      %771 = vst.msk [vmem:[%s212] sm:$0xf] %vm770, %v769
      %p772 = scmp.lt.s32.totalorder %s15, 1
      %s773 = scalar_select %p772, %s15, 1
      %s774 = smul.addr %s773, 4
      %s775 = scalar_lea.vmem %s4, %s774
      // Predicated region
      $region37: #{gpt2_forward.10} parent=35 // pred_check
        %p776 = pneg %p127
      $region38: #{gpt2_forward.10} parent=35 // pred_check_branch
        %778 = sbr.rel (%p776) target = $region40
      $region39: #{gpt2_forward.10} parent=35 // pred_region
        _
      $region40: #{gpt2_forward.10} parent=35 // pred_fallthru
        _
    $region36: #{gpt2_forward.10} parent=5 // pred_fallthru
      _
    %p779 = scmp.le.s32.totalorder 2, %s10
    // Predicated region
    $region41: #{gpt2_forward.10} parent=5 // pred_check
      %p780 = pneg %p779
    $region42: #{gpt2_forward.10} parent=5 // pred_check_branch
      %782 = sbr.rel (%p780) target = $region44
    $region43: #{gpt2_forward.10} parent=5 // pred_region
      %s783 = ssub.s32 %s10, 2
      // Predicated region
      $region45: #{gpt2_forward.10} parent=43 // pred_check
        %p784 = pneg %p133
      $region46: #{gpt2_forward.10} parent=43 // pred_check_branch
        %786 = sbr.rel (%p784) target = $region48
      $region47: #{gpt2_forward.10} parent=43 // pred_region
        %p787 = scmp.lt.s32.totalorder %s16, 1
        %s788 = scalar_select %p787, %s16, 1
        %s789 = smul.addr %s788, 4
        %s790 = scalar_lea.vmem %s4, %s789
      $region48: #{gpt2_forward.10} parent=43 // pred_fallthru
        _
    $region44: #{gpt2_forward.10} parent=5 // pred_fallthru
      _
  $region6: #{gpt2_forward.10} parent=0 // loop_footer
    %s14 = sadd.s32 1, %s10
  $region7: #{gpt2_forward.10} parent=0 // loop_footer_branch
    %9 = sbr.rel target = $region3
  $region8: #{gpt2_forward.10} parent=0 // loop_exit
    _

// kernel: gpt2_forward.9
$region0: #{gpt2_forward.9}
  #allocation0 [shape = 'u32[]', space=smem, size = 0x4, offset = 0x4, fixed_abs, tag = 'smem constant byte address 0x4 - core index']
  #allocation1 [shape = 'u32[144,128]{1,0:T(1,128)}', space=vmem, size = 0x12000, scoped, tag = 'internal scratch']
  %s0 = inlined_call_operand.vmem [shape: bf16[16,32], index: 0, kind: input, shape index: {}]
  %s1 = inlined_call_operand.vmem [shape: f32[1,32], index: 1, kind: input, shape index: {}]
  %s2 = inlined_call_operand.vmem [shape: f32[1,32], index: 2, kind: input, shape index: {}]
  %s3 = inlined_call_operand.vmem [shape: bf16[32,96], index: 3, kind: input, shape index: {}]
  %s4 = inlined_call_operand.vmem [shape: f32[1,96], index: 4, kind: input, shape index: {}]
  %s5 = inlined_call_operand.vmem [shape: bf16[16,96], index: 5, kind: output, shape index: {}]
  %s6 = sld [smem:[#allocation0]]
  $region30: #{gpt2_forward.9} parent=0
    _
  %s8 = ssub.s32 1, %s6
  %s9 = scalar_select 0, %s8, %s6
  // Predicated region
  $region2: #{gpt2_forward.9} parent=0 // pred_check
    _
  $region3: #{gpt2_forward.9} parent=0 // pred_check_branch
    %11 = sbr.rel (0) target = $region5
  $region4: #{gpt2_forward.9} parent=0 // pred_region
    _
  $region5: #{gpt2_forward.9} parent=0 // pred_fallthru
    _
  // Predicated region
  $region6: #{gpt2_forward.9} parent=0 // pred_check
    _
  $region7: #{gpt2_forward.9} parent=0 // pred_check_branch
    %13 = sbr.rel (0) target = $region9
  $region8: #{gpt2_forward.9} parent=0 // pred_region
    _
  $region9: #{gpt2_forward.9} parent=0 // pred_fallthru
    _
  // Predicated region
  $region10: #{gpt2_forward.9} parent=0 // pred_check
    _
  $region11: #{gpt2_forward.9} parent=0 // pred_check_branch
    %15 = sbr.rel (0) target = $region13
  $region12: #{gpt2_forward.9} parent=0 // pred_region
    _
  $region13: #{gpt2_forward.9} parent=0 // pred_fallthru
    _
  // Predicated region
  $region14: #{gpt2_forward.9} parent=0 // pred_check
    _
  $region15: #{gpt2_forward.9} parent=0 // pred_check_branch
    %17 = sbr.rel (0) target = $region17
  $region16: #{gpt2_forward.9} parent=0 // pred_region
    _
  $region17: #{gpt2_forward.9} parent=0 // pred_fallthru
    _
  // Predicated region
  $region18: #{gpt2_forward.9} parent=0 // pred_check
    _
  $region19: #{gpt2_forward.9} parent=0 // pred_check_branch
    %19 = sbr.rel (0) target = $region21
  $region20: #{gpt2_forward.9} parent=0 // pred_region
    _
  $region21: #{gpt2_forward.9} parent=0 // pred_fallthru
    _
  %v21 = vld [vmem:[%s0] sm:$0xf]
  %v22 = vld [vmem:[%s0 + $0x4] sm:$0xf]
  %v23 = vunpack.c.l.bf16 %v21
  %v24 = vunpack.c.l.bf16 %v22
  %v25 = vld [vmem:[%s1] sm:$0x1]
  %v26 = vld [vmem:[%s2] sm:$0x1]
  %vm27 = vcmask 261120
  %v28 = vsel %vm27, %v23, 0.0
  %29 = vadd.xlane.f32.xlu0 %v28
  %v30 = vpop.xlane.xlu0 %29
  %v31 = vsel %vm27, %v24, 0.0
  %32 = vadd.xlane.f32.xlu0 %v31
  %v33 = vpop.xlane.xlu0 %32
  %v34 = vrcp.pop 32.0
  %v35 = vmul.f32 %v30, %v34
  %v36 = vmul.f32 %v33, %v34
  %v37 = vsub.f32 %v23, %v35
  %v38 = vsub.f32 %v24, %v36
  %v39 = vmul.f32 %v37, %v37
  %v40 = vmul.f32 %v38, %v38
  %v41 = vsel %vm27, %v39, 0.0
  %42 = vadd.xlane.f32.xlu0 %v41
  %v43 = vpop.xlane.xlu0 %42
  %v44 = vsel %vm27, %v40, 0.0
  %45 = vadd.xlane.f32.xlu0 %v44
  %v46 = vpop.xlane.xlu0 %45
  %v47 = vmul.f32 %v43, 0.032258064
  %v48 = vmul.f32 %v46, 0.032258064
  %v49 = vrsqrt.pop %v47
  %v50 = vmul.f32 %v47, %v49
  %vm51 = vcmp.eq.f32.partialorder %v47, inf
  %v52 = vsel %vm51, %v47, %v50
  %vm53 = vcmp.eq.f32.partialorder %v47, 0.0
  %v54 = vand.u32 %v47, 2147483648
  %v55 = vsel %vm53, %v54, %v52
  %v56 = vrsqrt.pop %v48
  %v57 = vmul.f32 %v48, %v56
  %vm58 = vcmp.eq.f32.partialorder %v48, inf
  %v59 = vsel %vm58, %v48, %v57
  %vm60 = vcmp.eq.f32.partialorder %v48, 0.0
  %v61 = vand.u32 %v48, 2147483648
  %v62 = vsel %vm60, %v61, %v59
  %v64 = vlaneseq
  %v65 = vshrl.u32 %v64, 7
  %v66 = vsub.s32 0, %v65
  %v67 = vrot.slane %v25, %v66
  %v69 = vmul.f32 %v67, %v37
  %v70 = vmul.f32 %v67, %v38
  %v71 = vadd.f32 %v55, 1e-06
  %v72 = vadd.f32 %v62, 1e-06
  %v73 = vrcp.pop %v71
  %v74 = vmul.f32 %v69, %v73
  %v75 = vrcp.pop %v72
  %v76 = vmul.f32 %v70, %v75
  %v78 = vlaneseq
  %v79 = vshrl.u32 %v78, 7
  %v80 = vsub.s32 0, %v79
  %v81 = vrot.slane %v26, %v80
  %v83 = vadd.f32 %v74, %v81
  %v84 = vadd.f32 %v76, %v81
  %v85 = vpack.c.bf16 %v84, %v83
  %v86 = vld [vmem:[%s3] sm:$0xf]
  %v87 = vld [vmem:[%s3 + $0x4] sm:$0xf]
  %v88 = vld [vmem:[%s3 + $0x8] sm:$0xf]
  %v89 = vld [vmem:[%s3 + $0xc] sm:$0xf]
  %v90 = vld [vmem:[%s4] sm:$0x1]
  %v92 = vlaneseq
  %v93 = vshrl.u32 %v92, 7
  %v94 = vsub.s32 0, %v93
  %v95 = vrot.slane %v90, %v94
  %v101 = vunpack.c.l.b16 %v86
  %v102 = vunpack.c.l.b16 %v87
  %v103 = vunpack.c.l.b16 %v88
  %v104 = vunpack.c.l.b16 %v89
  %v105 = vpack.c.b16 %v102, %v101
  %v106 = vpack.c.b16 %v104, %v103
  %v110 = vsel %vm27, %v85, 0
  %112 = vmatprep.subr.bf16.mxu0 0
  %113 = vmatpush1.bf16.msra.mxu0 %v105
  %114 = vmatprep.subr.bf16.mxu0 0
  %115 = vmatpush1.bf16.msra.mxu0 %v106
  %116 = vmatprep.subr.bf16.mxu0 0
  %117 = vmatpush1.bf16.msra.mxu0 0
  %118 = vmatprep.subr.bf16.mxu0 0
  %119 = vmatpush1.bf16.msra.mxu0 0
  %120 = vmatprep.subr.bf16.mxu0 0
  %121 = vmatpush1.bf16.msra.mxu0 0
  %122 = vmatprep.subr.bf16.mxu0 0
  %123 = vmatpush1.bf16.msra.mxu0 0
  %124 = vmatprep.subr.bf16.mxu0 0
  %125 = vmatpush1.bf16.msra.mxu0 0
  %126 = vmatprep.subr.bf16.mxu0 0
  %127 = vmatpush1.bf16.msra.mxu0 0
  %128 = vmatprep.subr.bf16.mxu0 0
  %129 = vmatpush1.bf16.msra.mxu0 0
  %130 = vmatprep.subr.bf16.mxu0 0
  %131 = vmatpush1.bf16.msra.mxu0 0
  %132 = vmatprep.subr.bf16.mxu0 0
  %133 = vmatpush1.bf16.msra.mxu0 0
  %134 = vmatprep.subr.bf16.mxu0 0
  %135 = vmatpush1.bf16.msra.mxu0 0
  %136 = vmatprep.subr.bf16.mxu0 0
  %137 = vmatpush1.bf16.msra.mxu0 0
  %138 = vmatprep.subr.bf16.mxu0 0
  %139 = vmatpush1.bf16.msra.mxu0 0
  %140 = vmatprep.subr.bf16.mxu0 0
  %141 = vmatpush1.bf16.msra.mxu0 0
  %142 = vmatprep.subr.bf16.mxu0 0
  %143 = vmatpush1.bf16.msra.mxu0 0
  %144 = vmatprep.mubr.bf16.mxu0 0
  %145 = vmatmul.mubr.bf16.gmra.mrb[0].mxu0 %v110
  %v146 = vpop.f32.mrb[0].mxu0
  %v147 = vadd.f32 %v95, %v146
  %v148 = vpop.f32.mrb[0].mxu0
  %v149 = vpop.f32.mrb[0].mxu0
  %v150 = vadd.f32 %v95, %v149
  %v151 = vpop.f32.mrb[0].mxu0
  %152 = vdwg.mxu0
  %v153 = vpack.c.bf16 %v150, %v147
  %v155 = vunpack.c.l.b16 %v153
  %v156 = vunpack.c.h.b16 %v153
  %v157 = vpack.c.b16 %v155, %v155
  %v158 = vpack.c.b16 %v156, %v156
  %vm161 = vcmask 781312
  %162 = vst.msk [vmem:[%s5] sm:$0xf] %vm161, %v157
  %163 = vst.msk [vmem:[%s5 + $0x4] sm:$0xf] %vm161, %v158
  // Predicated region
  $region22: #{gpt2_forward.9} parent=0 // pred_check
    _
  $region23: #{gpt2_forward.9} parent=0 // pred_check_branch
    %165 = sbr.rel (0) target = $region25
  $region24: #{gpt2_forward.9} parent=0 // pred_region
    _
  $region25: #{gpt2_forward.9} parent=0 // pred_fallthru
    _
  // Predicated region
  $region26: #{gpt2_forward.9} parent=0 // pred_check
    _
  $region27: #{gpt2_forward.9} parent=0 // pred_check_branch
    %167 = sbr.rel (0) target = $region29
  $region28: #{gpt2_forward.9} parent=0 // pred_region
    _
  $region29: #{gpt2_forward.9} parent=0 // pred_fallthru
    _

// kernel: gpt2_forward.15
$region0: #{gpt2_forward.15}
  #allocation0 [shape = 'u32[]', space=smem, size = 0x4, offset = 0x4, fixed_abs, tag = 'smem constant byte address 0x4 - core index']
  #allocation1 [shape = 'u32[144,128]{1,0:T(1,128)}', space=vmem, size = 0x12000, scoped, tag = 'internal scratch']
  %s0 = inlined_call_operand.vmem [shape: bf16[16,32], index: 0, kind: input, shape index: {}]
  %s1 = inlined_call_operand.vmem [shape: f32[1,32], index: 1, kind: input, shape index: {}]
  %s2 = inlined_call_operand.vmem [shape: f32[1,32], index: 2, kind: input, shape index: {}]
  %s3 = inlined_call_operand.vmem [shape: bf16[32,32], index: 3, kind: input, shape index: {}]
  %s4 = inlined_call_operand.vmem [shape: f32[1,32], index: 4, kind: input, shape index: {}]
  %s5 = inlined_call_operand.vmem [shape: bf16[16,32], index: 5, kind: output, shape index: {}]
  %s6 = sld [smem:[#allocation0]]
  $region30: #{gpt2_forward.15} parent=0
    _
  %s8 = ssub.s32 1, %s6
  %s9 = scalar_select 0, %s8, %s6
  // Predicated region
  $region2: #{gpt2_forward.15} parent=0 // pred_check
    _
  $region3: #{gpt2_forward.15} parent=0 // pred_check_branch
    %11 = sbr.rel (0) target = $region5
  $region4: #{gpt2_forward.15} parent=0 // pred_region
    _
  $region5: #{gpt2_forward.15} parent=0 // pred_fallthru
    _
  // Predicated region
  $region6: #{gpt2_forward.15} parent=0 // pred_check
    _
  $region7: #{gpt2_forward.15} parent=0 // pred_check_branch
    %13 = sbr.rel (0) target = $region9
  $region8: #{gpt2_forward.15} parent=0 // pred_region
    _
  $region9: #{gpt2_forward.15} parent=0 // pred_fallthru
    _
  // Predicated region
  $region10: #{gpt2_forward.15} parent=0 // pred_check
    _
  $region11: #{gpt2_forward.15} parent=0 // pred_check_branch
    %15 = sbr.rel (0) target = $region13
  $region12: #{gpt2_forward.15} parent=0 // pred_region
    _
  $region13: #{gpt2_forward.15} parent=0 // pred_fallthru
    _
  // Predicated region
  $region14: #{gpt2_forward.15} parent=0 // pred_check
    _
  $region15: #{gpt2_forward.15} parent=0 // pred_check_branch
    %17 = sbr.rel (0) target = $region17
  $region16: #{gpt2_forward.15} parent=0 // pred_region
    _
  $region17: #{gpt2_forward.15} parent=0 // pred_fallthru
    _
  // Predicated region
  $region18: #{gpt2_forward.15} parent=0 // pred_check
    _
  $region19: #{gpt2_forward.15} parent=0 // pred_check_branch
    %19 = sbr.rel (0) target = $region21
  $region20: #{gpt2_forward.15} parent=0 // pred_region
    _
  $region21: #{gpt2_forward.15} parent=0 // pred_fallthru
    _
  %v21 = vld [vmem:[%s0] sm:$0xf]
  %v22 = vld [vmem:[%s0 + $0x4] sm:$0xf]
  %v23 = vunpack.c.l.bf16 %v21
  %v24 = vunpack.c.l.bf16 %v22
  %v25 = vld [vmem:[%s1] sm:$0x1]
  %v26 = vld [vmem:[%s2] sm:$0x1]
  %vm27 = vcmask 261120
  %v28 = vsel %vm27, %v23, 0.0
  %29 = vadd.xlane.f32.xlu0 %v28
  %v30 = vpop.xlane.xlu0 %29
  %v31 = vsel %vm27, %v24, 0.0
  %32 = vadd.xlane.f32.xlu0 %v31
  %v33 = vpop.xlane.xlu0 %32
  %v34 = vrcp.pop 32.0
  %v35 = vmul.f32 %v30, %v34
  %v36 = vmul.f32 %v33, %v34
  %v37 = vsub.f32 %v23, %v35
  %v38 = vsub.f32 %v24, %v36
  %v39 = vmul.f32 %v37, %v37
  %v40 = vmul.f32 %v38, %v38
  %v41 = vsel %vm27, %v39, 0.0
  %42 = vadd.xlane.f32.xlu0 %v41
  %v43 = vpop.xlane.xlu0 %42
  %v44 = vsel %vm27, %v40, 0.0
  %45 = vadd.xlane.f32.xlu0 %v44
  %v46 = vpop.xlane.xlu0 %45
  %v47 = vmul.f32 %v43, 0.032258064
  %v48 = vmul.f32 %v46, 0.032258064
  %v49 = vrsqrt.pop %v47
  %v50 = vmul.f32 %v47, %v49
  %vm51 = vcmp.eq.f32.partialorder %v47, inf
  %v52 = vsel %vm51, %v47, %v50
  %vm53 = vcmp.eq.f32.partialorder %v47, 0.0
  %v54 = vand.u32 %v47, 2147483648
  %v55 = vsel %vm53, %v54, %v52
  %v56 = vrsqrt.pop %v48
  %v57 = vmul.f32 %v48, %v56
  %vm58 = vcmp.eq.f32.partialorder %v48, inf
  %v59 = vsel %vm58, %v48, %v57
  %vm60 = vcmp.eq.f32.partialorder %v48, 0.0
  %v61 = vand.u32 %v48, 2147483648
  %v62 = vsel %vm60, %v61, %v59
  %v64 = vlaneseq
  %v65 = vshrl.u32 %v64, 7
  %v66 = vsub.s32 0, %v65
  %v67 = vrot.slane %v25, %v66
  %v69 = vmul.f32 %v67, %v37
  %v70 = vmul.f32 %v67, %v38
  %v71 = vadd.f32 %v55, 1e-06
  %v72 = vadd.f32 %v62, 1e-06
  %v73 = vrcp.pop %v71
  %v74 = vmul.f32 %v69, %v73
  %v75 = vrcp.pop %v72
  %v76 = vmul.f32 %v70, %v75
  %v78 = vlaneseq
  %v79 = vshrl.u32 %v78, 7
  %v80 = vsub.s32 0, %v79
  %v81 = vrot.slane %v26, %v80
  %v83 = vadd.f32 %v74, %v81
  %v84 = vadd.f32 %v76, %v81
  %v85 = vpack.c.bf16 %v84, %v83
  %v86 = vld [vmem:[%s3] sm:$0xf]
  %v87 = vld [vmem:[%s3 + $0x4] sm:$0xf]
  %v88 = vld [vmem:[%s3 + $0x8] sm:$0xf]
  %v89 = vld [vmem:[%s3 + $0xc] sm:$0xf]
  %v90 = vld [vmem:[%s4] sm:$0x1]
  %v92 = vlaneseq
  %v93 = vshrl.u32 %v92, 7
  %v94 = vsub.s32 0, %v93
  %v95 = vrot.slane %v90, %v94
  %v101 = vunpack.c.l.b16 %v86
  %v102 = vunpack.c.l.b16 %v87
  %v103 = vunpack.c.l.b16 %v88
  %v104 = vunpack.c.l.b16 %v89
  %v105 = vpack.c.b16 %v102, %v101
  %v106 = vpack.c.b16 %v104, %v103
  %v110 = vsel %vm27, %v85, 0
  %112 = vmatprep.subr.bf16.mxu0 0
  %113 = vmatpush1.bf16.msra.mxu0 %v105
  %114 = vmatprep.subr.bf16.mxu0 0
  %115 = vmatpush1.bf16.msra.mxu0 %v106
  %116 = vmatprep.subr.bf16.mxu0 0
  %117 = vmatpush1.bf16.msra.mxu0 0
  %118 = vmatprep.subr.bf16.mxu0 0
  %119 = vmatpush1.bf16.msra.mxu0 0
  %120 = vmatprep.subr.bf16.mxu0 0
  %121 = vmatpush1.bf16.msra.mxu0 0
  %122 = vmatprep.subr.bf16.mxu0 0
  %123 = vmatpush1.bf16.msra.mxu0 0
  %124 = vmatprep.subr.bf16.mxu0 0
  %125 = vmatpush1.bf16.msra.mxu0 0
  %126 = vmatprep.subr.bf16.mxu0 0
  %127 = vmatpush1.bf16.msra.mxu0 0
  %128 = vmatprep.subr.bf16.mxu0 0
  %129 = vmatpush1.bf16.msra.mxu0 0
  %130 = vmatprep.subr.bf16.mxu0 0
  %131 = vmatpush1.bf16.msra.mxu0 0
  %132 = vmatprep.subr.bf16.mxu0 0
  %133 = vmatpush1.bf16.msra.mxu0 0
  %134 = vmatprep.subr.bf16.mxu0 0
  %135 = vmatpush1.bf16.msra.mxu0 0
  %136 = vmatprep.subr.bf16.mxu0 0
  %137 = vmatpush1.bf16.msra.mxu0 0
  %138 = vmatprep.subr.bf16.mxu0 0
  %139 = vmatpush1.bf16.msra.mxu0 0
  %140 = vmatprep.subr.bf16.mxu0 0
  %141 = vmatpush1.bf16.msra.mxu0 0
  %142 = vmatprep.subr.bf16.mxu0 0
  %143 = vmatpush1.bf16.msra.mxu0 0
  %144 = vmatprep.mubr.bf16.mxu0 0
  %145 = vmatmul.mubr.bf16.gmra.mrb[0].mxu0 %v110
  %v146 = vpop.f32.mrb[0].mxu0
  %v147 = vadd.f32 %v95, %v146
  %v148 = vpop.f32.mrb[0].mxu0
  %v149 = vpop.f32.mrb[0].mxu0
  %v150 = vadd.f32 %v95, %v149
  %v151 = vpop.f32.mrb[0].mxu0
  %152 = vdwg.mxu0
  %v153 = vadd.f32 %v23, %v147
  %v154 = vadd.f32 %v24, %v150
  %v155 = vpack.c.bf16 %v154, %v153
  %v157 = vunpack.c.l.b16 %v155
  %v158 = vunpack.c.h.b16 %v155
  %v159 = vpack.c.b16 %v157, %v157
  %v160 = vpack.c.b16 %v158, %v158
  %vm163 = vcmask 257024
  %164 = vst.msk [vmem:[%s5] sm:$0xf] %vm163, %v159
  %165 = vst.msk [vmem:[%s5 + $0x4] sm:$0xf] %vm163, %v160
  // Predicated region
  $region22: #{gpt2_forward.15} parent=0 // pred_check
    _
  $region23: #{gpt2_forward.15} parent=0 // pred_check_branch
    %167 = sbr.rel (0) target = $region25
  $region24: #{gpt2_forward.15} parent=0 // pred_region
    _
  $region25: #{gpt2_forward.15} parent=0 // pred_fallthru
    _
  // Predicated region
  $region26: #{gpt2_forward.15} parent=0 // pred_check
    _
  $region27: #{gpt2_forward.15} parent=0 // pred_check_branch
    %169 = sbr.rel (0) target = $region29
  $region28: #{gpt2_forward.15} parent=0 // pred_region
    _
  $region29: #{gpt2_forward.15} parent=0 // pred_fallthru
    _

// kernel: gpt2_forward.17
$region0: #{gpt2_forward.17}
  #allocation0 [shape = 'u32[]', space=smem, size = 0x4, offset = 0x4, fixed_abs, tag = 'smem constant byte address 0x4 - core index']
  #allocation1 [shape = 'u32[144,128]{1,0:T(1,128)}', space=vmem, size = 0x12000, scoped, tag = 'internal scratch']
  %s0 = inlined_call_operand.vmem [shape: bf16[16,32], index: 0, kind: input, shape index: {}]
  %s1 = inlined_call_operand.vmem [shape: f32[1,32], index: 1, kind: input, shape index: {}]
  %s2 = inlined_call_operand.vmem [shape: f32[1,32], index: 2, kind: input, shape index: {}]
  %s3 = inlined_call_operand.vmem [shape: bf16[32,128], index: 3, kind: input, shape index: {}]
  %s4 = inlined_call_operand.vmem [shape: f32[1,128], index: 4, kind: input, shape index: {}]
  %s5 = inlined_call_operand.vmem [shape: f32[16,128], index: 5, kind: output, shape index: {}]
  %s6 = sld [smem:[#allocation0]]
  $region30: #{gpt2_forward.17} parent=0
    _
  %s8 = ssub.s32 1, %s6
  %s9 = scalar_select 0, %s8, %s6
  // Predicated region
  $region2: #{gpt2_forward.17} parent=0 // pred_check
    _
  $region3: #{gpt2_forward.17} parent=0 // pred_check_branch
    %11 = sbr.rel (0) target = $region5
  $region4: #{gpt2_forward.17} parent=0 // pred_region
    _
  $region5: #{gpt2_forward.17} parent=0 // pred_fallthru
    _
  // Predicated region
  $region6: #{gpt2_forward.17} parent=0 // pred_check
    _
  $region7: #{gpt2_forward.17} parent=0 // pred_check_branch
    %13 = sbr.rel (0) target = $region9
  $region8: #{gpt2_forward.17} parent=0 // pred_region
    _
  $region9: #{gpt2_forward.17} parent=0 // pred_fallthru
    _
  // Predicated region
  $region10: #{gpt2_forward.17} parent=0 // pred_check
    _
  $region11: #{gpt2_forward.17} parent=0 // pred_check_branch
    %15 = sbr.rel (0) target = $region13
  $region12: #{gpt2_forward.17} parent=0 // pred_region
    _
  $region13: #{gpt2_forward.17} parent=0 // pred_fallthru
    _
  // Predicated region
  $region14: #{gpt2_forward.17} parent=0 // pred_check
    _
  $region15: #{gpt2_forward.17} parent=0 // pred_check_branch
    %17 = sbr.rel (0) target = $region17
  $region16: #{gpt2_forward.17} parent=0 // pred_region
    _
  $region17: #{gpt2_forward.17} parent=0 // pred_fallthru
    _
  // Predicated region
  $region18: #{gpt2_forward.17} parent=0 // pred_check
    _
  $region19: #{gpt2_forward.17} parent=0 // pred_check_branch
    %19 = sbr.rel (0) target = $region21
  $region20: #{gpt2_forward.17} parent=0 // pred_region
    _
  $region21: #{gpt2_forward.17} parent=0 // pred_fallthru
    _
  %v21 = vld [vmem:[%s0] sm:$0xf]
  %v22 = vld [vmem:[%s0 + $0x4] sm:$0xf]
  %v23 = vunpack.c.l.bf16 %v21
  %v24 = vunpack.c.l.bf16 %v22
  %v25 = vld [vmem:[%s1] sm:$0x1]
  %v26 = vld [vmem:[%s2] sm:$0x1]
  %vm27 = vcmask 261120
  %v28 = vsel %vm27, %v23, 0.0
  %29 = vadd.xlane.f32.xlu0 %v28
  %v30 = vpop.xlane.xlu0 %29
  %v31 = vsel %vm27, %v24, 0.0
  %32 = vadd.xlane.f32.xlu0 %v31
  %v33 = vpop.xlane.xlu0 %32
  %v34 = vrcp.pop 32.0
  %v35 = vmul.f32 %v30, %v34
  %v36 = vmul.f32 %v33, %v34
  %v37 = vsub.f32 %v23, %v35
  %v38 = vsub.f32 %v24, %v36
  %v39 = vmul.f32 %v37, %v37
  %v40 = vmul.f32 %v38, %v38
  %v41 = vsel %vm27, %v39, 0.0
  %42 = vadd.xlane.f32.xlu0 %v41
  %v43 = vpop.xlane.xlu0 %42
  %v44 = vsel %vm27, %v40, 0.0
  %45 = vadd.xlane.f32.xlu0 %v44
  %v46 = vpop.xlane.xlu0 %45
  %v47 = vmul.f32 %v43, 0.032258064
  %v48 = vmul.f32 %v46, 0.032258064
  %v49 = vrsqrt.pop %v47
  %v50 = vmul.f32 %v47, %v49
  %vm51 = vcmp.eq.f32.partialorder %v47, inf
  %v52 = vsel %vm51, %v47, %v50
  %vm53 = vcmp.eq.f32.partialorder %v47, 0.0
  %v54 = vand.u32 %v47, 2147483648
  %v55 = vsel %vm53, %v54, %v52
  %v56 = vrsqrt.pop %v48
  %v57 = vmul.f32 %v48, %v56
  %vm58 = vcmp.eq.f32.partialorder %v48, inf
  %v59 = vsel %vm58, %v48, %v57
  %vm60 = vcmp.eq.f32.partialorder %v48, 0.0
  %v61 = vand.u32 %v48, 2147483648
  %v62 = vsel %vm60, %v61, %v59
  %v64 = vlaneseq
  %v65 = vshrl.u32 %v64, 7
  %v66 = vsub.s32 0, %v65
  %v67 = vrot.slane %v25, %v66
  %v69 = vmul.f32 %v67, %v37
  %v70 = vmul.f32 %v67, %v38
  %v71 = vadd.f32 %v55, 1e-06
  %v72 = vadd.f32 %v62, 1e-06
  %v73 = vrcp.pop %v71
  %v74 = vmul.f32 %v69, %v73
  %v75 = vrcp.pop %v72
  %v76 = vmul.f32 %v70, %v75
  %v78 = vlaneseq
  %v79 = vshrl.u32 %v78, 7
  %v80 = vsub.s32 0, %v79
  %v81 = vrot.slane %v26, %v80
  %v83 = vadd.f32 %v74, %v81
  %v84 = vadd.f32 %v76, %v81
  %v85 = vpack.c.bf16 %v84, %v83
  %v86 = vld [vmem:[%s3] sm:$0xf]
  %v87 = vld [vmem:[%s3 + $0x4] sm:$0xf]
  %v88 = vld [vmem:[%s3 + $0x8] sm:$0xf]
  %v89 = vld [vmem:[%s3 + $0xc] sm:$0xf]
  %v90 = vld [vmem:[%s4] sm:$0x1]
  %v92 = vlaneseq
  %v93 = vshrl.u32 %v92, 7
  %v94 = vsub.s32 0, %v93
  %v95 = vrot.slane %v90, %v94
  %v101 = vunpack.c.l.b16 %v86
  %v102 = vunpack.c.l.b16 %v87
  %v103 = vunpack.c.l.b16 %v88
  %v104 = vunpack.c.l.b16 %v89
  %v105 = vpack.c.b16 %v102, %v101
  %v106 = vpack.c.b16 %v104, %v103
  %v110 = vsel %vm27, %v85, 0
  %112 = vmatprep.subr.bf16.mxu0 0
  %113 = vmatpush1.bf16.msra.mxu0 %v105
  %114 = vmatprep.subr.bf16.mxu0 0
  %115 = vmatpush1.bf16.msra.mxu0 %v106
  %116 = vmatprep.subr.bf16.mxu0 0
  %117 = vmatpush1.bf16.msra.mxu0 0
  %118 = vmatprep.subr.bf16.mxu0 0
  %119 = vmatpush1.bf16.msra.mxu0 0
  %120 = vmatprep.subr.bf16.mxu0 0
  %121 = vmatpush1.bf16.msra.mxu0 0
  %122 = vmatprep.subr.bf16.mxu0 0
  %123 = vmatpush1.bf16.msra.mxu0 0
  %124 = vmatprep.subr.bf16.mxu0 0
  %125 = vmatpush1.bf16.msra.mxu0 0
  %126 = vmatprep.subr.bf16.mxu0 0
  %127 = vmatpush1.bf16.msra.mxu0 0
  %128 = vmatprep.subr.bf16.mxu0 0
  %129 = vmatpush1.bf16.msra.mxu0 0
  %130 = vmatprep.subr.bf16.mxu0 0
  %131 = vmatpush1.bf16.msra.mxu0 0
  %132 = vmatprep.subr.bf16.mxu0 0
  %133 = vmatpush1.bf16.msra.mxu0 0
  %134 = vmatprep.subr.bf16.mxu0 0
  %135 = vmatpush1.bf16.msra.mxu0 0
  %136 = vmatprep.subr.bf16.mxu0 0
  %137 = vmatpush1.bf16.msra.mxu0 0
  %138 = vmatprep.subr.bf16.mxu0 0
  %139 = vmatpush1.bf16.msra.mxu0 0
  %140 = vmatprep.subr.bf16.mxu0 0
  %141 = vmatpush1.bf16.msra.mxu0 0
  %142 = vmatprep.subr.bf16.mxu0 0
  %143 = vmatpush1.bf16.msra.mxu0 0
  %144 = vmatprep.mubr.bf16.mxu0 0
  %145 = vmatmul.mubr.bf16.gmra.mrb[0].mxu0 %v110
  %v146 = vpop.f32.mrb[0].mxu0
  %v147 = vadd.f32 %v95, %v146
  %v148 = vpop.f32.mrb[0].mxu0
  %v149 = vpop.f32.mrb[0].mxu0
  %v150 = vadd.f32 %v95, %v149
  %v151 = vpop.f32.mrb[0].mxu0
  %152 = vdwg.mxu0
  %153 = vst [vmem:[%s5] sm:$0xff] %v147
  %154 = vst [vmem:[%s5 + $0x8] sm:$0xff] %v150
  // Predicated region
  $region22: #{gpt2_forward.17} parent=0 // pred_check
    _
  $region23: #{gpt2_forward.17} parent=0 // pred_check_branch
    %156 = sbr.rel (0) target = $region25
  $region24: #{gpt2_forward.17} parent=0 // pred_region
    _
  $region25: #{gpt2_forward.17} parent=0 // pred_fallthru
    _
  // Predicated region
  $region26: #{gpt2_forward.17} parent=0 // pred_check
    _
  $region27: #{gpt2_forward.17} parent=0 // pred_check_branch
    %158 = sbr.rel (0) target = $region29
  $region28: #{gpt2_forward.17} parent=0 // pred_region
    _
  $region29: #{gpt2_forward.17} parent=0 // pred_fallthru
    _

// kernel: gpt2_forward.11
$region0: #{gpt2_forward.11}
  #allocation0 [shape = 'u32[]', space=smem, size = 0x4, offset = 0x4, fixed_abs, tag = 'smem constant byte address 0x4 - core index']
  #allocation1 [shape = 'u32[144,128]{1,0:T(1,128)}', space=vmem, size = 0x12000, scoped, tag = 'internal scratch']
  %s0 = inlined_call_operand.vmem [shape: bf16[16,32], index: 0, kind: input, shape index: {}]
  %s1 = inlined_call_operand.vmem [shape: f32[1,32], index: 1, kind: input, shape index: {}]
  %s2 = inlined_call_operand.vmem [shape: f32[1,32], index: 2, kind: input, shape index: {}]
  %s3 = inlined_call_operand.vmem [shape: bf16[32,1024], index: 3, kind: input, shape index: {}]
  %s4 = inlined_call_operand.vmem [shape: f32[1,1024], index: 4, kind: input, shape index: {}]
  %s5 = inlined_call_operand.vmem [shape: bf16[1024,32], index: 5, kind: input, shape index: {}]
  %s6 = inlined_call_operand.vmem [shape: f32[1,32], index: 6, kind: input, shape index: {}]
  %s7 = inlined_call_operand.vmem [shape: bf16[16,32], index: 7, kind: output, shape index: {}]
  %s8 = sld [smem:[#allocation0]]
  $region38: #{gpt2_forward.11} parent=0
    _
  %s10 = ssub.s32 1, %s8
  %s11 = scalar_select 0, %s10, %s8
  // Predicated region
  $region2: #{gpt2_forward.11} parent=0 // pred_check
    _
  $region3: #{gpt2_forward.11} parent=0 // pred_check_branch
    %13 = sbr.rel (0) target = $region5
  $region4: #{gpt2_forward.11} parent=0 // pred_region
    _
  $region5: #{gpt2_forward.11} parent=0 // pred_fallthru
    _
  // Predicated region
  $region6: #{gpt2_forward.11} parent=0 // pred_check
    _
  $region7: #{gpt2_forward.11} parent=0 // pred_check_branch
    %15 = sbr.rel (0) target = $region9
  $region8: #{gpt2_forward.11} parent=0 // pred_region
    _
  $region9: #{gpt2_forward.11} parent=0 // pred_fallthru
    _
  // Predicated region
  $region10: #{gpt2_forward.11} parent=0 // pred_check
    _
  $region11: #{gpt2_forward.11} parent=0 // pred_check_branch
    %17 = sbr.rel (0) target = $region13
  $region12: #{gpt2_forward.11} parent=0 // pred_region
    _
  $region13: #{gpt2_forward.11} parent=0 // pred_fallthru
    _
  // Predicated region
  $region14: #{gpt2_forward.11} parent=0 // pred_check
    _
  $region15: #{gpt2_forward.11} parent=0 // pred_check_branch
    %19 = sbr.rel (0) target = $region17
  $region16: #{gpt2_forward.11} parent=0 // pred_region
    _
  $region17: #{gpt2_forward.11} parent=0 // pred_fallthru
    _
  // Predicated region
  $region18: #{gpt2_forward.11} parent=0 // pred_check
    _
  $region19: #{gpt2_forward.11} parent=0 // pred_check_branch
    %21 = sbr.rel (0) target = $region21
  $region20: #{gpt2_forward.11} parent=0 // pred_region
    _
  $region21: #{gpt2_forward.11} parent=0 // pred_fallthru
    _
  // Predicated region
  $region22: #{gpt2_forward.11} parent=0 // pred_check
    _
  $region23: #{gpt2_forward.11} parent=0 // pred_check_branch
    %23 = sbr.rel (0) target = $region25
  $region24: #{gpt2_forward.11} parent=0 // pred_region
    _
  $region25: #{gpt2_forward.11} parent=0 // pred_fallthru
    _
  // Predicated region
  $region26: #{gpt2_forward.11} parent=0 // pred_check
    _
  $region27: #{gpt2_forward.11} parent=0 // pred_check_branch
    %25 = sbr.rel (0) target = $region29
  $region28: #{gpt2_forward.11} parent=0 // pred_region
    _
  $region29: #{gpt2_forward.11} parent=0 // pred_fallthru
    _
  %v27 = vld [vmem:[%s0] sm:$0xf]
  %v28 = vld [vmem:[%s0 + $0x4] sm:$0xf]
  %v29 = vunpack.c.l.bf16 %v27
  %v30 = vunpack.c.l.bf16 %v28
  %v31 = vld [vmem:[%s1] sm:$0x1]
  %v32 = vld [vmem:[%s2] sm:$0x1]
  %vm33 = vcmask 261120
  %v34 = vsel %vm33, %v29, 0.0
  %35 = vadd.xlane.f32.xlu0 %v34
  %v36 = vpop.xlane.xlu0 %35
  %v37 = vsel %vm33, %v30, 0.0
  %38 = vadd.xlane.f32.xlu0 %v37
  %v39 = vpop.xlane.xlu0 %38
  %v40 = vrcp.pop 32.0
  %v41 = vmul.f32 %v36, %v40
  %v42 = vmul.f32 %v39, %v40
  %v43 = vsub.f32 %v29, %v41
  %v44 = vsub.f32 %v30, %v42
  %v45 = vmul.f32 %v43, %v43
  %v46 = vmul.f32 %v44, %v44
  %v47 = vsel %vm33, %v45, 0.0
  %48 = vadd.xlane.f32.xlu0 %v47
  %v49 = vpop.xlane.xlu0 %48
  %v50 = vsel %vm33, %v46, 0.0
  %51 = vadd.xlane.f32.xlu0 %v50
  %v52 = vpop.xlane.xlu0 %51
  %v53 = vmul.f32 %v49, 0.032258064
  %v54 = vmul.f32 %v52, 0.032258064
  %v55 = vrsqrt.pop %v53
  %v56 = vmul.f32 %v53, %v55
  %vm57 = vcmp.eq.f32.partialorder %v53, inf
  %v58 = vsel %vm57, %v53, %v56
  %vm59 = vcmp.eq.f32.partialorder %v53, 0.0
  %v60 = vand.u32 %v53, 2147483648
  %v61 = vsel %vm59, %v60, %v58
  %v62 = vrsqrt.pop %v54
  %v63 = vmul.f32 %v54, %v62
  %vm64 = vcmp.eq.f32.partialorder %v54, inf
  %v65 = vsel %vm64, %v54, %v63
  %vm66 = vcmp.eq.f32.partialorder %v54, 0.0
  %v67 = vand.u32 %v54, 2147483648
  %v68 = vsel %vm66, %v67, %v65
  %v70 = vlaneseq
  %v71 = vshrl.u32 %v70, 7
  %v72 = vsub.s32 0, %v71
  %v73 = vrot.slane %v31, %v72
  %v75 = vmul.f32 %v73, %v43
  %v76 = vmul.f32 %v73, %v44
  %v77 = vadd.f32 %v61, 1e-06
  %v78 = vadd.f32 %v68, 1e-06
  %v79 = vrcp.pop %v77
  %v80 = vmul.f32 %v75, %v79
  %v81 = vrcp.pop %v78
  %v82 = vmul.f32 %v76, %v81
  %v84 = vlaneseq
  %v85 = vshrl.u32 %v84, 7
  %v86 = vsub.s32 0, %v85
  %v87 = vrot.slane %v32, %v86
  %v89 = vadd.f32 %v80, %v87
  %v90 = vadd.f32 %v82, %v87
  %v91 = vpack.c.bf16 %v90, %v89
  %v92 = vld [vmem:[%s3] sm:$0xff]
  %v93 = vld [vmem:[%s3 + $0x8] sm:$0xff]
  %v94 = vld [vmem:[%s3 + $0x10] sm:$0xff]
  %v95 = vld [vmem:[%s3 + $0x18] sm:$0xff]
  %v96 = vld [vmem:[%s3 + $0x20] sm:$0xff]
  %v97 = vld [vmem:[%s3 + $0x28] sm:$0xff]
  %v98 = vld [vmem:[%s3 + $0x30] sm:$0xff]
  %v99 = vld [vmem:[%s3 + $0x38] sm:$0xff]
  %v100 = vld [vmem:[%s3 + $0x40] sm:$0xff]
  %v101 = vld [vmem:[%s3 + $0x48] sm:$0xff]
  %v102 = vld [vmem:[%s3 + $0x50] sm:$0xff]
  %v103 = vld [vmem:[%s3 + $0x58] sm:$0xff]
  %v104 = vld [vmem:[%s3 + $0x60] sm:$0xff]
  %v105 = vld [vmem:[%s3 + $0x68] sm:$0xff]
  %v106 = vld [vmem:[%s3 + $0x70] sm:$0xff]
  %v107 = vld [vmem:[%s3 + $0x78] sm:$0xff]
  %v108 = vld [vmem:[%s4] sm:$0xff]
  %v110 = vlaneseq
  %v111 = vshrl.u32 %v110, 7
  %v112 = vsub.s32 0, %v111
  %v113 = vrot.slane %v108, %v112
  %v114 = vlaneseq
  %v115 = vshrl.u32 %v114, 7
  %v116 = vsub.s32 1, %v115
  %v117 = vrot.slane %v108, %v116
  %v118 = vlaneseq
  %v119 = vshrl.u32 %v118, 7
  %v120 = vsub.s32 2, %v119
  %v121 = vrot.slane %v108, %v120
  %v122 = vlaneseq
  %v123 = vshrl.u32 %v122, 7
  %v124 = vsub.s32 3, %v123
  %v125 = vrot.slane %v108, %v124
  %v126 = vlaneseq
  %v127 = vshrl.u32 %v126, 7
  %v128 = vsub.s32 4, %v127
  %v129 = vrot.slane %v108, %v128
  %v130 = vlaneseq
  %v131 = vshrl.u32 %v130, 7
  %v132 = vsub.s32 5, %v131
  %v133 = vrot.slane %v108, %v132
  %v134 = vlaneseq
  %v135 = vshrl.u32 %v134, 7
  %v136 = vsub.s32 6, %v135
  %v137 = vrot.slane %v108, %v136
  %v138 = vlaneseq
  %v139 = vshrl.u32 %v138, 7
  %v140 = vsub.s32 7, %v139
  %v141 = vrot.slane %v108, %v140
  %v166 = vunpack.c.l.b16 %v92
  %v167 = vunpack.c.h.b16 %v92
  %v168 = vunpack.c.l.b16 %v93
  %v169 = vunpack.c.h.b16 %v93
  %v170 = vunpack.c.l.b16 %v94
  %v171 = vunpack.c.h.b16 %v94
  %v172 = vunpack.c.l.b16 %v95
  %v173 = vunpack.c.h.b16 %v95
  %v174 = vunpack.c.l.b16 %v96
  %v175 = vunpack.c.h.b16 %v96
  %v176 = vunpack.c.l.b16 %v97
  %v177 = vunpack.c.h.b16 %v97
  %v178 = vunpack.c.l.b16 %v98
  %v179 = vunpack.c.h.b16 %v98
  %v180 = vunpack.c.l.b16 %v99
  %v181 = vunpack.c.h.b16 %v99
  %v182 = vunpack.c.l.b16 %v100
  %v183 = vunpack.c.h.b16 %v100
  %v184 = vunpack.c.l.b16 %v101
  %v185 = vunpack.c.h.b16 %v101
  %v186 = vunpack.c.l.b16 %v102
  %v187 = vunpack.c.h.b16 %v102
  %v188 = vunpack.c.l.b16 %v103
  %v189 = vunpack.c.h.b16 %v103
  %v190 = vunpack.c.l.b16 %v104
  %v191 = vunpack.c.h.b16 %v104
  %v192 = vunpack.c.l.b16 %v105
  %v193 = vunpack.c.h.b16 %v105
  %v194 = vunpack.c.l.b16 %v106
  %v195 = vunpack.c.h.b16 %v106
  %v196 = vunpack.c.l.b16 %v107
  %v197 = vunpack.c.h.b16 %v107
  %v198 = vpack.c.b16 %v174, %v166
  %v199 = vpack.c.b16 %v175, %v167
  %v200 = vpack.c.b16 %v176, %v168
  %v201 = vpack.c.b16 %v177, %v169
  %v202 = vpack.c.b16 %v178, %v170
  %v203 = vpack.c.b16 %v179, %v171
  %v204 = vpack.c.b16 %v180, %v172
  %v205 = vpack.c.b16 %v181, %v173
  %v206 = vpack.c.b16 %v190, %v182
  %v207 = vpack.c.b16 %v191, %v183
  %v208 = vpack.c.b16 %v192, %v184
  %v209 = vpack.c.b16 %v193, %v185
  %v210 = vpack.c.b16 %v194, %v186
  %v211 = vpack.c.b16 %v195, %v187
  %v212 = vpack.c.b16 %v196, %v188
  %v213 = vpack.c.b16 %v197, %v189
  %v231 = vsel %vm33, %v91, 0
  %233 = vmatprep.subr.bf16.mxu0 %v199
  %234 = vmatpush1.bf16.msra.mxu0 %v198
  %235 = vmatprep.subr.bf16.mxu0 %v207
  %236 = vmatpush1.bf16.msra.mxu0 %v206
  %237 = vmatprep.subr.bf16.mxu0 0
  %238 = vmatpush1.bf16.msra.mxu0 0
  %239 = vmatprep.subr.bf16.mxu0 0
  %240 = vmatpush1.bf16.msra.mxu0 0
  %241 = vmatprep.subr.bf16.mxu0 0
  %242 = vmatpush1.bf16.msra.mxu0 0
  %243 = vmatprep.subr.bf16.mxu0 0
  %244 = vmatpush1.bf16.msra.mxu0 0
  %245 = vmatprep.subr.bf16.mxu0 0
  %246 = vmatpush1.bf16.msra.mxu0 0
  %247 = vmatprep.subr.bf16.mxu0 0
  %248 = vmatpush1.bf16.msra.mxu0 0
  %249 = vmatprep.subr.bf16.mxu0 0
  %250 = vmatpush1.bf16.msra.mxu0 0
  %251 = vmatprep.subr.bf16.mxu0 0
  %252 = vmatpush1.bf16.msra.mxu0 0
  %253 = vmatprep.subr.bf16.mxu0 0
  %254 = vmatpush1.bf16.msra.mxu0 0
  %255 = vmatprep.subr.bf16.mxu0 0
  %256 = vmatpush1.bf16.msra.mxu0 0
  %257 = vmatprep.subr.bf16.mxu0 0
  %258 = vmatpush1.bf16.msra.mxu0 0
  %259 = vmatprep.subr.bf16.mxu0 0
  %260 = vmatpush1.bf16.msra.mxu0 0
  %261 = vmatprep.subr.bf16.mxu0 0
  %262 = vmatpush1.bf16.msra.mxu0 0
  %263 = vmatprep.subr.bf16.mxu0 0
  %264 = vmatpush1.bf16.msra.mxu0 0
  %265 = vmatprep.mubr.bf16.mxu0 0
  %266 = vmatmul.mubr.bf16.gmra.mrb[0].mxu0 %v231
  %v267 = vpop.f32.mrb[0].mxu0
  %v268 = vadd.f32 %v113, %v267
  %v269 = vpop.f32.mrb[0].mxu0
  %v270 = vadd.f32 %v117, %v269
  %v271 = vpop.f32.mrb[0].mxu0
  %v272 = vadd.f32 %v113, %v271
  %v273 = vpop.f32.mrb[0].mxu0
  %v274 = vadd.f32 %v117, %v273
  %275 = vdwg.mxu0
  %276 = vmatprep.subr.bf16.mxu0 %v201
  %277 = vmatpush1.bf16.msra.mxu0 %v200
  %278 = vmatprep.subr.bf16.mxu0 %v209
  %279 = vmatpush1.bf16.msra.mxu0 %v208
  %280 = vmatprep.subr.bf16.mxu0 0
  %281 = vmatpush1.bf16.msra.mxu0 0
  %282 = vmatprep.subr.bf16.mxu0 0
  %283 = vmatpush1.bf16.msra.mxu0 0
  %284 = vmatprep.subr.bf16.mxu0 0
  %285 = vmatpush1.bf16.msra.mxu0 0
  %286 = vmatprep.subr.bf16.mxu0 0
  %287 = vmatpush1.bf16.msra.mxu0 0
  %288 = vmatprep.subr.bf16.mxu0 0
  %289 = vmatpush1.bf16.msra.mxu0 0
  %290 = vmatprep.subr.bf16.mxu0 0
  %291 = vmatpush1.bf16.msra.mxu0 0
  %292 = vmatprep.subr.bf16.mxu0 0
  %293 = vmatpush1.bf16.msra.mxu0 0
  %294 = vmatprep.subr.bf16.mxu0 0
  %295 = vmatpush1.bf16.msra.mxu0 0
  %296 = vmatprep.subr.bf16.mxu0 0
  %297 = vmatpush1.bf16.msra.mxu0 0
  %298 = vmatprep.subr.bf16.mxu0 0
  %299 = vmatpush1.bf16.msra.mxu0 0
  %300 = vmatprep.subr.bf16.mxu0 0
  %301 = vmatpush1.bf16.msra.mxu0 0
  %302 = vmatprep.subr.bf16.mxu0 0
  %303 = vmatpush1.bf16.msra.mxu0 0
  %304 = vmatprep.subr.bf16.mxu0 0
  %305 = vmatpush1.bf16.msra.mxu0 0
  %306 = vmatprep.subr.bf16.mxu0 0
  %307 = vmatpush1.bf16.msra.mxu0 0
  %308 = vmatprep.mubr.bf16.mxu0 0
  %309 = vmatmul.mubr.bf16.gmra.mrb[0].mxu0 %v231
  %v310 = vpop.f32.mrb[0].mxu0
  %v311 = vadd.f32 %v121, %v310
  %v312 = vpop.f32.mrb[0].mxu0
  %v313 = vadd.f32 %v125, %v312
  %v314 = vpop.f32.mrb[0].mxu0
  %v315 = vadd.f32 %v121, %v314
  %v316 = vpop.f32.mrb[0].mxu0
  %v317 = vadd.f32 %v125, %v316
  %318 = vdwg.mxu0
  %319 = vmatprep.subr.bf16.mxu0 %v203
  %320 = vmatpush1.bf16.msra.mxu0 %v202
  %321 = vmatprep.subr.bf16.mxu0 %v211
  %322 = vmatpush1.bf16.msra.mxu0 %v210
  %323 = vmatprep.subr.bf16.mxu0 0
  %324 = vmatpush1.bf16.msra.mxu0 0
  %325 = vmatprep.subr.bf16.mxu0 0
  %326 = vmatpush1.bf16.msra.mxu0 0
  %327 = vmatprep.subr.bf16.mxu0 0
  %328 = vmatpush1.bf16.msra.mxu0 0
  %329 = vmatprep.subr.bf16.mxu0 0
  %330 = vmatpush1.bf16.msra.mxu0 0
  %331 = vmatprep.subr.bf16.mxu0 0
  %332 = vmatpush1.bf16.msra.mxu0 0
  %333 = vmatprep.subr.bf16.mxu0 0
  %334 = vmatpush1.bf16.msra.mxu0 0
  %335 = vmatprep.subr.bf16.mxu0 0
  %336 = vmatpush1.bf16.msra.mxu0 0
  %337 = vmatprep.subr.bf16.mxu0 0
  %338 = vmatpush1.bf16.msra.mxu0 0
  %339 = vmatprep.subr.bf16.mxu0 0
  %340 = vmatpush1.bf16.msra.mxu0 0
  %341 = vmatprep.subr.bf16.mxu0 0
  %342 = vmatpush1.bf16.msra.mxu0 0
  %343 = vmatprep.subr.bf16.mxu0 0
  %344 = vmatpush1.bf16.msra.mxu0 0
  %345 = vmatprep.subr.bf16.mxu0 0
  %346 = vmatpush1.bf16.msra.mxu0 0
  %347 = vmatprep.subr.bf16.mxu0 0
  %348 = vmatpush1.bf16.msra.mxu0 0
  %349 = vmatprep.subr.bf16.mxu0 0
  %350 = vmatpush1.bf16.msra.mxu0 0
  %351 = vmatprep.mubr.bf16.mxu0 0
  %352 = vmatmul.mubr.bf16.gmra.mrb[0].mxu0 %v231
  %v353 = vpop.f32.mrb[0].mxu0
  %v354 = vadd.f32 %v129, %v353
  %v355 = vpop.f32.mrb[0].mxu0
  %v356 = vadd.f32 %v133, %v355
  %v357 = vpop.f32.mrb[0].mxu0
  %v358 = vadd.f32 %v129, %v357
  %v359 = vpop.f32.mrb[0].mxu0
  %v360 = vadd.f32 %v133, %v359
  %361 = vdwg.mxu0
  %362 = vmatprep.subr.bf16.mxu0 %v205
  %363 = vmatpush1.bf16.msra.mxu0 %v204
  %364 = vmatprep.subr.bf16.mxu0 %v213
  %365 = vmatpush1.bf16.msra.mxu0 %v212
  %366 = vmatprep.subr.bf16.mxu0 0
  %367 = vmatpush1.bf16.msra.mxu0 0
  %368 = vmatprep.subr.bf16.mxu0 0
  %369 = vmatpush1.bf16.msra.mxu0 0
  %370 = vmatprep.subr.bf16.mxu0 0
  %371 = vmatpush1.bf16.msra.mxu0 0
  %372 = vmatprep.subr.bf16.mxu0 0
  %373 = vmatpush1.bf16.msra.mxu0 0
  %374 = vmatprep.subr.bf16.mxu0 0
  %375 = vmatpush1.bf16.msra.mxu0 0
  %376 = vmatprep.subr.bf16.mxu0 0
  %377 = vmatpush1.bf16.msra.mxu0 0
  %378 = vmatprep.subr.bf16.mxu0 0
  %379 = vmatpush1.bf16.msra.mxu0 0
  %380 = vmatprep.subr.bf16.mxu0 0
  %381 = vmatpush1.bf16.msra.mxu0 0
  %382 = vmatprep.subr.bf16.mxu0 0
  %383 = vmatpush1.bf16.msra.mxu0 0
  %384 = vmatprep.subr.bf16.mxu0 0
  %385 = vmatpush1.bf16.msra.mxu0 0
  %386 = vmatprep.subr.bf16.mxu0 0
  %387 = vmatpush1.bf16.msra.mxu0 0
  %388 = vmatprep.subr.bf16.mxu0 0
  %389 = vmatpush1.bf16.msra.mxu0 0
  %390 = vmatprep.subr.bf16.mxu0 0
  %391 = vmatpush1.bf16.msra.mxu0 0
  %392 = vmatprep.subr.bf16.mxu0 0
  %393 = vmatpush1.bf16.msra.mxu0 0
  %394 = vmatprep.mubr.bf16.mxu0 0
  %395 = vmatmul.mubr.bf16.gmra.mrb[0].mxu0 %v231
  %v396 = vpop.f32.mrb[0].mxu0
  %v397 = vadd.f32 %v137, %v396
  %v398 = vpop.f32.mrb[0].mxu0
  %v399 = vadd.f32 %v141, %v398
  %v400 = vpop.f32.mrb[0].mxu0
  %v401 = vadd.f32 %v137, %v400
  %v402 = vpop.f32.mrb[0].mxu0
  %v403 = vadd.f32 %v141, %v402
  %404 = vdwg.mxu0
  %v405 = vmul.f32 %v268, 0.5
  %v406 = vmul.f32 %v270, 0.5
  %v407 = vmul.f32 %v311, 0.5
  %v408 = vmul.f32 %v313, 0.5
  %v409 = vmul.f32 %v354, 0.5
  %v410 = vmul.f32 %v356, 0.5
  %v411 = vmul.f32 %v397, 0.5
  %v412 = vmul.f32 %v399, 0.5
  %v413 = vmul.f32 %v272, 0.5
  %v414 = vmul.f32 %v274, 0.5
  %v415 = vmul.f32 %v315, 0.5
  %v416 = vmul.f32 %v317, 0.5
  %v417 = vmul.f32 %v358, 0.5
  %v418 = vmul.f32 %v360, 0.5
  %v419 = vmul.f32 %v401, 0.5
  %v420 = vmul.f32 %v403, 0.5
  %v421 = vmul.f32 %v268, 0.044715
  %v422 = vmul.f32 %v270, 0.044715
  %v423 = vmul.f32 %v311, 0.044715
  %v424 = vmul.f32 %v313, 0.044715
  %v425 = vmul.f32 %v354, 0.044715
  %v426 = vmul.f32 %v356, 0.044715
  %v427 = vmul.f32 %v397, 0.044715
  %v428 = vmul.f32 %v399, 0.044715
  %v429 = vmul.f32 %v272, 0.044715
  %v430 = vmul.f32 %v274, 0.044715
  %v431 = vmul.f32 %v315, 0.044715
  %v432 = vmul.f32 %v317, 0.044715
  %v433 = vmul.f32 %v358, 0.044715
  %v434 = vmul.f32 %v360, 0.044715
  %v435 = vmul.f32 %v401, 0.044715
  %v436 = vmul.f32 %v403, 0.044715
  %v437 = vmul.f32 %v421, %v268
  %v438 = vmul.f32 %v422, %v270
  %v439 = vmul.f32 %v423, %v311
  %v440 = vmul.f32 %v424, %v313
  %v441 = vmul.f32 %v425, %v354
  %v442 = vmul.f32 %v426, %v356
  %v443 = vmul.f32 %v427, %v397
  %v444 = vmul.f32 %v428, %v399
  %v445 = vmul.f32 %v429, %v272
  %v446 = vmul.f32 %v430, %v274
  %v447 = vmul.f32 %v431, %v315
  %v448 = vmul.f32 %v432, %v317
  %v449 = vmul.f32 %v433, %v358
  %v450 = vmul.f32 %v434, %v360
  %v451 = vmul.f32 %v435, %v401
  %v452 = vmul.f32 %v436, %v403
  %v453 = vmul.f32 %v437, %v268
  %v454 = vmul.f32 %v438, %v270
  %v455 = vmul.f32 %v439, %v311
  %v456 = vmul.f32 %v440, %v313
  %v457 = vmul.f32 %v441, %v354
  %v458 = vmul.f32 %v442, %v356
  %v459 = vmul.f32 %v443, %v397
  %v460 = vmul.f32 %v444, %v399
  %v461 = vmul.f32 %v445, %v272
  %v462 = vmul.f32 %v446, %v274
  %v463 = vmul.f32 %v447, %v315
  %v464 = vmul.f32 %v448, %v317
  %v465 = vmul.f32 %v449, %v358
  %v466 = vmul.f32 %v450, %v360
  %v467 = vmul.f32 %v451, %v401
  %v468 = vmul.f32 %v452, %v403
  %v469 = vadd.f32 %v268, %v453
  %v470 = vadd.f32 %v270, %v454
  %v471 = vadd.f32 %v311, %v455
  %v472 = vadd.f32 %v313, %v456
  %v473 = vadd.f32 %v354, %v457
  %v474 = vadd.f32 %v356, %v458
  %v475 = vadd.f32 %v397, %v459
  %v476 = vadd.f32 %v399, %v460
  %v477 = vadd.f32 %v272, %v461
  %v478 = vadd.f32 %v274, %v462
  %v479 = vadd.f32 %v315, %v463
  %v480 = vadd.f32 %v317, %v464
  %v481 = vadd.f32 %v358, %v465
  %v482 = vadd.f32 %v360, %v466
  %v483 = vadd.f32 %v401, %v467
  %v484 = vadd.f32 %v403, %v468
  %v485 = vmul.f32 %v469, 0.7978846
  %v486 = vmul.f32 %v470, 0.7978846
  %v487 = vmul.f32 %v471, 0.7978846
  %v488 = vmul.f32 %v472, 0.7978846
  %v489 = vmul.f32 %v473, 0.7978846
  %v490 = vmul.f32 %v474, 0.7978846
  %v491 = vmul.f32 %v475, 0.7978846
  %v492 = vmul.f32 %v476, 0.7978846
  %v493 = vmul.f32 %v477, 0.7978846
  %v494 = vmul.f32 %v478, 0.7978846
  %v495 = vmul.f32 %v479, 0.7978846
  %v496 = vmul.f32 %v480, 0.7978846
  %v497 = vmul.f32 %v481, 0.7978846
  %v498 = vmul.f32 %v482, 0.7978846
  %v499 = vmul.f32 %v483, 0.7978846
  %v500 = vmul.f32 %v484, 0.7978846
  %v501 = vtanh.pop %v485
  %v502 = vtanh.pop %v486
  %v503 = vtanh.pop %v487
  %v504 = vtanh.pop %v488
  %v505 = vtanh.pop %v489
  %v506 = vtanh.pop %v490
  %v507 = vtanh.pop %v491
  %v508 = vtanh.pop %v492
  %v509 = vtanh.pop %v493
  %v510 = vtanh.pop %v494
  %v511 = vtanh.pop %v495
  %v512 = vtanh.pop %v496
  %v513 = vtanh.pop %v497
  %v514 = vtanh.pop %v498
  %v515 = vtanh.pop %v499
  %v516 = vtanh.pop %v500
  %v517 = vadd.f32 %v501, 1.0
  %v518 = vadd.f32 %v502, 1.0
  %v519 = vadd.f32 %v503, 1.0
  %v520 = vadd.f32 %v504, 1.0
  %v521 = vadd.f32 %v505, 1.0
  %v522 = vadd.f32 %v506, 1.0
  %v523 = vadd.f32 %v507, 1.0
  %v524 = vadd.f32 %v508, 1.0
  %v525 = vadd.f32 %v509, 1.0
  %v526 = vadd.f32 %v510, 1.0
  %v527 = vadd.f32 %v511, 1.0
  %v528 = vadd.f32 %v512, 1.0
  %v529 = vadd.f32 %v513, 1.0
  %v530 = vadd.f32 %v514, 1.0
  %v531 = vadd.f32 %v515, 1.0
  %v532 = vadd.f32 %v516, 1.0
  %v533 = vmul.f32 %v405, %v517
  %v534 = vmul.f32 %v406, %v518
  %v535 = vmul.f32 %v407, %v519
  %v536 = vmul.f32 %v408, %v520
  %v537 = vmul.f32 %v409, %v521
  %v538 = vmul.f32 %v410, %v522
  %v539 = vmul.f32 %v411, %v523
  %v540 = vmul.f32 %v412, %v524
  %v541 = vmul.f32 %v413, %v525
  %v542 = vmul.f32 %v414, %v526
  %v543 = vmul.f32 %v415, %v527
  %v544 = vmul.f32 %v416, %v528
  %v545 = vmul.f32 %v417, %v529
  %v546 = vmul.f32 %v418, %v530
  %v547 = vmul.f32 %v419, %v531
  %v548 = vmul.f32 %v420, %v532
  %v549 = vpack.c.bf16 %v541, %v533
  %v550 = vpack.c.bf16 %v542, %v534
  %v551 = vpack.c.bf16 %v543, %v535
  %v552 = vpack.c.bf16 %v544, %v536
  %v553 = vpack.c.bf16 %v545, %v537
  %v554 = vpack.c.bf16 %v546, %v538
  %v555 = vpack.c.bf16 %v547, %v539
  %v556 = vpack.c.bf16 %v548, %v540
  %v557 = vld [vmem:[%s5] sm:$0xf]
  %v558 = vld [vmem:[%s5 + $0x4] sm:$0xf]
  %v559 = vld [vmem:[%s5 + $0x8] sm:$0xf]
  %v560 = vld [vmem:[%s5 + $0xc] sm:$0xf]
  %v561 = vld [vmem:[%s5 + $0x10] sm:$0xf]
  %v562 = vld [vmem:[%s5 + $0x14] sm:$0xf]
  %v563 = vld [vmem:[%s5 + $0x18] sm:$0xf]
  %v564 = vld [vmem:[%s5 + $0x1c] sm:$0xf]
  %v565 = vld [vmem:[%s5 + $0x20] sm:$0xf]
  %v566 = vld [vmem:[%s5 + $0x24] sm:$0xf]
  %v567 = vld [vmem:[%s5 + $0x28] sm:$0xf]
  %v568 = vld [vmem:[%s5 + $0x2c] sm:$0xf]
  %v569 = vld [vmem:[%s5 + $0x30] sm:$0xf]
  %v570 = vld [vmem:[%s5 + $0x34] sm:$0xf]
  %v571 = vld [vmem:[%s5 + $0x38] sm:$0xf]
  %v572 = vld [vmem:[%s5 + $0x3c] sm:$0xf]
  %v573 = vld [vmem:[%s5 + $0x40] sm:$0xf]
  %v574 = vld [vmem:[%s5 + $0x44] sm:$0xf]
  %v575 = vld [vmem:[%s5 + $0x48] sm:$0xf]
  %v576 = vld [vmem:[%s5 + $0x4c] sm:$0xf]
  %v577 = vld [vmem:[%s5 + $0x50] sm:$0xf]
  %v578 = vld [vmem:[%s5 + $0x54] sm:$0xf]
  %v579 = vld [vmem:[%s5 + $0x58] sm:$0xf]
  %v580 = vld [vmem:[%s5 + $0x5c] sm:$0xf]
  %v581 = vld [vmem:[%s5 + $0x60] sm:$0xf]
  %v582 = vld [vmem:[%s5 + $0x64] sm:$0xf]
  %v583 = vld [vmem:[%s5 + $0x68] sm:$0xf]
  %v584 = vld [vmem:[%s5 + $0x6c] sm:$0xf]
  %v585 = vld [vmem:[%s5 + $0x70] sm:$0xf]
  %v586 = vld [vmem:[%s5 + $0x74] sm:$0xf]
  %v587 = vld [vmem:[%s5 + $0x78] sm:$0xf]
  %v588 = vld [vmem:[%s5 + $0x7c] sm:$0xf]
  %v589 = vld [vmem:[%s5 + $0x80] sm:$0xf]
  %v590 = vld [vmem:[%s5 + $0x84] sm:$0xf]
  %v591 = vld [vmem:[%s5 + $0x88] sm:$0xf]
  %v592 = vld [vmem:[%s5 + $0x8c] sm:$0xf]
  %v593 = vld [vmem:[%s5 + $0x90] sm:$0xf]
  %v594 = vld [vmem:[%s5 + $0x94] sm:$0xf]
  %v595 = vld [vmem:[%s5 + $0x98] sm:$0xf]
  %v596 = vld [vmem:[%s5 + $0x9c] sm:$0xf]
  %v597 = vld [vmem:[%s5 + $0xa0] sm:$0xf]
  %v598 = vld [vmem:[%s5 + $0xa4] sm:$0xf]
  %v599 = vld [vmem:[%s5 + $0xa8] sm:$0xf]
  %v600 = vld [vmem:[%s5 + $0xac] sm:$0xf]
  %v601 = vld [vmem:[%s5 + $0xb0] sm:$0xf]
  %v602 = vld [vmem:[%s5 + $0xb4] sm:$0xf]
  %v603 = vld [vmem:[%s5 + $0xb8] sm:$0xf]
  %v604 = vld [vmem:[%s5 + $0xbc] sm:$0xf]
  %v605 = vld [vmem:[%s5 + $0xc0] sm:$0xf]
  %v606 = vld [vmem:[%s5 + $0xc4] sm:$0xf]
  %v607 = vld [vmem:[%s5 + $0xc8] sm:$0xf]
  %v608 = vld [vmem:[%s5 + $0xcc] sm:$0xf]
  %v609 = vld [vmem:[%s5 + $0xd0] sm:$0xf]
  %v610 = vld [vmem:[%s5 + $0xd4] sm:$0xf]
  %v611 = vld [vmem:[%s5 + $0xd8] sm:$0xf]
  %v612 = vld [vmem:[%s5 + $0xdc] sm:$0xf]
  %v613 = vld [vmem:[%s5 + $0xe0] sm:$0xf]
  %v614 = vld [vmem:[%s5 + $0xe4] sm:$0xf]
  %v615 = vld [vmem:[%s5 + $0xe8] sm:$0xf]
  %v616 = vld [vmem:[%s5 + $0xec] sm:$0xf]
  %v617 = vld [vmem:[%s5 + $0xf0] sm:$0xf]
  %v618 = vld [vmem:[%s5 + $0xf4] sm:$0xf]
  %v619 = vld [vmem:[%s5 + $0xf8] sm:$0xf]
  %v620 = vld [vmem:[%s5 + $0xfc] sm:$0xf]
  %v621 = vld [vmem:[%s5 + $0x100] sm:$0xf]
  %v622 = vld [vmem:[%s5 + $0x104] sm:$0xf]
  %v623 = vld [vmem:[%s5 + $0x108] sm:$0xf]
  %v624 = vld [vmem:[%s5 + $0x10c] sm:$0xf]
  %v625 = vld [vmem:[%s5 + $0x110] sm:$0xf]
  %v626 = vld [vmem:[%s5 + $0x114] sm:$0xf]
  %v627 = vld [vmem:[%s5 + $0x118] sm:$0xf]
  %v628 = vld [vmem:[%s5 + $0x11c] sm:$0xf]
  %v629 = vld [vmem:[%s5 + $0x120] sm:$0xf]
  %v630 = vld [vmem:[%s5 + $0x124] sm:$0xf]
  %v631 = vld [vmem:[%s5 + $0x128] sm:$0xf]
  %v632 = vld [vmem:[%s5 + $0x12c] sm:$0xf]
  %v633 = vld [vmem:[%s5 + $0x130] sm:$0xf]
  %v634 = vld [vmem:[%s5 + $0x134] sm:$0xf]
  %v635 = vld [vmem:[%s5 + $0x138] sm:$0xf]
  %v636 = vld [vmem:[%s5 + $0x13c] sm:$0xf]
  %v637 = vld [vmem:[%s5 + $0x140] sm:$0xf]
  %v638 = vld [vmem:[%s5 + $0x144] sm:$0xf]
  %v639 = vld [vmem:[%s5 + $0x148] sm:$0xf]
  %v640 = vld [vmem:[%s5 + $0x14c] sm:$0xf]
  %v641 = vld [vmem:[%s5 + $0x150] sm:$0xf]
  %v642 = vld [vmem:[%s5 + $0x154] sm:$0xf]
  %v643 = vld [vmem:[%s5 + $0x158] sm:$0xf]
  %v644 = vld [vmem:[%s5 + $0x15c] sm:$0xf]
  %v645 = vld [vmem:[%s5 + $0x160] sm:$0xf]
  %v646 = vld [vmem:[%s5 + $0x164] sm:$0xf]
  %v647 = vld [vmem:[%s5 + $0x168] sm:$0xf]
  %v648 = vld [vmem:[%s5 + $0x16c] sm:$0xf]
  %v649 = vld [vmem:[%s5 + $0x170] sm:$0xf]
  %v650 = vld [vmem:[%s5 + $0x174] sm:$0xf]
  %v651 = vld [vmem:[%s5 + $0x178] sm:$0xf]
  %v652 = vld [vmem:[%s5 + $0x17c] sm:$0xf]
  %v653 = vld [vmem:[%s5 + $0x180] sm:$0xf]
  %v654 = vld [vmem:[%s5 + $0x184] sm:$0xf]
  %v655 = vld [vmem:[%s5 + $0x188] sm:$0xf]
  %v656 = vld [vmem:[%s5 + $0x18c] sm:$0xf]
  %v657 = vld [vmem:[%s5 + $0x190] sm:$0xf]
  %v658 = vld [vmem:[%s5 + $0x194] sm:$0xf]
  %v659 = vld [vmem:[%s5 + $0x198] sm:$0xf]
  %v660 = vld [vmem:[%s5 + $0x19c] sm:$0xf]
  %v661 = vld [vmem:[%s5 + $0x1a0] sm:$0xf]
  %v662 = vld [vmem:[%s5 + $0x1a4] sm:$0xf]
  %v663 = vld [vmem:[%s5 + $0x1a8] sm:$0xf]
  %v664 = vld [vmem:[%s5 + $0x1ac] sm:$0xf]
  %v665 = vld [vmem:[%s5 + $0x1b0] sm:$0xf]
  %v666 = vld [vmem:[%s5 + $0x1b4] sm:$0xf]
  %v667 = vld [vmem:[%s5 + $0x1b8] sm:$0xf]
  %v668 = vld [vmem:[%s5 + $0x1bc] sm:$0xf]
  %v669 = vld [vmem:[%s5 + $0x1c0] sm:$0xf]
  %v670 = vld [vmem:[%s5 + $0x1c4] sm:$0xf]
  %v671 = vld [vmem:[%s5 + $0x1c8] sm:$0xf]
  %v672 = vld [vmem:[%s5 + $0x1cc] sm:$0xf]
  %v673 = vld [vmem:[%s5 + $0x1d0] sm:$0xf]
  %v674 = vld [vmem:[%s5 + $0x1d4] sm:$0xf]
  %v675 = vld [vmem:[%s5 + $0x1d8] sm:$0xf]
  %v676 = vld [vmem:[%s5 + $0x1dc] sm:$0xf]
  %v677 = vld [vmem:[%s5 + $0x1e0] sm:$0xf]
  %v678 = vld [vmem:[%s5 + $0x1e4] sm:$0xf]
  %v679 = vld [vmem:[%s5 + $0x1e8] sm:$0xf]
  %v680 = vld [vmem:[%s5 + $0x1ec] sm:$0xf]
  %v681 = vld [vmem:[%s5 + $0x1f0] sm:$0xf]
  %v682 = vld [vmem:[%s5 + $0x1f4] sm:$0xf]
  %v683 = vld [vmem:[%s5 + $0x1f8] sm:$0xf]
  %v684 = vld [vmem:[%s5 + $0x1fc] sm:$0xf]
  %v685 = vld [vmem:[%s6] sm:$0x1]
  %v687 = vlaneseq
  %v688 = vshrl.u32 %v687, 7
  %v689 = vsub.s32 0, %v688
  %v690 = vrot.slane %v685, %v689
  %v820 = vunpack.c.l.b16 %v557
  %v821 = vunpack.c.l.b16 %v558
  %v822 = vunpack.c.l.b16 %v559
  %v823 = vunpack.c.l.b16 %v560
  %v824 = vunpack.c.l.b16 %v561
  %v825 = vunpack.c.l.b16 %v562
  %v826 = vunpack.c.l.b16 %v563
  %v827 = vunpack.c.l.b16 %v564
  %v828 = vunpack.c.l.b16 %v565
  %v829 = vunpack.c.l.b16 %v566
  %v830 = vunpack.c.l.b16 %v567
  %v831 = vunpack.c.l.b16 %v568
  %v832 = vunpack.c.l.b16 %v569
  %v833 = vunpack.c.l.b16 %v570
  %v834 = vunpack.c.l.b16 %v571
  %v835 = vunpack.c.l.b16 %v572
  %v836 = vunpack.c.l.b16 %v573
  %v837 = vunpack.c.l.b16 %v574
  %v838 = vunpack.c.l.b16 %v575
  %v839 = vunpack.c.l.b16 %v576
  %v840 = vunpack.c.l.b16 %v577
  %v841 = vunpack.c.l.b16 %v578
  %v842 = vunpack.c.l.b16 %v579
  %v843 = vunpack.c.l.b16 %v580
  %v844 = vunpack.c.l.b16 %v581
  %v845 = vunpack.c.l.b16 %v582
  %v846 = vunpack.c.l.b16 %v583
  %v847 = vunpack.c.l.b16 %v584
  %v848 = vunpack.c.l.b16 %v585
  %v849 = vunpack.c.l.b16 %v586
  %v850 = vunpack.c.l.b16 %v587
  %v851 = vunpack.c.l.b16 %v588
  %v852 = vunpack.c.l.b16 %v589
  %v853 = vunpack.c.l.b16 %v590
  %v854 = vunpack.c.l.b16 %v591
  %v855 = vunpack.c.l.b16 %v592
  %v856 = vunpack.c.l.b16 %v593
  %v857 = vunpack.c.l.b16 %v594
  %v858 = vunpack.c.l.b16 %v595
  %v859 = vunpack.c.l.b16 %v596
  %v860 = vunpack.c.l.b16 %v597
  %v861 = vunpack.c.l.b16 %v598
  %v862 = vunpack.c.l.b16 %v599
  %v863 = vunpack.c.l.b16 %v600
  %v864 = vunpack.c.l.b16 %v601
  %v865 = vunpack.c.l.b16 %v602
  %v866 = vunpack.c.l.b16 %v603
  %v867 = vunpack.c.l.b16 %v604
  %v868 = vunpack.c.l.b16 %v605
  %v869 = vunpack.c.l.b16 %v606
  %v870 = vunpack.c.l.b16 %v607
  %v871 = vunpack.c.l.b16 %v608
  %v872 = vunpack.c.l.b16 %v609
  %v873 = vunpack.c.l.b16 %v610
  %v874 = vunpack.c.l.b16 %v611
  %v875 = vunpack.c.l.b16 %v612
  %v876 = vunpack.c.l.b16 %v613
  %v877 = vunpack.c.l.b16 %v614
  %v878 = vunpack.c.l.b16 %v615
  %v879 = vunpack.c.l.b16 %v616
  %v880 = vunpack.c.l.b16 %v617
  %v881 = vunpack.c.l.b16 %v618
  %v882 = vunpack.c.l.b16 %v619
  %v883 = vunpack.c.l.b16 %v620
  %v884 = vunpack.c.l.b16 %v621
  %v885 = vunpack.c.l.b16 %v622
  %v886 = vunpack.c.l.b16 %v623
  %v887 = vunpack.c.l.b16 %v624
  %v888 = vunpack.c.l.b16 %v625
  %v889 = vunpack.c.l.b16 %v626
  %v890 = vunpack.c.l.b16 %v627
  %v891 = vunpack.c.l.b16 %v628
  %v892 = vunpack.c.l.b16 %v629
  %v893 = vunpack.c.l.b16 %v630
  %v894 = vunpack.c.l.b16 %v631
  %v895 = vunpack.c.l.b16 %v632
  %v896 = vunpack.c.l.b16 %v633
  %v897 = vunpack.c.l.b16 %v634
  %v898 = vunpack.c.l.b16 %v635
  %v899 = vunpack.c.l.b16 %v636
  %v900 = vunpack.c.l.b16 %v637
  %v901 = vunpack.c.l.b16 %v638
  %v902 = vunpack.c.l.b16 %v639
  %v903 = vunpack.c.l.b16 %v640
  %v904 = vunpack.c.l.b16 %v641
  %v905 = vunpack.c.l.b16 %v642
  %v906 = vunpack.c.l.b16 %v643
  %v907 = vunpack.c.l.b16 %v644
  %v908 = vunpack.c.l.b16 %v645
  %v909 = vunpack.c.l.b16 %v646
  %v910 = vunpack.c.l.b16 %v647
  %v911 = vunpack.c.l.b16 %v648
  %v912 = vunpack.c.l.b16 %v649
  %v913 = vunpack.c.l.b16 %v650
  %v914 = vunpack.c.l.b16 %v651
  %v915 = vunpack.c.l.b16 %v652
  %v916 = vunpack.c.l.b16 %v653
  %v917 = vunpack.c.l.b16 %v654
  %v918 = vunpack.c.l.b16 %v655
  %v919 = vunpack.c.l.b16 %v656
  %v920 = vunpack.c.l.b16 %v657
  %v921 = vunpack.c.l.b16 %v658
  %v922 = vunpack.c.l.b16 %v659
  %v923 = vunpack.c.l.b16 %v660
  %v924 = vunpack.c.l.b16 %v661
  %v925 = vunpack.c.l.b16 %v662
  %v926 = vunpack.c.l.b16 %v663
  %v927 = vunpack.c.l.b16 %v664
  %v928 = vunpack.c.l.b16 %v665
  %v929 = vunpack.c.l.b16 %v666
  %v930 = vunpack.c.l.b16 %v667
  %v931 = vunpack.c.l.b16 %v668
  %v932 = vunpack.c.l.b16 %v669
  %v933 = vunpack.c.l.b16 %v670
  %v934 = vunpack.c.l.b16 %v671
  %v935 = vunpack.c.l.b16 %v672
  %v936 = vunpack.c.l.b16 %v673
  %v937 = vunpack.c.l.b16 %v674
  %v938 = vunpack.c.l.b16 %v675
  %v939 = vunpack.c.l.b16 %v676
  %v940 = vunpack.c.l.b16 %v677
  %v941 = vunpack.c.l.b16 %v678
  %v942 = vunpack.c.l.b16 %v679
  %v943 = vunpack.c.l.b16 %v680
  %v944 = vunpack.c.l.b16 %v681
  %v945 = vunpack.c.l.b16 %v682
  %v946 = vunpack.c.l.b16 %v683
  %v947 = vunpack.c.l.b16 %v684
  %v948 = vpack.c.b16 %v821, %v820
  %v949 = vpack.c.b16 %v823, %v822
  %v950 = vpack.c.b16 %v825, %v824
  %v951 = vpack.c.b16 %v827, %v826
  %v952 = vpack.c.b16 %v829, %v828
  %v953 = vpack.c.b16 %v831, %v830
  %v954 = vpack.c.b16 %v833, %v832
  %v955 = vpack.c.b16 %v835, %v834
  %v956 = vpack.c.b16 %v837, %v836
  %v957 = vpack.c.b16 %v839, %v838
  %v958 = vpack.c.b16 %v841, %v840
  %v959 = vpack.c.b16 %v843, %v842
  %v960 = vpack.c.b16 %v845, %v844
  %v961 = vpack.c.b16 %v847, %v846
  %v962 = vpack.c.b16 %v849, %v848
  %v963 = vpack.c.b16 %v851, %v850
  %v964 = vpack.c.b16 %v853, %v852
  %v965 = vpack.c.b16 %v855, %v854
  %v966 = vpack.c.b16 %v857, %v856
  %v967 = vpack.c.b16 %v859, %v858
  %v968 = vpack.c.b16 %v861, %v860
  %v969 = vpack.c.b16 %v863, %v862
  %v970 = vpack.c.b16 %v865, %v864
  %v971 = vpack.c.b16 %v867, %v866
  %v972 = vpack.c.b16 %v869, %v868
  %v973 = vpack.c.b16 %v871, %v870
  %v974 = vpack.c.b16 %v873, %v872
  %v975 = vpack.c.b16 %v875, %v874
  %v976 = vpack.c.b16 %v877, %v876
  %v977 = vpack.c.b16 %v879, %v878
  %v978 = vpack.c.b16 %v881, %v880
  %v979 = vpack.c.b16 %v883, %v882
  %v980 = vpack.c.b16 %v885, %v884
  %v981 = vpack.c.b16 %v887, %v886
  %v982 = vpack.c.b16 %v889, %v888
  %v983 = vpack.c.b16 %v891, %v890
  %v984 = vpack.c.b16 %v893, %v892
  %v985 = vpack.c.b16 %v895, %v894
  %v986 = vpack.c.b16 %v897, %v896
  %v987 = vpack.c.b16 %v899, %v898
  %v988 = vpack.c.b16 %v901, %v900
  %v989 = vpack.c.b16 %v903, %v902
  %v990 = vpack.c.b16 %v905, %v904
  %v991 = vpack.c.b16 %v907, %v906
  %v992 = vpack.c.b16 %v909, %v908
  %v993 = vpack.c.b16 %v911, %v910
  %v994 = vpack.c.b16 %v913, %v912
  %v995 = vpack.c.b16 %v915, %v914
  %v996 = vpack.c.b16 %v917, %v916
  %v997 = vpack.c.b16 %v919, %v918
  %v998 = vpack.c.b16 %v921, %v920
  %v999 = vpack.c.b16 %v923, %v922
  %v1000 = vpack.c.b16 %v925, %v924
  %v1001 = vpack.c.b16 %v927, %v926
  %v1002 = vpack.c.b16 %v929, %v928
  %v1003 = vpack.c.b16 %v931, %v930
  %v1004 = vpack.c.b16 %v933, %v932
  %v1005 = vpack.c.b16 %v935, %v934
  %v1006 = vpack.c.b16 %v937, %v936
  %v1007 = vpack.c.b16 %v939, %v938
  %v1008 = vpack.c.b16 %v941, %v940
  %v1009 = vpack.c.b16 %v943, %v942
  %v1010 = vpack.c.b16 %v945, %v944
  %v1011 = vpack.c.b16 %v947, %v946
  %1076 = vmatprep.subr.bf16.mxu0 0
  %1077 = vmatpush1.bf16.msra.mxu0 %v948
  %1078 = vmatprep.subr.bf16.mxu0 0
  %1079 = vmatpush1.bf16.msra.mxu0 %v949
  %1080 = vmatprep.subr.bf16.mxu0 0
  %1081 = vmatpush1.bf16.msra.mxu0 %v950
  %1082 = vmatprep.subr.bf16.mxu0 0
  %1083 = vmatpush1.bf16.msra.mxu0 %v951
  %1084 = vmatprep.subr.bf16.mxu0 0
  %1085 = vmatpush1.bf16.msra.mxu0 %v952
  %1086 = vmatprep.subr.bf16.mxu0 0
  %1087 = vmatpush1.bf16.msra.mxu0 %v953
  %1088 = vmatprep.subr.bf16.mxu0 0
  %1089 = vmatpush1.bf16.msra.mxu0 %v954
  %1090 = vmatprep.subr.bf16.mxu0 0
  %1091 = vmatpush1.bf16.msra.mxu0 %v955
  %1092 = vmatprep.subr.bf16.mxu0 0
  %1093 = vmatpush1.bf16.msra.mxu0 %v956
  %1094 = vmatprep.subr.bf16.mxu0 0
  %1095 = vmatpush1.bf16.msra.mxu0 %v957
  %1096 = vmatprep.subr.bf16.mxu0 0
  %1097 = vmatpush1.bf16.msra.mxu0 %v958
  %1098 = vmatprep.subr.bf16.mxu0 0
  %1099 = vmatpush1.bf16.msra.mxu0 %v959
  %1100 = vmatprep.subr.bf16.mxu0 0
  %1101 = vmatpush1.bf16.msra.mxu0 %v960
  %1102 = vmatprep.subr.bf16.mxu0 0
  %1103 = vmatpush1.bf16.msra.mxu0 %v961
  %1104 = vmatprep.subr.bf16.mxu0 0
  %1105 = vmatpush1.bf16.msra.mxu0 %v962
  %1106 = vmatprep.subr.bf16.mxu0 0
  %1107 = vmatpush1.bf16.msra.mxu0 %v963
  %1108 = vmatprep.mubr.bf16.mxu0 %v550
  %1109 = vmatmul.mubr.bf16.gmra.mrb[0].mxu0 %v549
  %v1110 = vpop.f32.mrb[0].mxu0
  %v1111 = vadd.f32 %v690, %v1110
  %v1112 = vpop.f32.mrb[0].mxu0
  %v1113 = vpop.f32.mrb[0].mxu0
  %v1114 = vadd.f32 %v690, %v1113
  %v1115 = vpop.f32.mrb[0].mxu0
  %1116 = vdwg.mxu0
  %1117 = vmatprep.subr.bf16.mxu0 0
  %1118 = vmatpush1.bf16.msra.mxu0 %v964
  %1119 = vmatprep.subr.bf16.mxu0 0
  %1120 = vmatpush1.bf16.msra.mxu0 %v965
  %1121 = vmatprep.subr.bf16.mxu0 0
  %1122 = vmatpush1.bf16.msra.mxu0 %v966
  %1123 = vmatprep.subr.bf16.mxu0 0
  %1124 = vmatpush1.bf16.msra.mxu0 %v967
  %1125 = vmatprep.subr.bf16.mxu0 0
  %1126 = vmatpush1.bf16.msra.mxu0 %v968
  %1127 = vmatprep.subr.bf16.mxu0 0
  %1128 = vmatpush1.bf16.msra.mxu0 %v969
  %1129 = vmatprep.subr.bf16.mxu0 0
  %1130 = vmatpush1.bf16.msra.mxu0 %v970
  %1131 = vmatprep.subr.bf16.mxu0 0
  %1132 = vmatpush1.bf16.msra.mxu0 %v971
  %1133 = vmatprep.subr.bf16.mxu0 0
  %1134 = vmatpush1.bf16.msra.mxu0 %v972
  %1135 = vmatprep.subr.bf16.mxu0 0
  %1136 = vmatpush1.bf16.msra.mxu0 %v973
  %1137 = vmatprep.subr.bf16.mxu0 0
  %1138 = vmatpush1.bf16.msra.mxu0 %v974
  %1139 = vmatprep.subr.bf16.mxu0 0
  %1140 = vmatpush1.bf16.msra.mxu0 %v975
  %1141 = vmatprep.subr.bf16.mxu0 0
  %1142 = vmatpush1.bf16.msra.mxu0 %v976
  %1143 = vmatprep.subr.bf16.mxu0 0
  %1144 = vmatpush1.bf16.msra.mxu0 %v977
  %1145 = vmatprep.subr.bf16.mxu0 0
  %1146 = vmatpush1.bf16.msra.mxu0 %v978
  %1147 = vmatprep.subr.bf16.mxu0 0
  %1148 = vmatpush1.bf16.msra.mxu0 %v979
  %1149 = vmatprep.mubr.bf16.mxu0 %v552
  %1150 = vmatmul.mubr.bf16.gmra.mrb[0].mxu0 %v551
  %v1151 = vpop.f32.mrb[0].mxu0
  %v1152 = vadd.f32 %v1111, %v1151
  %v1153 = vpop.f32.mrb[0].mxu0
  %v1154 = vpop.f32.mrb[0].mxu0
  %v1155 = vadd.f32 %v1114, %v1154
  %v1156 = vpop.f32.mrb[0].mxu0
  %1157 = vdwg.mxu0
  %1158 = vmatprep.subr.bf16.mxu0 0
  %1159 = vmatpush1.bf16.msra.mxu0 %v980
  %1160 = vmatprep.subr.bf16.mxu0 0
  %1161 = vmatpush1.bf16.msra.mxu0 %v981
  %1162 = vmatprep.subr.bf16.mxu0 0
  %1163 = vmatpush1.bf16.msra.mxu0 %v982
  %1164 = vmatprep.subr.bf16.mxu0 0
  %1165 = vmatpush1.bf16.msra.mxu0 %v983
  %1166 = vmatprep.subr.bf16.mxu0 0
  %1167 = vmatpush1.bf16.msra.mxu0 %v984
  %1168 = vmatprep.subr.bf16.mxu0 0
  %1169 = vmatpush1.bf16.msra.mxu0 %v985
  %1170 = vmatprep.subr.bf16.mxu0 0
  %1171 = vmatpush1.bf16.msra.mxu0 %v986
  %1172 = vmatprep.subr.bf16.mxu0 0
  %1173 = vmatpush1.bf16.msra.mxu0 %v987
  %1174 = vmatprep.subr.bf16.mxu0 0
  %1175 = vmatpush1.bf16.msra.mxu0 %v988
  %1176 = vmatprep.subr.bf16.mxu0 0
  %1177 = vmatpush1.bf16.msra.mxu0 %v989
  %1178 = vmatprep.subr.bf16.mxu0 0
  %1179 = vmatpush1.bf16.msra.mxu0 %v990
  %1180 = vmatprep.subr.bf16.mxu0 0
  %1181 = vmatpush1.bf16.msra.mxu0 %v991
  %1182 = vmatprep.subr.bf16.mxu0 0
  %1183 = vmatpush1.bf16.msra.mxu0 %v992
  %1184 = vmatprep.subr.bf16.mxu0 0
  %1185 = vmatpush1.bf16.msra.mxu0 %v993
  %1186 = vmatprep.subr.bf16.mxu0 0
  %1187 = vmatpush1.bf16.msra.mxu0 %v994
  %1188 = vmatprep.subr.bf16.mxu0 0
  %1189 = vmatpush1.bf16.msra.mxu0 %v995
  %1190 = vmatprep.mubr.bf16.mxu0 %v554
  %1191 = vmatmul.mubr.bf16.gmra.mrb[0].mxu0 %v553
  %v1192 = vpop.f32.mrb[0].mxu0
  %v1193 = vadd.f32 %v1152, %v1192
  %v1194 = vpop.f32.mrb[0].mxu0
  %v1195 = vpop.f32.mrb[0].mxu0
  %v1196 = vadd.f32 %v1155, %v1195
  %v1197 = vpop.f32.mrb[0].mxu0
  %1198 = vdwg.mxu0
  %1199 = vmatprep.subr.bf16.mxu0 0
  %1200 = vmatpush1.bf16.msra.mxu0 %v996
  %1201 = vmatprep.subr.bf16.mxu0 0
  %1202 = vmatpush1.bf16.msra.mxu0 %v997
  %1203 = vmatprep.subr.bf16.mxu0 0
  %1204 = vmatpush1.bf16.msra.mxu0 %v998
  %1205 = vmatprep.subr.bf16.mxu0 0
  %1206 = vmatpush1.bf16.msra.mxu0 %v999
  %1207 = vmatprep.subr.bf16.mxu0 0
  %1208 = vmatpush1.bf16.msra.mxu0 %v1000
  %1209 = vmatprep.subr.bf16.mxu0 0
  %1210 = vmatpush1.bf16.msra.mxu0 %v1001
  %1211 = vmatprep.subr.bf16.mxu0 0
  %1212 = vmatpush1.bf16.msra.mxu0 %v1002
  %1213 = vmatprep.subr.bf16.mxu0 0
  %1214 = vmatpush1.bf16.msra.mxu0 %v1003
  %1215 = vmatprep.subr.bf16.mxu0 0
  %1216 = vmatpush1.bf16.msra.mxu0 %v1004
  %1217 = vmatprep.subr.bf16.mxu0 0
  %1218 = vmatpush1.bf16.msra.mxu0 %v1005
  %1219 = vmatprep.subr.bf16.mxu0 0
  %1220 = vmatpush1.bf16.msra.mxu0 %v1006
  %1221 = vmatprep.subr.bf16.mxu0 0
  %1222 = vmatpush1.bf16.msra.mxu0 %v1007
  %1223 = vmatprep.subr.bf16.mxu0 0
  %1224 = vmatpush1.bf16.msra.mxu0 %v1008
  %1225 = vmatprep.subr.bf16.mxu0 0
  %1226 = vmatpush1.bf16.msra.mxu0 %v1009
  %1227 = vmatprep.subr.bf16.mxu0 0
  %1228 = vmatpush1.bf16.msra.mxu0 %v1010
  %1229 = vmatprep.subr.bf16.mxu0 0
  %1230 = vmatpush1.bf16.msra.mxu0 %v1011
  %1231 = vmatprep.mubr.bf16.mxu0 %v556
  %1232 = vmatmul.mubr.bf16.gmra.mrb[0].mxu0 %v555
  %v1233 = vpop.f32.mrb[0].mxu0
  %v1234 = vadd.f32 %v1193, %v1233
  %v1235 = vpop.f32.mrb[0].mxu0
  %v1236 = vpop.f32.mrb[0].mxu0
  %v1237 = vadd.f32 %v1196, %v1236
  %v1238 = vpop.f32.mrb[0].mxu0
  %1239 = vdwg.mxu0
  %v1240 = vadd.f32 %v29, %v1234
  %v1241 = vadd.f32 %v30, %v1237
  %v1242 = vpack.c.bf16 %v1241, %v1240
  %v1244 = vunpack.c.l.b16 %v1242
  %v1245 = vunpack.c.h.b16 %v1242
  %v1246 = vpack.c.b16 %v1244, %v1244
  %v1247 = vpack.c.b16 %v1245, %v1245
  %vm1250 = vcmask 257024
  %1251 = vst.msk [vmem:[%s7] sm:$0xf] %vm1250, %v1246
  %1252 = vst.msk [vmem:[%s7 + $0x4] sm:$0xf] %vm1250, %v1247
  // Predicated region
  $region30: #{gpt2_forward.11} parent=0 // pred_check
    _
  $region31: #{gpt2_forward.11} parent=0 // pred_check_branch
    %1254 = sbr.rel (0) target = $region33
  $region32: #{gpt2_forward.11} parent=0 // pred_region
    _
  $region33: #{gpt2_forward.11} parent=0 // pred_fallthru
    _
  // Predicated region
  $region34: #{gpt2_forward.11} parent=0 // pred_check
    _
  $region35: #{gpt2_forward.11} parent=0 // pred_check_branch
    %1256 = sbr.rel (0) target = $region37
  $region36: #{gpt2_forward.11} parent=0 // pred_region
    _
  $region37: #{gpt2_forward.11} parent=0 // pred_fallthru
    _

</llo_original>
